<compile_context>
chip_gen: v7x
topology: tpu7x:2x2x1
jax: 0.10.0
libtpu: 0.0.40
codegen_flags: <defaults>
</compile_context>

<pallas_src>
import jax
import jax.numpy as jnp
import numpy as np
from jax.experimental import pallas as pl
from jax.experimental.pallas import tpu as pltpu

LANE = 128  # TPU lane width


def _round_up(a, m):
    return ((a + m - 1) // m) * m


def _tpu_topology():
    """Returns (generation, tensorcores_per_device, vmem_bytes_per_core).

    Uses device_kind / get_tpu_info when available, with safe fallbacks.
    """
    gen, cores, vmem = 6, 1, 128 * 1024 * 1024
    kind = ""
    try:
        kind = jax.devices()[0].device_kind.lower()
    except Exception:
        pass
    for g in (7, 6, 5, 4, 3, 2):
        if f"v{g}" in kind or f"tpu{g}" in kind:
            gen = g
            break
    # Megacore chips (v4 / v5p) and v7x expose 2 TensorCores per device.
    if gen == 4 or gen >= 7 or "v5p" in kind:
        cores = 2
    if gen >= 7:
        vmem = 64 * 1024 * 1024
    try:
        vmem = int(pltpu.get_tpu_info().vmem_capacity_bytes)
    except Exception:
        pass
    return gen, cores, vmem


# --------------------------------------------------------------------------- #
# Kernel
# --------------------------------------------------------------------------- #
def _make_ae_kernel(bf16_acts):
    """Fused 4-layer autoencoder forward for one (TB, N) batch tile."""
    act_dtype = jnp.bfloat16 if bf16_acts else jnp.float32

    def sigmoid(z):
        # tanh form: a single EUP transcendental per element; the mul/adds ride
        # on VPU slack (instead of exp + reciprocal = two EUP ops per element).
        return 0.5 * (jnp.tanh(0.5 * z) + 1.0)

    def kernel(x_ref,
               w1_ref, b1_ref,
               w2_ref, b2_ref,
               w3_ref, b3_ref,
               w4_ref, b4_ref,
               o_ref):
        # bf16 operands -> native-rate MXU; f32 accumulation; f32 bias add.
        x = x_ref[...].astype(jnp.bfloat16)

        def hidden(h_bf16, w_ref, b_ref):
            z = jnp.dot(h_bf16, w_ref[...],
                        preferred_element_type=jnp.float32) + b_ref[...]
            # Intermediate activation in bf16 on v6e/v7x (it is rounded to bf16
            # for the next matmul anyway); f32 on v5e.
            return sigmoid(z.astype(act_dtype)).astype(jnp.bfloat16)

        h1 = hidden(x, w1_ref, b1_ref)
        h2 = hidden(h1, w2_ref, b2_ref)
        h3 = hidden(h2, w3_ref, b3_ref)

        # Final (output) layer: activation kept in f32.
        z4 = jnp.dot(h3, w4_ref[...],
                     preferred_element_type=jnp.float32) + b4_ref[...]
        o_ref[...] = sigmoid(z4).astype(o_ref.dtype)

    return kernel


# --------------------------------------------------------------------------- #
# Parameters
# --------------------------------------------------------------------------- #
def init_params(key, len_data):
    """PyTorch nn.Linear-style init (uniform +/- 1/sqrt(fan_in)).

    Weights are stored as (in, out) = W_pt.T so each layer is y = sig(x @ W + b).
    Biases are stored as (1, out) to stay 2-D for the TPU layout.
    """
    l8 = len_data // 8
    l16 = len_data // 16
    dims = [(len_data, l8), (l8, l16), (l16, l8), (l8, len_data)]
    params = {}
    keys = jax.random.split(key, 2 * len(dims))
    for i, (fan_in, fan_out) in enumerate(dims):
        bound = 1.0 / np.sqrt(fan_in)
        params[f"w{i + 1}"] = jax.random.uniform(
            keys[2 * i], (fan_in, fan_out), minval=-bound, maxval=bound,
            dtype=jnp.float32)
        params[f"b{i + 1}"] = jax.random.uniform(
            keys[2 * i + 1], (1, fan_out), minval=-bound, maxval=bound,
            dtype=jnp.float32)
    return params


def prepare_params(params):
    """Lane-pad the N/16 bottleneck to a multiple of 128 and cast weights to bf16.

    Padding is exact: padded b2 columns are 0 => padded h2 lanes = sigmoid(0) = 0.5,
    and the corresponding w3 rows are 0, so their contribution is 0.5 * 0 = 0.
    Biases stay f32 (they are added to the f32 accumulator).
    """
    l16 = params["w2"].shape[1]
    pad = (-l16) % LANE
    w2 = jnp.pad(params["w2"], ((0, 0), (0, pad)))
    b2 = jnp.pad(params["b2"], ((0, 0), (0, pad)))
    w3 = jnp.pad(params["w3"], ((0, pad), (0, 0)))
    return {
        "w1": params["w1"].astype(jnp.bfloat16), "b1": params["b1"],
        "w2": w2.astype(jnp.bfloat16),           "b2": b2,
        "w3": w3.astype(jnp.bfloat16),           "b3": params["b3"],
        "w4": params["w4"].astype(jnp.bfloat16), "b4": params["b4"],
    }


# --------------------------------------------------------------------------- #
# Host wrapper
# --------------------------------------------------------------------------- #
def autoencoder_forward(x, prep, *, out_dtype=None, max_tb=1024):
    """x: (B, N) float32, prep: output of prepare_params. Returns (B, N) out_dtype.

    out_dtype=jnp.bfloat16 cuts output HBM traffic in half (interface change;
    default keeps the module's f32 semantics).
    """
    B, N = x.shape
    out_dtype = x.dtype if out_dtype is None else out_dtype
    l8 = N // 8
    assert N % LANE == 0 and l8 % LANE == 0, (
        "This kernel requires len_data to be a multiple of 1024 "
        "(so N and N/8 are lane-aligned).")
    l16p = prep["w2"].shape[1]  # lane-padded bottleneck width

    gen, num_cores, vmem_cap = _tpu_topology()
    bf16_acts = gen >= 6  # bf16 VPU/EUP on v6e/v7x; keep f32 activations on v5e

    # --- Generation-aware VMEM budget (25% headroom: ~48 MiB v7x, ~96 MiB v5e/v6e)
    weight_bytes = sum(int(np.prod(v.shape)) * v.dtype.itemsize
                       for v in prep.values())
    budget = int(0.75 * vmem_cap)
    x_item = jnp.dtype(x.dtype).itemsize
    o_item = jnp.dtype(out_dtype).itemsize
    act_item = 2 if bf16_acts else 4
    # Per-batch-row VMEM: double-buffered in/out tiles + intermediates + bf16 x copy.
    per_row = (2 * N * (x_item + o_item)
               + (2 * l8 + l16p) * act_item + N * 4 + N * 2)
    # Weights/biases counted double-buffered (Mosaic allocates 2 buffers even for
    # constant-index operands), so the budget stays honest at large len_data.
    # TODO(synk): for very large len_data, mark the weight BlockSpecs with
    # pipeline_mode=pl.Buffered(1) and add a K-tiled ("arbitrary", last) grid
    # axis with a pl.when-initialized f32 accumulator for layers 1 and 4.
    fixed = 2 * weight_bytes
    tb_cap = min(max_tb, ((budget - fixed) // per_row) // 8 * 8)
    if tb_cap < 8:
        raise ValueError("len_data too large for resident weights at this VMEM "
                         "budget; needs the K-tiling path (see TODO).")

    # --- Adaptive batch tiling: >=2 grid steps per TensorCore, <1 tile of padding
    min_steps = 2 * max(num_cores, 1)
    steps = max(min_steps, pl.cdiv(B, tb_cap))
    steps = _round_up(steps, max(num_cores, 1))     # even split across TCs
    tb = max(8, _round_up(pl.cdiv(B, steps), 8))    # multiple of 8 sublanes
    B_pad = steps * tb
    if B_pad != B:
        x = jnp.pad(x, ((0, B_pad - B), (0, 0)))
    grid = (steps,)

    batch_map = lambda i: (i, 0)
    const_map = lambda i: (0, 0)

    x_spec = pl.BlockSpec((tb, N), batch_map)
    out_spec = pl.BlockSpec((tb, N), batch_map)
    in_specs = [
        x_spec,
        pl.BlockSpec((N, l8), const_map),    pl.BlockSpec((1, l8), const_map),
        pl.BlockSpec((l8, l16p), const_map), pl.BlockSpec((1, l16p), const_map),
        pl.BlockSpec((l16p, l8), const_map), pl.BlockSpec((1, l8), const_map),
        pl.BlockSpec((l8, N), const_map),    pl.BlockSpec((1, N), const_map),
    ]

    # Advisory cost estimate: one tanh per activation, actual element sizes.
    flops = 2 * B_pad * (N * l8 + l8 * l16p + l16p * l8 + l8 * N)
    transcendentals = B_pad * (l8 + l16p + l8 + N)
    bytes_accessed = B_pad * N * (x_item + o_item) + weight_bytes

    out = pl.pallas_call(
        _make_ae_kernel(bf16_acts),
        out_shape=jax.ShapeDtypeStruct((B_pad, N), out_dtype),
        grid_spec=pltpu.PrefetchScalarGridSpec(
            num_scalar_prefetch=0,
            grid=grid,
            in_specs=in_specs,
            out_specs=out_spec,
        ),
        compiler_params=pltpu.CompilerParams(
            dimension_semantics=("parallel",),  # shard batch axis across TCs
            vmem_limit_bytes=budget,
        ),
        cost_estimate=pl.CostEstimate(flops=flops,
                                      transcendentals=transcendentals,
                                      bytes_accessed=bytes_accessed),
    )(x,
      prep["w1"], prep["b1"], prep["w2"], prep["b2"],
      prep["w3"], prep["b3"], prep["w4"], prep["b4"])
    return out[:B]


# --------------------------------------------------------------------------- #
# Reference (mimics the kernel's rounding points, exact sigmoid)
# --------------------------------------------------------------------------- #
def _reference_forward(x, prep, *, bf16_acts):
    act = jnp.bfloat16 if bf16_acts else jnp.float32

    def hidden(h, w, b):
        hb = h.astype(jnp.bfloat16).astype(jnp.float32)
        z = jnp.dot(hb, w.astype(jnp.float32),
                    preferred_element_type=jnp.float32) + b
        return jax.nn.sigmoid(z.astype(act).astype(jnp.float32))

    h = hidden(x, prep["w1"], prep["b1"])
    h = hidden(h, prep["w2"], prep["b2"])
    h = hidden(h, prep["w3"], prep["b3"])
    hb = h.astype(jnp.bfloat16).astype(jnp.float32)
    z4 = jnp.dot(hb, prep["w4"].astype(jnp.float32),
                 preferred_element_type=jnp.float32) + prep["b4"]
    return jax.nn.sigmoid(z4)


if __name__ == "__main__":
    # Module-consistent shapes: len_data divisible by 16 (and by 1024 for lane
    # alignment).  B=384 exercises the adaptive batch tiling (>=2 grid steps).
    B = 384
    LEN_DATA = 1024          # -> l_8 = 128, l_16 = 64 (lane-padded to 128)

    key = jax.random.PRNGKey(0)
    k_x, k_p = jax.random.split(key)

    # Input mimics the min-max-normalized 1-D signal: values in [0, 1].
    x = jax.random.uniform(k_x, (B, LEN_DATA), dtype=jnp.float32)
    params = init_params(k_p, LEN_DATA)
    prep = prepare_params(params)

    out = jax.block_until_ready(autoencoder_forward(x, prep))

    gen, _, _ = _tpu_topology()
    bf16_acts = gen >= 6
    ref = jax.block_until_ready(_reference_forward(x, prep, bf16_acts=bf16_acts))

    assert out.shape == (B, LEN_DATA) and out.dtype == x.dtype
    # Kernel differs from the reference only by the bf16 intermediate-activation
    # tanh (v6e/v7x) and MXU accumulation order.
    atol = 1e-2 if bf16_acts else 5e-3
    np.testing.assert_allclose(np.asarray(out), np.asarray(ref),
                               rtol=0.0, atol=atol)

    # Optional bf16-output variant (~25% less HBM traffic on this mem-bound kernel).
    out_bf16 = jax.block_until_ready(
        autoencoder_forward(x, prep, out_dtype=jnp.bfloat16))
    assert out_bf16.shape == (B, LEN_DATA) and out_bf16.dtype == jnp.bfloat16
    np.testing.assert_allclose(np.asarray(out_bf16, dtype=np.float32),
                               np.asarray(out), rtol=0.0, atol=8e-3)

    print("KERNEL_OK")
</pallas_src>

<mosaic_0001>
module attributes {stable_mosaic.version = 11 : i64} {
  func.func @kernel(%arg0: i32, %arg1: memref<192x1024xf32, #tpu.memory_space<vmem>>, %arg2: memref<1024x128xbf16, #tpu.memory_space<vmem>>, %arg3: memref<1x128xf32, #tpu.memory_space<vmem>>, %arg4: memref<128x128xbf16, #tpu.memory_space<vmem>>, %arg5: memref<1x128xf32, #tpu.memory_space<vmem>>, %arg6: memref<128x128xbf16, #tpu.memory_space<vmem>>, %arg7: memref<1x128xf32, #tpu.memory_space<vmem>>, %arg8: memref<128x1024xbf16, #tpu.memory_space<vmem>>, %arg9: memref<1x1024xf32, #tpu.memory_space<vmem>>, %arg10: memref<192x1024xf32, #tpu.memory_space<vmem>>) attributes {dimension_semantics = [#tpu.dimension_semantics<parallel>], iteration_bounds = array<i64: 2>, scalar_prefetch = 0 : i64, scratch_operands = 0 : i64, tpu.core_type = #tpu.core_type<tc>, window_params = [{transform_indices = @transform_0, window_bounds = array<i64: 192, 1024>}, {pipeline_mode = #tpu.pipeline_mode<synchronous>, transform_indices = @transform_1, window_bounds = array<i64: 1024, 128>}, {pipeline_mode = #tpu.pipeline_mode<synchronous>, transform_indices = @transform_2, window_bounds = array<i64: 1, 128>}, {pipeline_mode = #tpu.pipeline_mode<synchronous>, transform_indices = @transform_3, window_bounds = array<i64: 128, 128>}, {pipeline_mode = #tpu.pipeline_mode<synchronous>, transform_indices = @transform_4, window_bounds = array<i64: 1, 128>}, {pipeline_mode = #tpu.pipeline_mode<synchronous>, transform_indices = @transform_5, window_bounds = array<i64: 128, 128>}, {pipeline_mode = #tpu.pipeline_mode<synchronous>, transform_indices = @transform_6, window_bounds = array<i64: 1, 128>}, {pipeline_mode = #tpu.pipeline_mode<synchronous>, transform_indices = @transform_7, window_bounds = array<i64: 128, 1024>}, {pipeline_mode = #tpu.pipeline_mode<synchronous>, transform_indices = @transform_8, window_bounds = array<i64: 1, 1024>}, {transform_indices = @transform_9, window_bounds = array<i64: 192, 1024>}]} {
    %c0 = arith.constant 0 : index
    %c0_0 = arith.constant 0 : index
    %0 = vector.load %arg1[%c0, %c0_0] : memref<192x1024xf32, #tpu.memory_space<vmem>>, vector<192x1024xf32>
    %1 = arith.truncf %0 : vector<192x1024xf32> to vector<192x1024xbf16>
    %c0_1 = arith.constant 0 : index
    %c0_2 = arith.constant 0 : index
    %2 = vector.load %arg2[%c0_1, %c0_2] : memref<1024x128xbf16, #tpu.memory_space<vmem>>, vector<1024x128xbf16>
    %cst = arith.constant dense<0.000000e+00> : vector<192x128xf32>
    %3 = tpu.matmul %1, %2, %cst {dimension_numbers = #tpu.dot_dimension_numbers<[1], [0], [0], [1], [0, 0, 1, 1], [], []>} : vector<192x1024xbf16>, vector<1024x128xbf16>, vector<192x128xf32> -> vector<192x128xf32>
    %c0_3 = arith.constant 0 : index
    %c0_4 = arith.constant 0 : index
    %4 = vector.load %arg3[%c0_3, %c0_4] : memref<1x128xf32, #tpu.memory_space<vmem>>, vector<1x128xf32>
    %5 = vector.broadcast %4 : vector<1x128xf32> to vector<192x128xf32>
    %6 = arith.addf %3, %5 : vector<192x128xf32>
    %7 = arith.truncf %6 : vector<192x128xf32> to vector<192x128xbf16>
    %cst_5 = arith.constant 5.000000e-01 : bf16
    %8 = vector.broadcast %cst_5 : bf16 to vector<192x128xbf16>
    %9 = arith.mulf %8, %7 : vector<192x128xbf16>
    %10 = math.tanh %9 : vector<192x128xbf16>
    %cst_6 = arith.constant 1.000000e+00 : bf16
    %11 = vector.broadcast %cst_6 : bf16 to vector<192x128xbf16>
    %12 = arith.addf %10, %11 : vector<192x128xbf16>
    %cst_7 = arith.constant 5.000000e-01 : bf16
    %13 = vector.broadcast %cst_7 : bf16 to vector<192x128xbf16>
    %14 = arith.mulf %13, %12 : vector<192x128xbf16>
    %c0_8 = arith.constant 0 : index
    %c0_9 = arith.constant 0 : index
    %15 = vector.load %arg4[%c0_8, %c0_9] : memref<128x128xbf16, #tpu.memory_space<vmem>>, vector<128x128xbf16>
    %cst_10 = arith.constant dense<0.000000e+00> : vector<192x128xf32>
    %16 = tpu.matmul %14, %15, %cst_10 {dimension_numbers = #tpu.dot_dimension_numbers<[1], [0], [0], [1], [0, 0, 1, 1], [], []>} : vector<192x128xbf16>, vector<128x128xbf16>, vector<192x128xf32> -> vector<192x128xf32>
    %c0_11 = arith.constant 0 : index
    %c0_12 = arith.constant 0 : index
    %17 = vector.load %arg5[%c0_11, %c0_12] : memref<1x128xf32, #tpu.memory_space<vmem>>, vector<1x128xf32>
    %18 = vector.broadcast %17 : vector<1x128xf32> to vector<192x128xf32>
    %19 = arith.addf %16, %18 : vector<192x128xf32>
    %20 = arith.truncf %19 : vector<192x128xf32> to vector<192x128xbf16>
    %cst_13 = arith.constant 5.000000e-01 : bf16
    %21 = vector.broadcast %cst_13 : bf16 to vector<192x128xbf16>
    %22 = arith.mulf %21, %20 : vector<192x128xbf16>
    %23 = math.tanh %22 : vector<192x128xbf16>
    %cst_14 = arith.constant 1.000000e+00 : bf16
    %24 = vector.broadcast %cst_14 : bf16 to vector<192x128xbf16>
    %25 = arith.addf %23, %24 : vector<192x128xbf16>
    %cst_15 = arith.constant 5.000000e-01 : bf16
    %26 = vector.broadcast %cst_15 : bf16 to vector<192x128xbf16>
    %27 = arith.mulf %26, %25 : vector<192x128xbf16>
    %c0_16 = arith.constant 0 : index
    %c0_17 = arith.constant 0 : index
    %28 = vector.load %arg6[%c0_16, %c0_17] : memref<128x128xbf16, #tpu.memory_space<vmem>>, vector<128x128xbf16>
    %cst_18 = arith.constant dense<0.000000e+00> : vector<192x128xf32>
    %29 = tpu.matmul %27, %28, %cst_18 {dimension_numbers = #tpu.dot_dimension_numbers<[1], [0], [0], [1], [0, 0, 1, 1], [], []>} : vector<192x128xbf16>, vector<128x128xbf16>, vector<192x128xf32> -> vector<192x128xf32>
    %c0_19 = arith.constant 0 : index
    %c0_20 = arith.constant 0 : index
    %30 = vector.load %arg7[%c0_19, %c0_20] : memref<1x128xf32, #tpu.memory_space<vmem>>, vector<1x128xf32>
    %31 = vector.broadcast %30 : vector<1x128xf32> to vector<192x128xf32>
    %32 = arith.addf %29, %31 : vector<192x128xf32>
    %33 = arith.truncf %32 : vector<192x128xf32> to vector<192x128xbf16>
    %cst_21 = arith.constant 5.000000e-01 : bf16
    %34 = vector.broadcast %cst_21 : bf16 to vector<192x128xbf16>
    %35 = arith.mulf %34, %33 : vector<192x128xbf16>
    %36 = math.tanh %35 : vector<192x128xbf16>
    %cst_22 = arith.constant 1.000000e+00 : bf16
    %37 = vector.broadcast %cst_22 : bf16 to vector<192x128xbf16>
    %38 = arith.addf %36, %37 : vector<192x128xbf16>
    %cst_23 = arith.constant 5.000000e-01 : bf16
    %39 = vector.broadcast %cst_23 : bf16 to vector<192x128xbf16>
    %40 = arith.mulf %39, %38 : vector<192x128xbf16>
    %c0_24 = arith.constant 0 : index
    %c0_25 = arith.constant 0 : index
    %41 = vector.load %arg8[%c0_24, %c0_25] : memref<128x1024xbf16, #tpu.memory_space<vmem>>, vector<128x1024xbf16>
    %cst_26 = arith.constant dense<0.000000e+00> : vector<192x1024xf32>
    %42 = tpu.matmul %40, %41, %cst_26 {dimension_numbers = #tpu.dot_dimension_numbers<[1], [0], [0], [1], [0, 0, 1, 1], [], []>} : vector<192x128xbf16>, vector<128x1024xbf16>, vector<192x1024xf32> -> vector<192x1024xf32>
    %c0_27 = arith.constant 0 : index
    %c0_28 = arith.constant 0 : index
    %43 = vector.load %arg9[%c0_27, %c0_28] : memref<1x1024xf32, #tpu.memory_space<vmem>>, vector<1x1024xf32>
    %44 = vector.broadcast %43 : vector<1x1024xf32> to vector<192x1024xf32>
    %45 = arith.addf %42, %44 : vector<192x1024xf32>
    %cst_29 = arith.constant 5.000000e-01 : f32
    %46 = vector.broadcast %cst_29 : f32 to vector<192x1024xf32>
    %47 = arith.mulf %46, %45 : vector<192x1024xf32>
    %48 = math.tanh %47 : vector<192x1024xf32>
    %cst_30 = arith.constant 1.000000e+00 : f32
    %49 = vector.broadcast %cst_30 : f32 to vector<192x1024xf32>
    %50 = arith.addf %48, %49 : vector<192x1024xf32>
    %cst_31 = arith.constant 5.000000e-01 : f32
    %51 = vector.broadcast %cst_31 : f32 to vector<192x1024xf32>
    %52 = arith.mulf %51, %50 : vector<192x1024xf32>
    %c0_32 = arith.constant 0 : index
    %c0_33 = arith.constant 0 : index
    %53 = vector.load %arg10[%c0_32, %c0_33] : memref<192x1024xf32, #tpu.memory_space<vmem>>, vector<192x1024xf32>
    tpu.vector_store %arg10[%c0_32, %c0_33], %52 {strides = array<i32>} : memref<192x1024xf32, #tpu.memory_space<vmem>>, vector<192x1024xf32>,
    return
  }
  func.func @transform_0(%arg0: i32) -> (i32, i32) {
    %c0_i32 = arith.constant 0 : i32
    %c0_i32_0 = arith.constant 0 : i32
    return %arg0, %c0_i32 : i32, i32
  }
  func.func @transform_1(%arg0: i32) -> (i32, i32) {
    %c0_i32 = arith.constant 0 : i32
    %c0_i32_0 = arith.constant 0 : i32
    %c0_i32_1 = arith.constant 0 : i32
    return %c0_i32, %c0_i32_0 : i32, i32
  }
  func.func @transform_2(%arg0: i32) -> (i32, i32) {
    %c0_i32 = arith.constant 0 : i32
    %c0_i32_0 = arith.constant 0 : i32
    %c0_i32_1 = arith.constant 0 : i32
    return %c0_i32, %c0_i32_0 : i32, i32
  }
  func.func @transform_3(%arg0: i32) -> (i32, i32) {
    %c0_i32 = arith.constant 0 : i32
    %c0_i32_0 = arith.constant 0 : i32
    %c0_i32_1 = arith.constant 0 : i32
    return %c0_i32, %c0_i32_0 : i32, i32
  }
  func.func @transform_4(%arg0: i32) -> (i32, i32) {
    %c0_i32 = arith.constant 0 : i32
    %c0_i32_0 = arith.constant 0 : i32
    %c0_i32_1 = arith.constant 0 : i32
    return %c0_i32, %c0_i32_0 : i32, i32
  }
  func.func @transform_5(%arg0: i32) -> (i32, i32) {
    %c0_i32 = arith.constant 0 : i32
    %c0_i32_0 = arith.constant 0 : i32
    %c0_i32_1 = arith.constant 0 : i32
    return %c0_i32, %c0_i32_0 : i32, i32
  }
  func.func @transform_6(%arg0: i32) -> (i32, i32) {
    %c0_i32 = arith.constant 0 : i32
    %c0_i32_0 = arith.constant 0 : i32
    %c0_i32_1 = arith.constant 0 : i32
    return %c0_i32, %c0_i32_0 : i32, i32
  }
  func.func @transform_7(%arg0: i32) -> (i32, i32) {
    %c0_i32 = arith.constant 0 : i32
    %c0_i32_0 = arith.constant 0 : i32
    %c0_i32_1 = arith.constant 0 : i32
    return %c0_i32, %c0_i32_0 : i32, i32
  }
  func.func @transform_8(%arg0: i32) -> (i32, i32) {
    %c0_i32 = arith.constant 0 : i32
    %c0_i32_0 = arith.constant 0 : i32
    %c0_i32_1 = arith.constant 0 : i32
    return %c0_i32, %c0_i32_0 : i32, i32
  }
  func.func @transform_9(%arg0: i32) -> (i32, i32) {
    %c0_i32 = arith.constant 0 : i32
    %c0_i32_0 = arith.constant 0 : i32
    return %arg0, %c0_i32 : i32, i32
  }
}

</mosaic_0001>

<llo_original>
// kernel: tpu_custom_call.1
$region0: #{tpu_custom_call.1}
  #allocation0 [shape = 'u32[]', space=smem, size = 0x4, offset = 0x4, fixed_abs, tag = 'smem constant byte address 0x4 - core index']
  #allocation1 [shape = 'u32[144,128]{1,0:T(1,128)}', space=vmem, size = 0x12000, scoped, tag = 'internal scratch']
  %s0 = inlined_call_operand.hbm [shape: f32[384,1024], index: 0, kind: input, shape index: {}]
  %s1 = inlined_call_operand.hbm [shape: bf16[1024,128], index: 1, kind: input, shape index: {}]
  %s2 = inlined_call_operand.hbm [shape: f32[1,128], index: 2, kind: input, shape index: {}]
  %s3 = inlined_call_operand.hbm [shape: bf16[128,128], index: 3, kind: input, shape index: {}]
  %s4 = inlined_call_operand.hbm [shape: f32[1,128], index: 4, kind: input, shape index: {}]
  %s5 = inlined_call_operand.hbm [shape: bf16[128,128], index: 5, kind: input, shape index: {}]
  %s6 = inlined_call_operand.hbm [shape: f32[1,128], index: 6, kind: input, shape index: {}]
  %s7 = inlined_call_operand.hbm [shape: bf16[128,1024], index: 7, kind: input, shape index: {}]
  %s8 = inlined_call_operand.hbm [shape: f32[1,1024], index: 8, kind: input, shape index: {}]
  %s9 = inlined_call_operand.hbm [shape: f32[384,1024], index: 9, kind: output, shape index: {}]
  %s10 = sld [smem:[#allocation0]]
  $region105: #{tpu_custom_call.1} parent=0
    _
  %s12 = ssub.s32 1, %s10
  %s13 = scalar_select 0, %s12, %s10
  $region1: #{tpu_custom_call.1} parent=0
    #allocation2 [shape = 'u8[1572864]{0}', space=vmem, size = 0x180000, scoped, tag = 'input window, operand 0']
    #allocation3 [shape = 's32[2]{0}', space=sflag, size = 0x8, scoped, tag = 'scoped memory for tpu_custom_call.1']
    #allocation4 [shape = 's32[2]{0}', space=sflag, size = 0x8, scoped, tag = 'scoped memory for tpu_custom_call.1']
    #allocation5 [shape = 'u8[262144]{0}', space=vmem, size = 0x40000, scoped, tag = 'input window, operand 1, single buffered']
    #allocation6 [shape = 's32[1]{0}', space=sflag, size = 0x4, scoped, tag = 'scoped memory for tpu_custom_call.1']
    #allocation7 [shape = 'u8[512]{0}', space=vmem, size = 0x400, scoped, tag = 'input window, operand 2, single buffered']
    #allocation8 [shape = 'u8[32768]{0}', space=vmem, size = 0x8000, scoped, tag = 'input window, operand 3, single buffered']
    #allocation9 [shape = 's32[1]{0}', space=sflag, size = 0x4, scoped, tag = 'scoped memory for tpu_custom_call.1']
    #allocation10 [shape = 'u8[512]{0}', space=vmem, size = 0x400, scoped, tag = 'input window, operand 4, single buffered']
    #allocation11 [shape = 'u8[32768]{0}', space=vmem, size = 0x8000, scoped, tag = 'input window, operand 5, single buffered']
    #allocation12 [shape = 's32[1]{0}', space=sflag, size = 0x4, scoped, tag = 'scoped memory for tpu_custom_call.1']
    #allocation13 [shape = 'u8[512]{0}', space=vmem, size = 0x400, scoped, tag = 'input window, operand 6, single buffered']
    #allocation14 [shape = 'u8[262144]{0}', space=vmem, size = 0x40000, scoped, tag = 'input window, operand 7, single buffered']
    #allocation15 [shape = 's32[1]{0}', space=sflag, size = 0x4, scoped, tag = 'scoped memory for tpu_custom_call.1']
    #allocation16 [shape = 'u8[4096]{0}', space=vmem, size = 0x1000, scoped, tag = 'input window, operand 8, single buffered']
    #allocation17 [shape = 'u8[1572864]{0}', space=vmem, size = 0x180000, scoped, tag = 'output window, operand 0']
    %14 = vsyncpa [#allocation3], 0
    %s15 = scalar_lea.sflag [#allocation3], 1
    %16 = vsyncpa %s15, 0
    %17 = vsyncpa [#allocation6], 0
    %18 = vsyncpa [#allocation9], 0
    %19 = vsyncpa [#allocation12], 0
    %20 = vsyncpa [#allocation15], 0
    %21 = vsyncpa [#allocation4], 0
    %s22 = scalar_lea.sflag [#allocation4], 1
    %23 = vsyncpa %s22, 0
    loop: start=0, step=1, limit=4
    $region2: #{tpu_custom_call.1} parent=1 // loop_pre_header
      _
    $region3: #{tpu_custom_call.1} parent=1 // loop_header
      %s25 = sphi 0, %s29
      %p26 = scmp.ge.s32.totalorder %s25, 4
      %s35 = sphi 0, %s37
      %s38 = sphi 0, %s35
      %s39 = sphi 0, %s38
      %s55 = sphi 0, %s39
      %s59 = sphi 0, %s59
      %s61 = sphi 0, %s59
      %s62 = sphi 0, %s61
      %s76 = sphi 0, %s62
      %s80 = sphi 0, %s80
      %s82 = sphi 0, %s80
      %s83 = sphi 0, %s82
      %s97 = sphi 0, %s83
      %s101 = sphi 0, %s101
      %s103 = sphi 0, %s101
      %s104 = sphi 0, %s103
      %s118 = sphi 0, %s104
      %s122 = sphi 0, %s122
      %s124 = sphi 0, %s122
      %s125 = sphi 0, %s124
      %s139 = sphi 0, %s125
      %s143 = sphi 0, %s143
      %s145 = sphi 0, %s143
      %s146 = sphi 0, %s145
      %s160 = sphi 0, %s146
      %s164 = sphi 0, %s164
      %s166 = sphi 0, %s164
      %s167 = sphi 0, %s166
      %s181 = sphi 0, %s167
      %s185 = sphi 0, %s185
      %s187 = sphi 0, %s185
      %s188 = sphi 0, %s187
      %s202 = sphi 0, %s188
      %s206 = sphi 0, %s206
      %s208 = sphi 0, %s206
      %s209 = sphi 0, %s208
      %s223 = sphi 0, %s209
      %s229 = sphi 0, %s231
      %s232 = sphi 0, %s229
      %s233 = sphi 0, %s232
      %s249 = sphi 0, %s233
    $region4: #{tpu_custom_call.1} parent=1 // loop_header_branch
      %28 = sbr.rel (%p26) target = $region8
    $region5: #{tpu_custom_call.1} parent=1 // loop_body
      %s30 = ssub.s32 %s25, 1
      %s31 = ssub.s32 %s25, 2
      %s32 = sadd.s32 %s25, 1
      %s33 = ssub.s32 %s25, %s32
      %p34 = scmp.eq.s32.totalorder %s33, 0
      %s36 = sadd.s32 %s35, 1
      %s37 = scalar_select %p34, %s35, %s36
      %p40 = pneg %p34
      %p41 = scmp.eq.s32.totalorder %s25, 1
      %p42 = por %p40, %p41
      %p43 = scmp.ne.s32.totalorder %s35, %s38
      %p44 = scmp.eq.s32.totalorder %s25, 0
      %p45 = por %p43, %p44
      %p46 = scmp.ne.s32.totalorder %s35, %s38
      %p47 = scmp.eq.s32.totalorder %s30, 1
      %p48 = por %p46, %p47
      %p49 = scmp.ne.s32.totalorder %s38, %s39
      %p50 = scmp.eq.s32.totalorder %s30, 0
      %p51 = por %p49, %p50
      %p52 = scmp.ne.s32.totalorder %s38, %s39
      %p53 = scmp.eq.s32.totalorder %s31, 1
      %p54 = por %p52, %p53
      %p56 = scmp.ne.s32.totalorder %s39, %s55
      %p57 = scmp.eq.s32.totalorder %s31, 0
      %p58 = por %p56, %p57
      %s60 = sadd.s32 %s59, 1
      %p63 = scmp.eq.s32.totalorder %s25, 1
      %p64 = scmp.ne.s32.totalorder %s59, %s61
      %p65 = scmp.eq.s32.totalorder %s25, 0
      %p66 = por %p64, %p65
      %p67 = scmp.ne.s32.totalorder %s59, %s61
      %p68 = scmp.eq.s32.totalorder %s30, 1
      %p69 = por %p67, %p68
      %p70 = scmp.ne.s32.totalorder %s61, %s62
      %p71 = scmp.eq.s32.totalorder %s30, 0
      %p72 = por %p70, %p71
      %p73 = scmp.ne.s32.totalorder %s61, %s62
      %p74 = scmp.eq.s32.totalorder %s31, 1
      %p75 = por %p73, %p74
      %p77 = scmp.ne.s32.totalorder %s62, %s76
      %p78 = scmp.eq.s32.totalorder %s31, 0
      %p79 = por %p77, %p78
      %s81 = sadd.s32 %s80, 1
      %p84 = scmp.eq.s32.totalorder %s25, 1
      %p85 = scmp.ne.s32.totalorder %s80, %s82
      %p86 = scmp.eq.s32.totalorder %s25, 0
      %p87 = por %p85, %p86
      %p88 = scmp.ne.s32.totalorder %s80, %s82
      %p89 = scmp.eq.s32.totalorder %s30, 1
      %p90 = por %p88, %p89
      %p91 = scmp.ne.s32.totalorder %s82, %s83
      %p92 = scmp.eq.s32.totalorder %s30, 0
      %p93 = por %p91, %p92
      %p94 = scmp.ne.s32.totalorder %s82, %s83
      %p95 = scmp.eq.s32.totalorder %s31, 1
      %p96 = por %p94, %p95
      %p98 = scmp.ne.s32.totalorder %s83, %s97
      %p99 = scmp.eq.s32.totalorder %s31, 0
      %p100 = por %p98, %p99
      %s102 = sadd.s32 %s101, 1
      %p105 = scmp.eq.s32.totalorder %s25, 1
      %p106 = scmp.ne.s32.totalorder %s101, %s103
      %p107 = scmp.eq.s32.totalorder %s25, 0
      %p108 = por %p106, %p107
      %p109 = scmp.ne.s32.totalorder %s101, %s103
      %p110 = scmp.eq.s32.totalorder %s30, 1
      %p111 = por %p109, %p110
      %p112 = scmp.ne.s32.totalorder %s103, %s104
      %p113 = scmp.eq.s32.totalorder %s30, 0
      %p114 = por %p112, %p113
      %p115 = scmp.ne.s32.totalorder %s103, %s104
      %p116 = scmp.eq.s32.totalorder %s31, 1
      %p117 = por %p115, %p116
      %p119 = scmp.ne.s32.totalorder %s104, %s118
      %p120 = scmp.eq.s32.totalorder %s31, 0
      %p121 = por %p119, %p120
      %s123 = sadd.s32 %s122, 1
      %p126 = scmp.eq.s32.totalorder %s25, 1
      %p127 = scmp.ne.s32.totalorder %s122, %s124
      %p128 = scmp.eq.s32.totalorder %s25, 0
      %p129 = por %p127, %p128
      %p130 = scmp.ne.s32.totalorder %s122, %s124
      %p131 = scmp.eq.s32.totalorder %s30, 1
      %p132 = por %p130, %p131
      %p133 = scmp.ne.s32.totalorder %s124, %s125
      %p134 = scmp.eq.s32.totalorder %s30, 0
      %p135 = por %p133, %p134
      %p136 = scmp.ne.s32.totalorder %s124, %s125
      %p137 = scmp.eq.s32.totalorder %s31, 1
      %p138 = por %p136, %p137
      %p140 = scmp.ne.s32.totalorder %s125, %s139
      %p141 = scmp.eq.s32.totalorder %s31, 0
      %p142 = por %p140, %p141
      %s144 = sadd.s32 %s143, 1
      %p147 = scmp.eq.s32.totalorder %s25, 1
      %p148 = scmp.ne.s32.totalorder %s143, %s145
      %p149 = scmp.eq.s32.totalorder %s25, 0
      %p150 = por %p148, %p149
      %p151 = scmp.ne.s32.totalorder %s143, %s145
      %p152 = scmp.eq.s32.totalorder %s30, 1
      %p153 = por %p151, %p152
      %p154 = scmp.ne.s32.totalorder %s145, %s146
      %p155 = scmp.eq.s32.totalorder %s30, 0
      %p156 = por %p154, %p155
      %p157 = scmp.ne.s32.totalorder %s145, %s146
      %p158 = scmp.eq.s32.totalorder %s31, 1
      %p159 = por %p157, %p158
      %p161 = scmp.ne.s32.totalorder %s146, %s160
      %p162 = scmp.eq.s32.totalorder %s31, 0
      %p163 = por %p161, %p162
      %s165 = sadd.s32 %s164, 1
      %p168 = scmp.eq.s32.totalorder %s25, 1
      %p169 = scmp.ne.s32.totalorder %s164, %s166
      %p170 = scmp.eq.s32.totalorder %s25, 0
      %p171 = por %p169, %p170
      %p172 = scmp.ne.s32.totalorder %s164, %s166
      %p173 = scmp.eq.s32.totalorder %s30, 1
      %p174 = por %p172, %p173
      %p175 = scmp.ne.s32.totalorder %s166, %s167
      %p176 = scmp.eq.s32.totalorder %s30, 0
      %p177 = por %p175, %p176
      %p178 = scmp.ne.s32.totalorder %s166, %s167
      %p179 = scmp.eq.s32.totalorder %s31, 1
      %p180 = por %p178, %p179
      %p182 = scmp.ne.s32.totalorder %s167, %s181
      %p183 = scmp.eq.s32.totalorder %s31, 0
      %p184 = por %p182, %p183
      %s186 = sadd.s32 %s185, 1
      %p189 = scmp.eq.s32.totalorder %s25, 1
      %p190 = scmp.ne.s32.totalorder %s185, %s187
      %p191 = scmp.eq.s32.totalorder %s25, 0
      %p192 = por %p190, %p191
      %p193 = scmp.ne.s32.totalorder %s185, %s187
      %p194 = scmp.eq.s32.totalorder %s30, 1
      %p195 = por %p193, %p194
      %p196 = scmp.ne.s32.totalorder %s187, %s188
      %p197 = scmp.eq.s32.totalorder %s30, 0
      %p198 = por %p196, %p197
      %p199 = scmp.ne.s32.totalorder %s187, %s188
      %p200 = scmp.eq.s32.totalorder %s31, 1
      %p201 = por %p199, %p200
      %p203 = scmp.ne.s32.totalorder %s188, %s202
      %p204 = scmp.eq.s32.totalorder %s31, 0
      %p205 = por %p203, %p204
      %s207 = sadd.s32 %s206, 1
      %p210 = scmp.eq.s32.totalorder %s25, 1
      %p211 = scmp.ne.s32.totalorder %s206, %s208
      %p212 = scmp.eq.s32.totalorder %s25, 0
      %p213 = por %p211, %p212
      %p214 = scmp.ne.s32.totalorder %s206, %s208
      %p215 = scmp.eq.s32.totalorder %s30, 1
      %p216 = por %p214, %p215
      %p217 = scmp.ne.s32.totalorder %s208, %s209
      %p218 = scmp.eq.s32.totalorder %s30, 0
      %p219 = por %p217, %p218
      %p220 = scmp.ne.s32.totalorder %s208, %s209
      %p221 = scmp.eq.s32.totalorder %s31, 1
      %p222 = por %p220, %p221
      %p224 = scmp.ne.s32.totalorder %s209, %s223
      %p225 = scmp.eq.s32.totalorder %s31, 0
      %p226 = por %p224, %p225
      %s227 = ssub.s32 %s25, %s32
      %p228 = scmp.eq.s32.totalorder %s227, 0
      %s230 = sadd.s32 %s229, 1
      %s231 = scalar_select %p228, %s229, %s230
      %p234 = pneg %p228
      %p235 = scmp.eq.s32.totalorder %s25, 1
      %p236 = por %p234, %p235
      %p237 = scmp.ne.s32.totalorder %s229, %s232
      %p238 = scmp.eq.s32.totalorder %s25, 0
      %p239 = por %p237, %p238
      %p240 = scmp.ne.s32.totalorder %s229, %s232
      %p241 = scmp.eq.s32.totalorder %s30, 1
      %p242 = por %p240, %p241
      %p243 = scmp.ne.s32.totalorder %s232, %s233
      %p244 = scmp.eq.s32.totalorder %s30, 0
      %p245 = por %p243, %p244
      %p246 = scmp.ne.s32.totalorder %s232, %s233
      %p247 = scmp.eq.s32.totalorder %s31, 1
      %p248 = por %p246, %p247
      %p250 = scmp.ne.s32.totalorder %s233, %s249
      %p251 = scmp.eq.s32.totalorder %s31, 0
      %p252 = por %p250, %p251
      %p253 = scmp.le.s32.totalorder 1, %s25
      %p254 = scmp.lt.s32.totalorder %s25, 3
      %p255 = pnand %p253, %p254
      %p256 = pneg %p255
      // Predicated region
      $region9: #{tpu_custom_call.1} parent=5 // pred_check
        _
      $region10: #{tpu_custom_call.1} parent=5 // pred_check_branch
        %258 = sbr.rel (%p255) target = $region12
      $region11: #{tpu_custom_call.1} parent=5 // pred_region
        %s259 = ssub.s32 %s25, 1
        // Predicated region
        $region13: #{tpu_custom_call.1} parent=11 // pred_check
          %p260 = pneg %p72
        $region14: #{tpu_custom_call.1} parent=11 // pred_check_branch
          %262 = sbr.rel (%p260) target = $region16
        $region15: #{tpu_custom_call.1} parent=11 // pred_region
          %s264 = ssub.s32 8192, 8192
          %265 = vsyncadd [#allocation6], %s264
          %s266 = sshll.u32 [#allocation5], 4
          %s267 = int_to_ptr.vmem [resolvable:$true] %s266
          %272 = dma.hbm_to_vmem [thread:$0]  %s1, 8192, %s267, [#allocation6], 64, 64, 4
        $region16: #{tpu_custom_call.1} parent=11 // pred_fallthru
          _
        // Predicated region
        $region17: #{tpu_custom_call.1} parent=11 // pred_check
          %p273 = pneg %p93
        $region18: #{tpu_custom_call.1} parent=11 // pred_check_branch
          %275 = sbr.rel (%p273) target = $region20
        $region19: #{tpu_custom_call.1} parent=11 // pred_region
          %s277 = ssub.s32 16, 16
          %278 = vsyncadd [#allocation6], %s277
          %s280 = sshll.u32 [#allocation7], 4
          %s281 = int_to_ptr.vmem [resolvable:$true] %s280
          %283 = dma.hbm_to_vmem [thread:$0]  %s2, 16, %s281, [#allocation6]
        $region20: #{tpu_custom_call.1} parent=11 // pred_fallthru
          _
        // Predicated region
        $region21: #{tpu_custom_call.1} parent=11 // pred_check
          %p284 = pneg %p114
        $region22: #{tpu_custom_call.1} parent=11 // pred_check_branch
          %286 = sbr.rel (%p284) target = $region24
        $region23: #{tpu_custom_call.1} parent=11 // pred_region
          %s288 = ssub.s32 1024, 1024
          %289 = vsyncadd [#allocation9], %s288
          %s290 = sshll.u32 [#allocation8], 4
          %s291 = int_to_ptr.vmem [resolvable:$true] %s290
          %296 = dma.hbm_to_vmem [thread:$0]  %s3, 1024, %s291, [#allocation9], 64, 64, 4
        $region24: #{tpu_custom_call.1} parent=11 // pred_fallthru
          _
        // Predicated region
        $region25: #{tpu_custom_call.1} parent=11 // pred_check
          %p297 = pneg %p135
        $region26: #{tpu_custom_call.1} parent=11 // pred_check_branch
          %299 = sbr.rel (%p297) target = $region28
        $region27: #{tpu_custom_call.1} parent=11 // pred_region
          %s301 = ssub.s32 16, 16
          %302 = vsyncadd [#allocation9], %s301
          %s304 = sshll.u32 [#allocation10], 4
          %s305 = int_to_ptr.vmem [resolvable:$true] %s304
          %307 = dma.hbm_to_vmem [thread:$0]  %s4, 16, %s305, [#allocation9]
        $region28: #{tpu_custom_call.1} parent=11 // pred_fallthru
          _
        // Predicated region
        $region29: #{tpu_custom_call.1} parent=11 // pred_check
          %p308 = pneg %p156
        $region30: #{tpu_custom_call.1} parent=11 // pred_check_branch
          %310 = sbr.rel (%p308) target = $region32
        $region31: #{tpu_custom_call.1} parent=11 // pred_region
          %s312 = ssub.s32 1024, 1024
          %313 = vsyncadd [#allocation12], %s312
          %s314 = sshll.u32 [#allocation11], 4
          %s315 = int_to_ptr.vmem [resolvable:$true] %s314
          %320 = dma.hbm_to_vmem [thread:$0]  %s5, 1024, %s315, [#allocation12], 64, 64, 4
        $region32: #{tpu_custom_call.1} parent=11 // pred_fallthru
          _
        // Predicated region
        $region33: #{tpu_custom_call.1} parent=11 // pred_check
          %p321 = pneg %p177
        $region34: #{tpu_custom_call.1} parent=11 // pred_check_branch
          %323 = sbr.rel (%p321) target = $region36
        $region35: #{tpu_custom_call.1} parent=11 // pred_region
          %s325 = ssub.s32 16, 16
          %326 = vsyncadd [#allocation12], %s325
          %s328 = sshll.u32 [#allocation13], 4
          %s329 = int_to_ptr.vmem [resolvable:$true] %s328
          %331 = dma.hbm_to_vmem [thread:$0]  %s6, 16, %s329, [#allocation12]
        $region36: #{tpu_custom_call.1} parent=11 // pred_fallthru
          _
        // Predicated region
        $region37: #{tpu_custom_call.1} parent=11 // pred_check
          %p332 = pneg %p198
        $region38: #{tpu_custom_call.1} parent=11 // pred_check_branch
          %334 = sbr.rel (%p332) target = $region40
        $region39: #{tpu_custom_call.1} parent=11 // pred_region
          %s336 = ssub.s32 8192, 8192
          %337 = vsyncadd [#allocation15], %s336
          %s338 = sshll.u32 [#allocation14], 4
          %s339 = int_to_ptr.vmem [resolvable:$true] %s338
          %344 = dma.hbm_to_vmem [thread:$0]  %s7, 8192, %s339, [#allocation15], 512, 512, 32
        $region40: #{tpu_custom_call.1} parent=11 // pred_fallthru
          _
        // Predicated region
        $region41: #{tpu_custom_call.1} parent=11 // pred_check
          %p345 = pneg %p219
        $region42: #{tpu_custom_call.1} parent=11 // pred_check_branch
          %347 = sbr.rel (%p345) target = $region44
        $region43: #{tpu_custom_call.1} parent=11 // pred_region
          %s349 = ssub.s32 128, 128
          %350 = vsyncadd [#allocation15], %s349
          %s352 = sshll.u32 [#allocation16], 4
          %s353 = int_to_ptr.vmem [resolvable:$true] %s352
          %355 = dma.hbm_to_vmem [thread:$0]  %s8, 128, %s353, [#allocation15]
        $region44: #{tpu_custom_call.1} parent=11 // pred_fallthru
          _
      $region12: #{tpu_custom_call.1} parent=5 // pred_fallthru
        _
      %p356 = scmp.lt.s32.totalorder %s25, 2
      // Predicated region
      $region45: #{tpu_custom_call.1} parent=5 // pred_check
        %p357 = pneg %p356
      $region46: #{tpu_custom_call.1} parent=5 // pred_check_branch
        %359 = sbr.rel (%p357) target = $region48
      $region47: #{tpu_custom_call.1} parent=5 // pred_region
        // Predicated region
        $region49: #{tpu_custom_call.1} parent=47 // pred_check
          %p360 = pneg %p45
        $region50: #{tpu_custom_call.1} parent=47 // pred_check_branch
          %362 = sbr.rel (%p360) target = $region52
        $region51: #{tpu_custom_call.1} parent=47 // pred_region
          %s363 = sand.u32 %s35, 1
          %s364 = scalar_lea.sflag [#allocation3], %s363
          %s365 = sand.u32 %s35, 1
          %s366 = smul.addr %s365, 1536
          %s367 = scalar_lea.vmem [#allocation2], %s366
          %s368 = smul.u32 24, %s25
          %s370 = ssub.s32 24576, 24576
          %371 = vsyncadd %s364, %s370
          %s372 = smul.addr %s368, 8
          %s373 = smul.addr %s372, 128
          %s374 = scalar_lea.hbm %s0, %s373
          %s375 = sshll.u32 %s367, 4
          %s376 = int_to_ptr.vmem [resolvable:$true] %s375
          %381 = dma.hbm_to_vmem [thread:$0]  %s374, 24576, %s376, %s364, 1024, 1024, 64
        $region52: #{tpu_custom_call.1} parent=47 // pred_fallthru
          _
      $region48: #{tpu_custom_call.1} parent=5 // pred_fallthru
        _
      %p382 = scmp.le.s32.totalorder 1, %s25
      %p383 = scmp.lt.s32.totalorder %s25, 3
      %p384 = pnand %p382, %p383
      %p385 = pneg %p384
      // Predicated region
      $region53: #{tpu_custom_call.1} parent=5 // pred_check
        _
      $region54: #{tpu_custom_call.1} parent=5 // pred_check_branch
        %387 = sbr.rel (%p384) target = $region56
      $region55: #{tpu_custom_call.1} parent=5 // pred_region
        %s388 = ssub.s32 %s25, 1
        %s389 = sand.u32 %s38, 1
        %s390 = scalar_lea.sflag [#allocation3], %s389
        %s391 = sand.u32 %s38, 1
        %s392 = smul.addr %s391, 1536
        %s393 = scalar_lea.vmem [#allocation2], %s392
        // Predicated region
        $region57: #{tpu_custom_call.1} parent=55 // pred_check
          %p394 = pneg %p51
        $region58: #{tpu_custom_call.1} parent=55 // pred_check_branch
          %396 = sbr.rel (%p394) target = $region60
        $region59: #{tpu_custom_call.1} parent=55 // pred_region
          %397 = dma.done %s390, 24576
        $region60: #{tpu_custom_call.1} parent=55 // pred_fallthru
          _
        // Predicated region
        $region61: #{tpu_custom_call.1} parent=55 // pred_check
          %p398 = pneg %p72
        $region62: #{tpu_custom_call.1} parent=55 // pred_check_branch
          %400 = sbr.rel (%p398) target = $region64
        $region63: #{tpu_custom_call.1} parent=55 // pred_region
          %401 = dma.done [#allocation6], 8192
        $region64: #{tpu_custom_call.1} parent=55 // pred_fallthru
          _
        // Predicated region
        $region65: #{tpu_custom_call.1} parent=55 // pred_check
          %p402 = pneg %p93
        $region66: #{tpu_custom_call.1} parent=55 // pred_check_branch
          %404 = sbr.rel (%p402) target = $region68
        $region67: #{tpu_custom_call.1} parent=55 // pred_region
          %405 = dma.done [#allocation6], 16
        $region68: #{tpu_custom_call.1} parent=55 // pred_fallthru
          _
        // Predicated region
        $region69: #{tpu_custom_call.1} parent=55 // pred_check
          %p406 = pneg %p114
        $region70: #{tpu_custom_call.1} parent=55 // pred_check_branch
          %408 = sbr.rel (%p406) target = $region72
        $region71: #{tpu_custom_call.1} parent=55 // pred_region
          %409 = dma.done [#allocation9], 1024
        $region72: #{tpu_custom_call.1} parent=55 // pred_fallthru
          _
        // Predicated region
        $region73: #{tpu_custom_call.1} parent=55 // pred_check
          %p410 = pneg %p135
        $region74: #{tpu_custom_call.1} parent=55 // pred_check_branch
          %412 = sbr.rel (%p410) target = $region76
        $region75: #{tpu_custom_call.1} parent=55 // pred_region
          %413 = dma.done [#allocation9], 16
        $region76: #{tpu_custom_call.1} parent=55 // pred_fallthru
          _
        // Predicated region
        $region77: #{tpu_custom_call.1} parent=55 // pred_check
          %p414 = pneg %p156
        $region78: #{tpu_custom_call.1} parent=55 // pred_check_branch
          %416 = sbr.rel (%p414) target = $region80
        $region79: #{tpu_custom_call.1} parent=55 // pred_region
          %417 = dma.done [#allocation12], 1024
        $region80: #{tpu_custom_call.1} parent=55 // pred_fallthru
          _
        // Predicated region
        $region81: #{tpu_custom_call.1} parent=55 // pred_check
          %p418 = pneg %p177
        $region82: #{tpu_custom_call.1} parent=55 // pred_check_branch
          %420 = sbr.rel (%p418) target = $region84
        $region83: #{tpu_custom_call.1} parent=55 // pred_region
          %421 = dma.done [#allocation12], 16
        $region84: #{tpu_custom_call.1} parent=55 // pred_fallthru
          _
        // Predicated region
        $region85: #{tpu_custom_call.1} parent=55 // pred_check
          %p422 = pneg %p198
        $region86: #{tpu_custom_call.1} parent=55 // pred_check_branch
          %424 = sbr.rel (%p422) target = $region88
        $region87: #{tpu_custom_call.1} parent=55 // pred_region
          %425 = dma.done [#allocation15], 8192
        $region88: #{tpu_custom_call.1} parent=55 // pred_fallthru
          _
        // Predicated region
        $region89: #{tpu_custom_call.1} parent=55 // pred_check
          %p426 = pneg %p219
        $region90: #{tpu_custom_call.1} parent=55 // pred_check_branch
          %428 = sbr.rel (%p426) target = $region92
        $region91: #{tpu_custom_call.1} parent=55 // pred_region
          %429 = dma.done [#allocation15], 128
        $region92: #{tpu_custom_call.1} parent=55 // pred_fallthru
          _
        %s430 = sand.u32 %s38, 1
        %s431 = scalar_lea.sflag [#allocation3], %s430
        %s432 = sand.u32 %s38, 1
        %s433 = smul.addr %s432, 1536
        %s434 = scalar_lea.vmem [#allocation2], %s433
        %p435 = pneg %p51
        %p436 = pneg %p48
        %p437 = pneg %p72
        %p438 = pneg %p69
        %p439 = pneg %p93
        %p440 = pneg %p90
        %p441 = pneg %p114
        %p442 = pneg %p111
        %p443 = pneg %p135
        %p444 = pneg %p132
        %p445 = pneg %p156
        %p446 = pneg %p153
        %p447 = pneg %p177
        %p448 = pneg %p174
        %p449 = pneg %p198
        %p450 = pneg %p195
        %p451 = pneg %p219
        %p452 = pneg %p216
        %p453 = pneg %p245
        %p454 = pneg %p242
        %s455 = sand.u32 %s232, 1
        %s456 = scalar_lea.sflag [#allocation4], %s455
        %s457 = sand.u32 %s232, 1
        %s458 = smul.addr %s457, 1536
        %s459 = scalar_lea.vmem [#allocation17], %s458
        %s460 = smul.u32 24, %s30
        %s461 = smul.u32 24, %s30
        %v465 = vld [vmem:[%s393] sm:$0xff]
        %v466 = vld [vmem:[%s393 + $0x8] sm:$0xff]
        %v467 = vld [vmem:[%s393 + $0x10] sm:$0xff]
        %v468 = vld [vmem:[%s393 + $0x18] sm:$0xff]
        %v469 = vld [vmem:[%s393 + $0x20] sm:$0xff]
        %v470 = vld [vmem:[%s393 + $0x28] sm:$0xff]
        %v471 = vld [vmem:[%s393 + $0x30] sm:$0xff]
        %v472 = vld [vmem:[%s393 + $0x38] sm:$0xff]
        %v473 = vld [vmem:[%s393 + $0x40] sm:$0xff]
        %v474 = vld [vmem:[%s393 + $0x48] sm:$0xff]
        %v475 = vld [vmem:[%s393 + $0x50] sm:$0xff]
        %v476 = vld [vmem:[%s393 + $0x58] sm:$0xff]
        %v477 = vld [vmem:[%s393 + $0x60] sm:$0xff]
        %v478 = vld [vmem:[%s393 + $0x68] sm:$0xff]
        %v479 = vld [vmem:[%s393 + $0x70] sm:$0xff]
        %v480 = vld [vmem:[%s393 + $0x78] sm:$0xff]
        %v481 = vld [vmem:[%s393 + $0x80] sm:$0xff]
        %v482 = vld [vmem:[%s393 + $0x88] sm:$0xff]
        %v483 = vld [vmem:[%s393 + $0x90] sm:$0xff]
        %v484 = vld [vmem:[%s393 + $0x98] sm:$0xff]
        %v485 = vld [vmem:[%s393 + $0xa0] sm:$0xff]
        %v486 = vld [vmem:[%s393 + $0xa8] sm:$0xff]
        %v487 = vld [vmem:[%s393 + $0xb0] sm:$0xff]
        %v488 = vld [vmem:[%s393 + $0xb8] sm:$0xff]
        %v489 = vld [vmem:[%s393 + $0xc0] sm:$0xff]
        %v490 = vld [vmem:[%s393 + $0xc8] sm:$0xff]
        %v491 = vld [vmem:[%s393 + $0xd0] sm:$0xff]
        %v492 = vld [vmem:[%s393 + $0xd8] sm:$0xff]
        %v493 = vld [vmem:[%s393 + $0xe0] sm:$0xff]
        %v494 = vld [vmem:[%s393 + $0xe8] sm:$0xff]
        %v495 = vld [vmem:[%s393 + $0xf0] sm:$0xff]
        %v496 = vld [vmem:[%s393 + $0xf8] sm:$0xff]
        %v497 = vld [vmem:[%s393 + $0x100] sm:$0xff]
        %v498 = vld [vmem:[%s393 + $0x108] sm:$0xff]
        %v499 = vld [vmem:[%s393 + $0x110] sm:$0xff]
        %v500 = vld [vmem:[%s393 + $0x118] sm:$0xff]
        %v501 = vld [vmem:[%s393 + $0x120] sm:$0xff]
        %v502 = vld [vmem:[%s393 + $0x128] sm:$0xff]
        %v503 = vld [vmem:[%s393 + $0x130] sm:$0xff]
        %v504 = vld [vmem:[%s393 + $0x138] sm:$0xff]
        %v505 = vld [vmem:[%s393 + $0x140] sm:$0xff]
        %v506 = vld [vmem:[%s393 + $0x148] sm:$0xff]
        %v507 = vld [vmem:[%s393 + $0x150] sm:$0xff]
        %v508 = vld [vmem:[%s393 + $0x158] sm:$0xff]
        %v509 = vld [vmem:[%s393 + $0x160] sm:$0xff]
        %v510 = vld [vmem:[%s393 + $0x168] sm:$0xff]
        %v511 = vld [vmem:[%s393 + $0x170] sm:$0xff]
        %v512 = vld [vmem:[%s393 + $0x178] sm:$0xff]
        %v513 = vld [vmem:[%s393 + $0x180] sm:$0xff]
        %v514 = vld [vmem:[%s393 + $0x188] sm:$0xff]
        %v515 = vld [vmem:[%s393 + $0x190] sm:$0xff]
        %v516 = vld [vmem:[%s393 + $0x198] sm:$0xff]
        %v517 = vld [vmem:[%s393 + $0x1a0] sm:$0xff]
        %v518 = vld [vmem:[%s393 + $0x1a8] sm:$0xff]
        %v519 = vld [vmem:[%s393 + $0x1b0] sm:$0xff]
        %v520 = vld [vmem:[%s393 + $0x1b8] sm:$0xff]
        %v521 = vld [vmem:[%s393 + $0x1c0] sm:$0xff]
        %v522 = vld [vmem:[%s393 + $0x1c8] sm:$0xff]
        %v523 = vld [vmem:[%s393 + $0x1d0] sm:$0xff]
        %v524 = vld [vmem:[%s393 + $0x1d8] sm:$0xff]
        %v525 = vld [vmem:[%s393 + $0x1e0] sm:$0xff]
        %v526 = vld [vmem:[%s393 + $0x1e8] sm:$0xff]
        %v527 = vld [vmem:[%s393 + $0x1f0] sm:$0xff]
        %v528 = vld [vmem:[%s393 + $0x1f8] sm:$0xff]
        %v529 = vld [vmem:[%s393 + $0x200] sm:$0xff]
        %v530 = vld [vmem:[%s393 + $0x208] sm:$0xff]
        %v531 = vld [vmem:[%s393 + $0x210] sm:$0xff]
        %v532 = vld [vmem:[%s393 + $0x218] sm:$0xff]
        %v533 = vld [vmem:[%s393 + $0x220] sm:$0xff]
        %v534 = vld [vmem:[%s393 + $0x228] sm:$0xff]
        %v535 = vld [vmem:[%s393 + $0x230] sm:$0xff]
        %v536 = vld [vmem:[%s393 + $0x238] sm:$0xff]
        %v537 = vld [vmem:[%s393 + $0x240] sm:$0xff]
        %v538 = vld [vmem:[%s393 + $0x248] sm:$0xff]
        %v539 = vld [vmem:[%s393 + $0x250] sm:$0xff]
        %v540 = vld [vmem:[%s393 + $0x258] sm:$0xff]
        %v541 = vld [vmem:[%s393 + $0x260] sm:$0xff]
        %v542 = vld [vmem:[%s393 + $0x268] sm:$0xff]
        %v543 = vld [vmem:[%s393 + $0x270] sm:$0xff]
        %v544 = vld [vmem:[%s393 + $0x278] sm:$0xff]
        %v545 = vld [vmem:[%s393 + $0x280] sm:$0xff]
        %v546 = vld [vmem:[%s393 + $0x288] sm:$0xff]
        %v547 = vld [vmem:[%s393 + $0x290] sm:$0xff]
        %v548 = vld [vmem:[%s393 + $0x298] sm:$0xff]
        %v549 = vld [vmem:[%s393 + $0x2a0] sm:$0xff]
        %v550 = vld [vmem:[%s393 + $0x2a8] sm:$0xff]
        %v551 = vld [vmem:[%s393 + $0x2b0] sm:$0xff]
        %v552 = vld [vmem:[%s393 + $0x2b8] sm:$0xff]
        %v553 = vld [vmem:[%s393 + $0x2c0] sm:$0xff]
        %v554 = vld [vmem:[%s393 + $0x2c8] sm:$0xff]
        %v555 = vld [vmem:[%s393 + $0x2d0] sm:$0xff]
        %v556 = vld [vmem:[%s393 + $0x2d8] sm:$0xff]
        %v557 = vld [vmem:[%s393 + $0x2e0] sm:$0xff]
        %v558 = vld [vmem:[%s393 + $0x2e8] sm:$0xff]
        %v559 = vld [vmem:[%s393 + $0x2f0] sm:$0xff]
        %v560 = vld [vmem:[%s393 + $0x2f8] sm:$0xff]
        %v561 = vld [vmem:[%s393 + $0x300] sm:$0xff]
        %v562 = vld [vmem:[%s393 + $0x308] sm:$0xff]
        %v563 = vld [vmem:[%s393 + $0x310] sm:$0xff]
        %v564 = vld [vmem:[%s393 + $0x318] sm:$0xff]
        %v565 = vld [vmem:[%s393 + $0x320] sm:$0xff]
        %v566 = vld [vmem:[%s393 + $0x328] sm:$0xff]
        %v567 = vld [vmem:[%s393 + $0x330] sm:$0xff]
        %v568 = vld [vmem:[%s393 + $0x338] sm:$0xff]
        %v569 = vld [vmem:[%s393 + $0x340] sm:$0xff]
        %v570 = vld [vmem:[%s393 + $0x348] sm:$0xff]
        %v571 = vld [vmem:[%s393 + $0x350] sm:$0xff]
        %v572 = vld [vmem:[%s393 + $0x358] sm:$0xff]
        %v573 = vld [vmem:[%s393 + $0x360] sm:$0xff]
        %v574 = vld [vmem:[%s393 + $0x368] sm:$0xff]
        %v575 = vld [vmem:[%s393 + $0x370] sm:$0xff]
        %v576 = vld [vmem:[%s393 + $0x378] sm:$0xff]
        %v577 = vld [vmem:[%s393 + $0x380] sm:$0xff]
        %v578 = vld [vmem:[%s393 + $0x388] sm:$0xff]
        %v579 = vld [vmem:[%s393 + $0x390] sm:$0xff]
        %v580 = vld [vmem:[%s393 + $0x398] sm:$0xff]
        %v581 = vld [vmem:[%s393 + $0x3a0] sm:$0xff]
        %v582 = vld [vmem:[%s393 + $0x3a8] sm:$0xff]
        %v583 = vld [vmem:[%s393 + $0x3b0] sm:$0xff]
        %v584 = vld [vmem:[%s393 + $0x3b8] sm:$0xff]
        %v585 = vld [vmem:[%s393 + $0x3c0] sm:$0xff]
        %v586 = vld [vmem:[%s393 + $0x3c8] sm:$0xff]
        %v587 = vld [vmem:[%s393 + $0x3d0] sm:$0xff]
        %v588 = vld [vmem:[%s393 + $0x3d8] sm:$0xff]
        %v589 = vld [vmem:[%s393 + $0x3e0] sm:$0xff]
        %v590 = vld [vmem:[%s393 + $0x3e8] sm:$0xff]
        %v591 = vld [vmem:[%s393 + $0x3f0] sm:$0xff]
        %v592 = vld [vmem:[%s393 + $0x3f8] sm:$0xff]
        %v593 = vld [vmem:[%s393 + $0x400] sm:$0xff]
        %v594 = vld [vmem:[%s393 + $0x408] sm:$0xff]
        %v595 = vld [vmem:[%s393 + $0x410] sm:$0xff]
        %v596 = vld [vmem:[%s393 + $0x418] sm:$0xff]
        %v597 = vld [vmem:[%s393 + $0x420] sm:$0xff]
        %v598 = vld [vmem:[%s393 + $0x428] sm:$0xff]
        %v599 = vld [vmem:[%s393 + $0x430] sm:$0xff]
        %v600 = vld [vmem:[%s393 + $0x438] sm:$0xff]
        %v601 = vld [vmem:[%s393 + $0x440] sm:$0xff]
        %v602 = vld [vmem:[%s393 + $0x448] sm:$0xff]
        %v603 = vld [vmem:[%s393 + $0x450] sm:$0xff]
        %v604 = vld [vmem:[%s393 + $0x458] sm:$0xff]
        %v605 = vld [vmem:[%s393 + $0x460] sm:$0xff]
        %v606 = vld [vmem:[%s393 + $0x468] sm:$0xff]
        %v607 = vld [vmem:[%s393 + $0x470] sm:$0xff]
        %v608 = vld [vmem:[%s393 + $0x478] sm:$0xff]
        %v609 = vld [vmem:[%s393 + $0x480] sm:$0xff]
        %v610 = vld [vmem:[%s393 + $0x488] sm:$0xff]
        %v611 = vld [vmem:[%s393 + $0x490] sm:$0xff]
        %v612 = vld [vmem:[%s393 + $0x498] sm:$0xff]
        %v613 = vld [vmem:[%s393 + $0x4a0] sm:$0xff]
        %v614 = vld [vmem:[%s393 + $0x4a8] sm:$0xff]
        %v615 = vld [vmem:[%s393 + $0x4b0] sm:$0xff]
        %v616 = vld [vmem:[%s393 + $0x4b8] sm:$0xff]
        %v617 = vld [vmem:[%s393 + $0x4c0] sm:$0xff]
        %v618 = vld [vmem:[%s393 + $0x4c8] sm:$0xff]
        %v619 = vld [vmem:[%s393 + $0x4d0] sm:$0xff]
        %v620 = vld [vmem:[%s393 + $0x4d8] sm:$0xff]
        %v621 = vld [vmem:[%s393 + $0x4e0] sm:$0xff]
        %v622 = vld [vmem:[%s393 + $0x4e8] sm:$0xff]
        %v623 = vld [vmem:[%s393 + $0x4f0] sm:$0xff]
        %v624 = vld [vmem:[%s393 + $0x4f8] sm:$0xff]
        %v625 = vld [vmem:[%s393 + $0x500] sm:$0xff]
        %v626 = vld [vmem:[%s393 + $0x508] sm:$0xff]
        %v627 = vld [vmem:[%s393 + $0x510] sm:$0xff]
        %v628 = vld [vmem:[%s393 + $0x518] sm:$0xff]
        %v629 = vld [vmem:[%s393 + $0x520] sm:$0xff]
        %v630 = vld [vmem:[%s393 + $0x528] sm:$0xff]
        %v631 = vld [vmem:[%s393 + $0x530] sm:$0xff]
        %v632 = vld [vmem:[%s393 + $0x538] sm:$0xff]
        %v633 = vld [vmem:[%s393 + $0x540] sm:$0xff]
        %v634 = vld [vmem:[%s393 + $0x548] sm:$0xff]
        %v635 = vld [vmem:[%s393 + $0x550] sm:$0xff]
        %v636 = vld [vmem:[%s393 + $0x558] sm:$0xff]
        %v637 = vld [vmem:[%s393 + $0x560] sm:$0xff]
        %v638 = vld [vmem:[%s393 + $0x568] sm:$0xff]
        %v639 = vld [vmem:[%s393 + $0x570] sm:$0xff]
        %v640 = vld [vmem:[%s393 + $0x578] sm:$0xff]
        %v641 = vld [vmem:[%s393 + $0x580] sm:$0xff]
        %v642 = vld [vmem:[%s393 + $0x588] sm:$0xff]
        %v643 = vld [vmem:[%s393 + $0x590] sm:$0xff]
        %v644 = vld [vmem:[%s393 + $0x598] sm:$0xff]
        %v645 = vld [vmem:[%s393 + $0x5a0] sm:$0xff]
        %v646 = vld [vmem:[%s393 + $0x5a8] sm:$0xff]
        %v647 = vld [vmem:[%s393 + $0x5b0] sm:$0xff]
        %v648 = vld [vmem:[%s393 + $0x5b8] sm:$0xff]
        %v649 = vld [vmem:[%s393 + $0x5c0] sm:$0xff]
        %v650 = vld [vmem:[%s393 + $0x5c8] sm:$0xff]
        %v651 = vld [vmem:[%s393 + $0x5d0] sm:$0xff]
        %v652 = vld [vmem:[%s393 + $0x5d8] sm:$0xff]
        %v653 = vld [vmem:[%s393 + $0x5e0] sm:$0xff]
        %v654 = vld [vmem:[%s393 + $0x5e8] sm:$0xff]
        %v655 = vld [vmem:[%s393 + $0x5f0] sm:$0xff]
        %v656 = vld [vmem:[%s393 + $0x5f8] sm:$0xff]
        %v657 = vpack.c.bf16 %v473, %v465
        %v658 = vpack.c.bf16 %v474, %v466
        %v659 = vpack.c.bf16 %v475, %v467
        %v660 = vpack.c.bf16 %v476, %v468
        %v661 = vpack.c.bf16 %v477, %v469
        %v662 = vpack.c.bf16 %v478, %v470
        %v663 = vpack.c.bf16 %v479, %v471
        %v664 = vpack.c.bf16 %v480, %v472
        %v665 = vpack.c.bf16 %v489, %v481
        %v666 = vpack.c.bf16 %v490, %v482
        %v667 = vpack.c.bf16 %v491, %v483
        %v668 = vpack.c.bf16 %v492, %v484
        %v669 = vpack.c.bf16 %v493, %v485
        %v670 = vpack.c.bf16 %v494, %v486
        %v671 = vpack.c.bf16 %v495, %v487
        %v672 = vpack.c.bf16 %v496, %v488
        %v673 = vpack.c.bf16 %v505, %v497
        %v674 = vpack.c.bf16 %v506, %v498
        %v675 = vpack.c.bf16 %v507, %v499
        %v676 = vpack.c.bf16 %v508, %v500
        %v677 = vpack.c.bf16 %v509, %v501
        %v678 = vpack.c.bf16 %v510, %v502
        %v679 = vpack.c.bf16 %v511, %v503
        %v680 = vpack.c.bf16 %v512, %v504
        %v681 = vpack.c.bf16 %v521, %v513
        %v682 = vpack.c.bf16 %v522, %v514
        %v683 = vpack.c.bf16 %v523, %v515
        %v684 = vpack.c.bf16 %v524, %v516
        %v685 = vpack.c.bf16 %v525, %v517
        %v686 = vpack.c.bf16 %v526, %v518
        %v687 = vpack.c.bf16 %v527, %v519
        %v688 = vpack.c.bf16 %v528, %v520
        %v689 = vpack.c.bf16 %v537, %v529
        %v690 = vpack.c.bf16 %v538, %v530
        %v691 = vpack.c.bf16 %v539, %v531
        %v692 = vpack.c.bf16 %v540, %v532
        %v693 = vpack.c.bf16 %v541, %v533
        %v694 = vpack.c.bf16 %v542, %v534
        %v695 = vpack.c.bf16 %v543, %v535
        %v696 = vpack.c.bf16 %v544, %v536
        %v697 = vpack.c.bf16 %v553, %v545
        %v698 = vpack.c.bf16 %v554, %v546
        %v699 = vpack.c.bf16 %v555, %v547
        %v700 = vpack.c.bf16 %v556, %v548
        %v701 = vpack.c.bf16 %v557, %v549
        %v702 = vpack.c.bf16 %v558, %v550
        %v703 = vpack.c.bf16 %v559, %v551
        %v704 = vpack.c.bf16 %v560, %v552
        %v705 = vpack.c.bf16 %v569, %v561
        %v706 = vpack.c.bf16 %v570, %v562
        %v707 = vpack.c.bf16 %v571, %v563
        %v708 = vpack.c.bf16 %v572, %v564
        %v709 = vpack.c.bf16 %v573, %v565
        %v710 = vpack.c.bf16 %v574, %v566
        %v711 = vpack.c.bf16 %v575, %v567
        %v712 = vpack.c.bf16 %v576, %v568
        %v713 = vpack.c.bf16 %v585, %v577
        %v714 = vpack.c.bf16 %v586, %v578
        %v715 = vpack.c.bf16 %v587, %v579
        %v716 = vpack.c.bf16 %v588, %v580
        %v717 = vpack.c.bf16 %v589, %v581
        %v718 = vpack.c.bf16 %v590, %v582
        %v719 = vpack.c.bf16 %v591, %v583
        %v720 = vpack.c.bf16 %v592, %v584
        %v721 = vpack.c.bf16 %v601, %v593
        %v722 = vpack.c.bf16 %v602, %v594
        %v723 = vpack.c.bf16 %v603, %v595
        %v724 = vpack.c.bf16 %v604, %v596
        %v725 = vpack.c.bf16 %v605, %v597
        %v726 = vpack.c.bf16 %v606, %v598
        %v727 = vpack.c.bf16 %v607, %v599
        %v728 = vpack.c.bf16 %v608, %v600
        %v729 = vpack.c.bf16 %v617, %v609
        %v730 = vpack.c.bf16 %v618, %v610
        %v731 = vpack.c.bf16 %v619, %v611
        %v732 = vpack.c.bf16 %v620, %v612
        %v733 = vpack.c.bf16 %v621, %v613
        %v734 = vpack.c.bf16 %v622, %v614
        %v735 = vpack.c.bf16 %v623, %v615
        %v736 = vpack.c.bf16 %v624, %v616
        %v737 = vpack.c.bf16 %v633, %v625
        %v738 = vpack.c.bf16 %v634, %v626
        %v739 = vpack.c.bf16 %v635, %v627
        %v740 = vpack.c.bf16 %v636, %v628
        %v741 = vpack.c.bf16 %v637, %v629
        %v742 = vpack.c.bf16 %v638, %v630
        %v743 = vpack.c.bf16 %v639, %v631
        %v744 = vpack.c.bf16 %v640, %v632
        %v745 = vpack.c.bf16 %v649, %v641
        %v746 = vpack.c.bf16 %v650, %v642
        %v747 = vpack.c.bf16 %v651, %v643
        %v748 = vpack.c.bf16 %v652, %v644
        %v749 = vpack.c.bf16 %v653, %v645
        %v750 = vpack.c.bf16 %v654, %v646
        %v751 = vpack.c.bf16 %v655, %v647
        %v752 = vpack.c.bf16 %v656, %v648
        %v753 = vld [vmem:[#allocation5] sm:$0xf]
        %v754 = vld [vmem:[#allocation5 + $0x4] sm:$0xf]
        %v755 = vld [vmem:[#allocation5 + $0x8] sm:$0xf]
        %v756 = vld [vmem:[#allocation5 + $0xc] sm:$0xf]
        %v757 = vld [vmem:[#allocation5 + $0x10] sm:$0xf]
        %v758 = vld [vmem:[#allocation5 + $0x14] sm:$0xf]
        %v759 = vld [vmem:[#allocation5 + $0x18] sm:$0xf]
        %v760 = vld [vmem:[#allocation5 + $0x1c] sm:$0xf]
        %v761 = vld [vmem:[#allocation5 + $0x20] sm:$0xf]
        %v762 = vld [vmem:[#allocation5 + $0x24] sm:$0xf]
        %v763 = vld [vmem:[#allocation5 + $0x28] sm:$0xf]
        %v764 = vld [vmem:[#allocation5 + $0x2c] sm:$0xf]
        %v765 = vld [vmem:[#allocation5 + $0x30] sm:$0xf]
        %v766 = vld [vmem:[#allocation5 + $0x34] sm:$0xf]
        %v767 = vld [vmem:[#allocation5 + $0x38] sm:$0xf]
        %v768 = vld [vmem:[#allocation5 + $0x3c] sm:$0xf]
        %v769 = vld [vmem:[#allocation5 + $0x40] sm:$0xf]
        %v770 = vld [vmem:[#allocation5 + $0x44] sm:$0xf]
        %v771 = vld [vmem:[#allocation5 + $0x48] sm:$0xf]
        %v772 = vld [vmem:[#allocation5 + $0x4c] sm:$0xf]
        %v773 = vld [vmem:[#allocation5 + $0x50] sm:$0xf]
        %v774 = vld [vmem:[#allocation5 + $0x54] sm:$0xf]
        %v775 = vld [vmem:[#allocation5 + $0x58] sm:$0xf]
        %v776 = vld [vmem:[#allocation5 + $0x5c] sm:$0xf]
        %v777 = vld [vmem:[#allocation5 + $0x60] sm:$0xf]
        %v778 = vld [vmem:[#allocation5 + $0x64] sm:$0xf]
        %v779 = vld [vmem:[#allocation5 + $0x68] sm:$0xf]
        %v780 = vld [vmem:[#allocation5 + $0x6c] sm:$0xf]
        %v781 = vld [vmem:[#allocation5 + $0x70] sm:$0xf]
        %v782 = vld [vmem:[#allocation5 + $0x74] sm:$0xf]
        %v783 = vld [vmem:[#allocation5 + $0x78] sm:$0xf]
        %v784 = vld [vmem:[#allocation5 + $0x7c] sm:$0xf]
        %v785 = vld [vmem:[#allocation5 + $0x80] sm:$0xf]
        %v786 = vld [vmem:[#allocation5 + $0x84] sm:$0xf]
        %v787 = vld [vmem:[#allocation5 + $0x88] sm:$0xf]
        %v788 = vld [vmem:[#allocation5 + $0x8c] sm:$0xf]
        %v789 = vld [vmem:[#allocation5 + $0x90] sm:$0xf]
        %v790 = vld [vmem:[#allocation5 + $0x94] sm:$0xf]
        %v791 = vld [vmem:[#allocation5 + $0x98] sm:$0xf]
        %v792 = vld [vmem:[#allocation5 + $0x9c] sm:$0xf]
        %v793 = vld [vmem:[#allocation5 + $0xa0] sm:$0xf]
        %v794 = vld [vmem:[#allocation5 + $0xa4] sm:$0xf]
        %v795 = vld [vmem:[#allocation5 + $0xa8] sm:$0xf]
        %v796 = vld [vmem:[#allocation5 + $0xac] sm:$0xf]
        %v797 = vld [vmem:[#allocation5 + $0xb0] sm:$0xf]
        %v798 = vld [vmem:[#allocation5 + $0xb4] sm:$0xf]
        %v799 = vld [vmem:[#allocation5 + $0xb8] sm:$0xf]
        %v800 = vld [vmem:[#allocation5 + $0xbc] sm:$0xf]
        %v801 = vld [vmem:[#allocation5 + $0xc0] sm:$0xf]
        %v802 = vld [vmem:[#allocation5 + $0xc4] sm:$0xf]
        %v803 = vld [vmem:[#allocation5 + $0xc8] sm:$0xf]
        %v804 = vld [vmem:[#allocation5 + $0xcc] sm:$0xf]
        %v805 = vld [vmem:[#allocation5 + $0xd0] sm:$0xf]
        %v806 = vld [vmem:[#allocation5 + $0xd4] sm:$0xf]
        %v807 = vld [vmem:[#allocation5 + $0xd8] sm:$0xf]
        %v808 = vld [vmem:[#allocation5 + $0xdc] sm:$0xf]
        %v809 = vld [vmem:[#allocation5 + $0xe0] sm:$0xf]
        %v810 = vld [vmem:[#allocation5 + $0xe4] sm:$0xf]
        %v811 = vld [vmem:[#allocation5 + $0xe8] sm:$0xf]
        %v812 = vld [vmem:[#allocation5 + $0xec] sm:$0xf]
        %v813 = vld [vmem:[#allocation5 + $0xf0] sm:$0xf]
        %v814 = vld [vmem:[#allocation5 + $0xf4] sm:$0xf]
        %v815 = vld [vmem:[#allocation5 + $0xf8] sm:$0xf]
        %v816 = vld [vmem:[#allocation5 + $0xfc] sm:$0xf]
        %v817 = vld [vmem:[#allocation5 + $0x100] sm:$0xf]
        %v818 = vld [vmem:[#allocation5 + $0x104] sm:$0xf]
        %v819 = vld [vmem:[#allocation5 + $0x108] sm:$0xf]
        %v820 = vld [vmem:[#allocation5 + $0x10c] sm:$0xf]
        %v821 = vld [vmem:[#allocation5 + $0x110] sm:$0xf]
        %v822 = vld [vmem:[#allocation5 + $0x114] sm:$0xf]
        %v823 = vld [vmem:[#allocation5 + $0x118] sm:$0xf]
        %v824 = vld [vmem:[#allocation5 + $0x11c] sm:$0xf]
        %v825 = vld [vmem:[#allocation5 + $0x120] sm:$0xf]
        %v826 = vld [vmem:[#allocation5 + $0x124] sm:$0xf]
        %v827 = vld [vmem:[#allocation5 + $0x128] sm:$0xf]
        %v828 = vld [vmem:[#allocation5 + $0x12c] sm:$0xf]
        %v829 = vld [vmem:[#allocation5 + $0x130] sm:$0xf]
        %v830 = vld [vmem:[#allocation5 + $0x134] sm:$0xf]
        %v831 = vld [vmem:[#allocation5 + $0x138] sm:$0xf]
        %v832 = vld [vmem:[#allocation5 + $0x13c] sm:$0xf]
        %v833 = vld [vmem:[#allocation5 + $0x140] sm:$0xf]
        %v834 = vld [vmem:[#allocation5 + $0x144] sm:$0xf]
        %v835 = vld [vmem:[#allocation5 + $0x148] sm:$0xf]
        %v836 = vld [vmem:[#allocation5 + $0x14c] sm:$0xf]
        %v837 = vld [vmem:[#allocation5 + $0x150] sm:$0xf]
        %v838 = vld [vmem:[#allocation5 + $0x154] sm:$0xf]
        %v839 = vld [vmem:[#allocation5 + $0x158] sm:$0xf]
        %v840 = vld [vmem:[#allocation5 + $0x15c] sm:$0xf]
        %v841 = vld [vmem:[#allocation5 + $0x160] sm:$0xf]
        %v842 = vld [vmem:[#allocation5 + $0x164] sm:$0xf]
        %v843 = vld [vmem:[#allocation5 + $0x168] sm:$0xf]
        %v844 = vld [vmem:[#allocation5 + $0x16c] sm:$0xf]
        %v845 = vld [vmem:[#allocation5 + $0x170] sm:$0xf]
        %v846 = vld [vmem:[#allocation5 + $0x174] sm:$0xf]
        %v847 = vld [vmem:[#allocation5 + $0x178] sm:$0xf]
        %v848 = vld [vmem:[#allocation5 + $0x17c] sm:$0xf]
        %v849 = vld [vmem:[#allocation5 + $0x180] sm:$0xf]
        %v850 = vld [vmem:[#allocation5 + $0x184] sm:$0xf]
        %v851 = vld [vmem:[#allocation5 + $0x188] sm:$0xf]
        %v852 = vld [vmem:[#allocation5 + $0x18c] sm:$0xf]
        %v853 = vld [vmem:[#allocation5 + $0x190] sm:$0xf]
        %v854 = vld [vmem:[#allocation5 + $0x194] sm:$0xf]
        %v855 = vld [vmem:[#allocation5 + $0x198] sm:$0xf]
        %v856 = vld [vmem:[#allocation5 + $0x19c] sm:$0xf]
        %v857 = vld [vmem:[#allocation5 + $0x1a0] sm:$0xf]
        %v858 = vld [vmem:[#allocation5 + $0x1a4] sm:$0xf]
        %v859 = vld [vmem:[#allocation5 + $0x1a8] sm:$0xf]
        %v860 = vld [vmem:[#allocation5 + $0x1ac] sm:$0xf]
        %v861 = vld [vmem:[#allocation5 + $0x1b0] sm:$0xf]
        %v862 = vld [vmem:[#allocation5 + $0x1b4] sm:$0xf]
        %v863 = vld [vmem:[#allocation5 + $0x1b8] sm:$0xf]
        %v864 = vld [vmem:[#allocation5 + $0x1bc] sm:$0xf]
        %v865 = vld [vmem:[#allocation5 + $0x1c0] sm:$0xf]
        %v866 = vld [vmem:[#allocation5 + $0x1c4] sm:$0xf]
        %v867 = vld [vmem:[#allocation5 + $0x1c8] sm:$0xf]
        %v868 = vld [vmem:[#allocation5 + $0x1cc] sm:$0xf]
        %v869 = vld [vmem:[#allocation5 + $0x1d0] sm:$0xf]
        %v870 = vld [vmem:[#allocation5 + $0x1d4] sm:$0xf]
        %v871 = vld [vmem:[#allocation5 + $0x1d8] sm:$0xf]
        %v872 = vld [vmem:[#allocation5 + $0x1dc] sm:$0xf]
        %v873 = vld [vmem:[#allocation5 + $0x1e0] sm:$0xf]
        %v874 = vld [vmem:[#allocation5 + $0x1e4] sm:$0xf]
        %v875 = vld [vmem:[#allocation5 + $0x1e8] sm:$0xf]
        %v876 = vld [vmem:[#allocation5 + $0x1ec] sm:$0xf]
        %v877 = vld [vmem:[#allocation5 + $0x1f0] sm:$0xf]
        %v878 = vld [vmem:[#allocation5 + $0x1f4] sm:$0xf]
        %v879 = vld [vmem:[#allocation5 + $0x1f8] sm:$0xf]
        %v880 = vld [vmem:[#allocation5 + $0x1fc] sm:$0xf]
        %v881 = vld [vmem:[#allocation7] sm:$0x1]
        %v883 = vlaneseq
        %v884 = vshrl.u32 %v883, 7
        %v885 = vsub.s32 0, %v884
        %v886 = vrot.slane %v881, %v885
        %v1016 = vunpack.c.l.b16 %v753
        %v1017 = vunpack.c.l.b16 %v754
        %v1018 = vunpack.c.l.b16 %v755
        %v1019 = vunpack.c.l.b16 %v756
        %v1020 = vunpack.c.l.b16 %v757
        %v1021 = vunpack.c.l.b16 %v758
        %v1022 = vunpack.c.l.b16 %v759
        %v1023 = vunpack.c.l.b16 %v760
        %v1024 = vunpack.c.l.b16 %v761
        %v1025 = vunpack.c.l.b16 %v762
        %v1026 = vunpack.c.l.b16 %v763
        %v1027 = vunpack.c.l.b16 %v764
        %v1028 = vunpack.c.l.b16 %v765
        %v1029 = vunpack.c.l.b16 %v766
        %v1030 = vunpack.c.l.b16 %v767
        %v1031 = vunpack.c.l.b16 %v768
        %v1032 = vunpack.c.l.b16 %v769
        %v1033 = vunpack.c.l.b16 %v770
        %v1034 = vunpack.c.l.b16 %v771
        %v1035 = vunpack.c.l.b16 %v772
        %v1036 = vunpack.c.l.b16 %v773
        %v1037 = vunpack.c.l.b16 %v774
        %v1038 = vunpack.c.l.b16 %v775
        %v1039 = vunpack.c.l.b16 %v776
        %v1040 = vunpack.c.l.b16 %v777
        %v1041 = vunpack.c.l.b16 %v778
        %v1042 = vunpack.c.l.b16 %v779
        %v1043 = vunpack.c.l.b16 %v780
        %v1044 = vunpack.c.l.b16 %v781
        %v1045 = vunpack.c.l.b16 %v782
        %v1046 = vunpack.c.l.b16 %v783
        %v1047 = vunpack.c.l.b16 %v784
        %v1048 = vunpack.c.l.b16 %v785
        %v1049 = vunpack.c.l.b16 %v786
        %v1050 = vunpack.c.l.b16 %v787
        %v1051 = vunpack.c.l.b16 %v788
        %v1052 = vunpack.c.l.b16 %v789
        %v1053 = vunpack.c.l.b16 %v790
        %v1054 = vunpack.c.l.b16 %v791
        %v1055 = vunpack.c.l.b16 %v792
        %v1056 = vunpack.c.l.b16 %v793
        %v1057 = vunpack.c.l.b16 %v794
        %v1058 = vunpack.c.l.b16 %v795
        %v1059 = vunpack.c.l.b16 %v796
        %v1060 = vunpack.c.l.b16 %v797
        %v1061 = vunpack.c.l.b16 %v798
        %v1062 = vunpack.c.l.b16 %v799
        %v1063 = vunpack.c.l.b16 %v800
        %v1064 = vunpack.c.l.b16 %v801
        %v1065 = vunpack.c.l.b16 %v802
        %v1066 = vunpack.c.l.b16 %v803
        %v1067 = vunpack.c.l.b16 %v804
        %v1068 = vunpack.c.l.b16 %v805
        %v1069 = vunpack.c.l.b16 %v806
        %v1070 = vunpack.c.l.b16 %v807
        %v1071 = vunpack.c.l.b16 %v808
        %v1072 = vunpack.c.l.b16 %v809
        %v1073 = vunpack.c.l.b16 %v810
        %v1074 = vunpack.c.l.b16 %v811
        %v1075 = vunpack.c.l.b16 %v812
        %v1076 = vunpack.c.l.b16 %v813
        %v1077 = vunpack.c.l.b16 %v814
        %v1078 = vunpack.c.l.b16 %v815
        %v1079 = vunpack.c.l.b16 %v816
        %v1080 = vunpack.c.l.b16 %v817
        %v1081 = vunpack.c.l.b16 %v818
        %v1082 = vunpack.c.l.b16 %v819
        %v1083 = vunpack.c.l.b16 %v820
        %v1084 = vunpack.c.l.b16 %v821
        %v1085 = vunpack.c.l.b16 %v822
        %v1086 = vunpack.c.l.b16 %v823
        %v1087 = vunpack.c.l.b16 %v824
        %v1088 = vunpack.c.l.b16 %v825
        %v1089 = vunpack.c.l.b16 %v826
        %v1090 = vunpack.c.l.b16 %v827
        %v1091 = vunpack.c.l.b16 %v828
        %v1092 = vunpack.c.l.b16 %v829
        %v1093 = vunpack.c.l.b16 %v830
        %v1094 = vunpack.c.l.b16 %v831
        %v1095 = vunpack.c.l.b16 %v832
        %v1096 = vunpack.c.l.b16 %v833
        %v1097 = vunpack.c.l.b16 %v834
        %v1098 = vunpack.c.l.b16 %v835
        %v1099 = vunpack.c.l.b16 %v836
        %v1100 = vunpack.c.l.b16 %v837
        %v1101 = vunpack.c.l.b16 %v838
        %v1102 = vunpack.c.l.b16 %v839
        %v1103 = vunpack.c.l.b16 %v840
        %v1104 = vunpack.c.l.b16 %v841
        %v1105 = vunpack.c.l.b16 %v842
        %v1106 = vunpack.c.l.b16 %v843
        %v1107 = vunpack.c.l.b16 %v844
        %v1108 = vunpack.c.l.b16 %v845
        %v1109 = vunpack.c.l.b16 %v846
        %v1110 = vunpack.c.l.b16 %v847
        %v1111 = vunpack.c.l.b16 %v848
        %v1112 = vunpack.c.l.b16 %v849
        %v1113 = vunpack.c.l.b16 %v850
        %v1114 = vunpack.c.l.b16 %v851
        %v1115 = vunpack.c.l.b16 %v852
        %v1116 = vunpack.c.l.b16 %v853
        %v1117 = vunpack.c.l.b16 %v854
        %v1118 = vunpack.c.l.b16 %v855
        %v1119 = vunpack.c.l.b16 %v856
        %v1120 = vunpack.c.l.b16 %v857
        %v1121 = vunpack.c.l.b16 %v858
        %v1122 = vunpack.c.l.b16 %v859
        %v1123 = vunpack.c.l.b16 %v860
        %v1124 = vunpack.c.l.b16 %v861
        %v1125 = vunpack.c.l.b16 %v862
        %v1126 = vunpack.c.l.b16 %v863
        %v1127 = vunpack.c.l.b16 %v864
        %v1128 = vunpack.c.l.b16 %v865
        %v1129 = vunpack.c.l.b16 %v866
        %v1130 = vunpack.c.l.b16 %v867
        %v1131 = vunpack.c.l.b16 %v868
        %v1132 = vunpack.c.l.b16 %v869
        %v1133 = vunpack.c.l.b16 %v870
        %v1134 = vunpack.c.l.b16 %v871
        %v1135 = vunpack.c.l.b16 %v872
        %v1136 = vunpack.c.l.b16 %v873
        %v1137 = vunpack.c.l.b16 %v874
        %v1138 = vunpack.c.l.b16 %v875
        %v1139 = vunpack.c.l.b16 %v876
        %v1140 = vunpack.c.l.b16 %v877
        %v1141 = vunpack.c.l.b16 %v878
        %v1142 = vunpack.c.l.b16 %v879
        %v1143 = vunpack.c.l.b16 %v880
        %v1144 = vpack.c.b16 %v1017, %v1016
        %v1145 = vpack.c.b16 %v1019, %v1018
        %v1146 = vpack.c.b16 %v1021, %v1020
        %v1147 = vpack.c.b16 %v1023, %v1022
        %v1148 = vpack.c.b16 %v1025, %v1024
        %v1149 = vpack.c.b16 %v1027, %v1026
        %v1150 = vpack.c.b16 %v1029, %v1028
        %v1151 = vpack.c.b16 %v1031, %v1030
        %v1152 = vpack.c.b16 %v1033, %v1032
        %v1153 = vpack.c.b16 %v1035, %v1034
        %v1154 = vpack.c.b16 %v1037, %v1036
        %v1155 = vpack.c.b16 %v1039, %v1038
        %v1156 = vpack.c.b16 %v1041, %v1040
        %v1157 = vpack.c.b16 %v1043, %v1042
        %v1158 = vpack.c.b16 %v1045, %v1044
        %v1159 = vpack.c.b16 %v1047, %v1046
        %v1160 = vpack.c.b16 %v1049, %v1048
        %v1161 = vpack.c.b16 %v1051, %v1050
        %v1162 = vpack.c.b16 %v1053, %v1052
        %v1163 = vpack.c.b16 %v1055, %v1054
        %v1164 = vpack.c.b16 %v1057, %v1056
        %v1165 = vpack.c.b16 %v1059, %v1058
        %v1166 = vpack.c.b16 %v1061, %v1060
        %v1167 = vpack.c.b16 %v1063, %v1062
        %v1168 = vpack.c.b16 %v1065, %v1064
        %v1169 = vpack.c.b16 %v1067, %v1066
        %v1170 = vpack.c.b16 %v1069, %v1068
        %v1171 = vpack.c.b16 %v1071, %v1070
        %v1172 = vpack.c.b16 %v1073, %v1072
        %v1173 = vpack.c.b16 %v1075, %v1074
        %v1174 = vpack.c.b16 %v1077, %v1076
        %v1175 = vpack.c.b16 %v1079, %v1078
        %v1176 = vpack.c.b16 %v1081, %v1080
        %v1177 = vpack.c.b16 %v1083, %v1082
        %v1178 = vpack.c.b16 %v1085, %v1084
        %v1179 = vpack.c.b16 %v1087, %v1086
        %v1180 = vpack.c.b16 %v1089, %v1088
        %v1181 = vpack.c.b16 %v1091, %v1090
        %v1182 = vpack.c.b16 %v1093, %v1092
        %v1183 = vpack.c.b16 %v1095, %v1094
        %v1184 = vpack.c.b16 %v1097, %v1096
        %v1185 = vpack.c.b16 %v1099, %v1098
        %v1186 = vpack.c.b16 %v1101, %v1100
        %v1187 = vpack.c.b16 %v1103, %v1102
        %v1188 = vpack.c.b16 %v1105, %v1104
        %v1189 = vpack.c.b16 %v1107, %v1106
        %v1190 = vpack.c.b16 %v1109, %v1108
        %v1191 = vpack.c.b16 %v1111, %v1110
        %v1192 = vpack.c.b16 %v1113, %v1112
        %v1193 = vpack.c.b16 %v1115, %v1114
        %v1194 = vpack.c.b16 %v1117, %v1116
        %v1195 = vpack.c.b16 %v1119, %v1118
        %v1196 = vpack.c.b16 %v1121, %v1120
        %v1197 = vpack.c.b16 %v1123, %v1122
        %v1198 = vpack.c.b16 %v1125, %v1124
        %v1199 = vpack.c.b16 %v1127, %v1126
        %v1200 = vpack.c.b16 %v1129, %v1128
        %v1201 = vpack.c.b16 %v1131, %v1130
        %v1202 = vpack.c.b16 %v1133, %v1132
        %v1203 = vpack.c.b16 %v1135, %v1134
        %v1204 = vpack.c.b16 %v1137, %v1136
        %v1205 = vpack.c.b16 %v1139, %v1138
        %v1206 = vpack.c.b16 %v1141, %v1140
        %v1207 = vpack.c.b16 %v1143, %v1142
        %1272 = vmatprep.subr.bf16.mxu0 0
        %1273 = vmatpush1.bf16.msra.mxu0 %v1144
        %1274 = vmatprep.subr.bf16.mxu0 0
        %1275 = vmatpush1.bf16.msra.mxu0 %v1145
        %1276 = vmatprep.subr.bf16.mxu0 0
        %1277 = vmatpush1.bf16.msra.mxu0 %v1146
        %1278 = vmatprep.subr.bf16.mxu0 0
        %1279 = vmatpush1.bf16.msra.mxu0 %v1147
        %1280 = vmatprep.subr.bf16.mxu0 0
        %1281 = vmatpush1.bf16.msra.mxu0 %v1148
        %1282 = vmatprep.subr.bf16.mxu0 0
        %1283 = vmatpush1.bf16.msra.mxu0 %v1149
        %1284 = vmatprep.subr.bf16.mxu0 0
        %1285 = vmatpush1.bf16.msra.mxu0 %v1150
        %1286 = vmatprep.subr.bf16.mxu0 0
        %1287 = vmatpush1.bf16.msra.mxu0 %v1151
        %1288 = vmatprep.subr.bf16.mxu0 0
        %1289 = vmatpush1.bf16.msra.mxu0 %v1152
        %1290 = vmatprep.subr.bf16.mxu0 0
        %1291 = vmatpush1.bf16.msra.mxu0 %v1153
        %1292 = vmatprep.subr.bf16.mxu0 0
        %1293 = vmatpush1.bf16.msra.mxu0 %v1154
        %1294 = vmatprep.subr.bf16.mxu0 0
        %1295 = vmatpush1.bf16.msra.mxu0 %v1155
        %1296 = vmatprep.subr.bf16.mxu0 0
        %1297 = vmatpush1.bf16.msra.mxu0 %v1156
        %1298 = vmatprep.subr.bf16.mxu0 0
        %1299 = vmatpush1.bf16.msra.mxu0 %v1157
        %1300 = vmatprep.subr.bf16.mxu0 0
        %1301 = vmatpush1.bf16.msra.mxu0 %v1158
        %1302 = vmatprep.subr.bf16.mxu0 0
        %1303 = vmatpush1.bf16.msra.mxu0 %v1159
        %1304 = vmatprep.mubr.bf16.mxu0 %v658
        %1305 = vmatmul.mubr.bf16.gmra.mrb[0].mxu0 %v657
        %v1306 = vpop.f32.mrb[0].mxu0
        %v1307 = vadd.f32 %v886, %v1306
        %v1308 = vpop.f32.mrb[0].mxu0
        %v1309 = vpop.f32.mrb[0].mxu0
        %v1310 = vadd.f32 %v886, %v1309
        %v1311 = vpop.f32.mrb[0].mxu0
        %1312 = vmatprep.mubr.bf16.mxu0 %v666
        %1313 = vmatmul.mubr.bf16.gmra.mrb[0].mxu0 %v665
        %v1314 = vpop.f32.mrb[0].mxu0
        %v1315 = vadd.f32 %v886, %v1314
        %v1316 = vpop.f32.mrb[0].mxu0
        %v1317 = vpop.f32.mrb[0].mxu0
        %v1318 = vadd.f32 %v886, %v1317
        %v1319 = vpop.f32.mrb[0].mxu0
        %1320 = vmatprep.mubr.bf16.mxu0 %v674
        %1321 = vmatmul.mubr.bf16.gmra.mrb[0].mxu0 %v673
        %v1322 = vpop.f32.mrb[0].mxu0
        %v1323 = vadd.f32 %v886, %v1322
        %v1324 = vpop.f32.mrb[0].mxu0
        %v1325 = vpop.f32.mrb[0].mxu0
        %v1326 = vadd.f32 %v886, %v1325
        %v1327 = vpop.f32.mrb[0].mxu0
        %1328 = vmatprep.mubr.bf16.mxu0 %v682
        %1329 = vmatmul.mubr.bf16.gmra.mrb[0].mxu0 %v681
        %v1330 = vpop.f32.mrb[0].mxu0
        %v1331 = vadd.f32 %v886, %v1330
        %v1332 = vpop.f32.mrb[0].mxu0
        %v1333 = vpop.f32.mrb[0].mxu0
        %v1334 = vadd.f32 %v886, %v1333
        %v1335 = vpop.f32.mrb[0].mxu0
        %1336 = vmatprep.mubr.bf16.mxu0 %v690
        %1337 = vmatmul.mubr.bf16.gmra.mrb[0].mxu0 %v689
        %v1338 = vpop.f32.mrb[0].mxu0
        %v1339 = vadd.f32 %v886, %v1338
        %v1340 = vpop.f32.mrb[0].mxu0
        %v1341 = vpop.f32.mrb[0].mxu0
        %v1342 = vadd.f32 %v886, %v1341
        %v1343 = vpop.f32.mrb[0].mxu0
        %1344 = vmatprep.mubr.bf16.mxu0 %v698
        %1345 = vmatmul.mubr.bf16.gmra.mrb[0].mxu0 %v697
        %v1346 = vpop.f32.mrb[0].mxu0
        %v1347 = vadd.f32 %v886, %v1346
        %v1348 = vpop.f32.mrb[0].mxu0
        %v1349 = vpop.f32.mrb[0].mxu0
        %v1350 = vadd.f32 %v886, %v1349
        %v1351 = vpop.f32.mrb[0].mxu0
        %1352 = vmatprep.mubr.bf16.mxu0 %v706
        %1353 = vmatmul.mubr.bf16.gmra.mrb[0].mxu0 %v705
        %v1354 = vpop.f32.mrb[0].mxu0
        %v1355 = vadd.f32 %v886, %v1354
        %v1356 = vpop.f32.mrb[0].mxu0
        %v1357 = vpop.f32.mrb[0].mxu0
        %v1358 = vadd.f32 %v886, %v1357
        %v1359 = vpop.f32.mrb[0].mxu0
        %1360 = vmatprep.mubr.bf16.mxu0 %v714
        %1361 = vmatmul.mubr.bf16.gmra.mrb[0].mxu0 %v713
        %v1362 = vpop.f32.mrb[0].mxu0
        %v1363 = vadd.f32 %v886, %v1362
        %v1364 = vpop.f32.mrb[0].mxu0
        %v1365 = vpop.f32.mrb[0].mxu0
        %v1366 = vadd.f32 %v886, %v1365
        %v1367 = vpop.f32.mrb[0].mxu0
        %1368 = vmatprep.mubr.bf16.mxu0 %v722
        %1369 = vmatmul.mubr.bf16.gmra.mrb[0].mxu0 %v721
        %v1370 = vpop.f32.mrb[0].mxu0
        %v1371 = vadd.f32 %v886, %v1370
        %v1372 = vpop.f32.mrb[0].mxu0
        %v1373 = vpop.f32.mrb[0].mxu0
        %v1374 = vadd.f32 %v886, %v1373
        %v1375 = vpop.f32.mrb[0].mxu0
        %1376 = vmatprep.mubr.bf16.mxu0 %v730
        %1377 = vmatmul.mubr.bf16.gmra.mrb[0].mxu0 %v729
        %v1378 = vpop.f32.mrb[0].mxu0
        %v1379 = vadd.f32 %v886, %v1378
        %v1380 = vpop.f32.mrb[0].mxu0
        %v1381 = vpop.f32.mrb[0].mxu0
        %v1382 = vadd.f32 %v886, %v1381
        %v1383 = vpop.f32.mrb[0].mxu0
        %1384 = vmatprep.mubr.bf16.mxu0 %v738
        %1385 = vmatmul.mubr.bf16.gmra.mrb[0].mxu0 %v737
        %v1386 = vpop.f32.mrb[0].mxu0
        %v1387 = vadd.f32 %v886, %v1386
        %v1388 = vpop.f32.mrb[0].mxu0
        %v1389 = vpop.f32.mrb[0].mxu0
        %v1390 = vadd.f32 %v886, %v1389
        %v1391 = vpop.f32.mrb[0].mxu0
        %1392 = vmatprep.mubr.bf16.mxu0 %v746
        %1393 = vmatmul.mubr.bf16.gmra.mrb[0].mxu0 %v745
        %v1394 = vpop.f32.mrb[0].mxu0
        %v1395 = vadd.f32 %v886, %v1394
        %v1396 = vpop.f32.mrb[0].mxu0
        %v1397 = vpop.f32.mrb[0].mxu0
        %v1398 = vadd.f32 %v886, %v1397
        %v1399 = vpop.f32.mrb[0].mxu0
        %1400 = vdwg.mxu0
        %1401 = vmatprep.subr.bf16.mxu0 0
        %1402 = vmatpush1.bf16.msra.mxu0 %v1160
        %1403 = vmatprep.subr.bf16.mxu0 0
        %1404 = vmatpush1.bf16.msra.mxu0 %v1161
        %1405 = vmatprep.subr.bf16.mxu0 0
        %1406 = vmatpush1.bf16.msra.mxu0 %v1162
        %1407 = vmatprep.subr.bf16.mxu0 0
        %1408 = vmatpush1.bf16.msra.mxu0 %v1163
        %1409 = vmatprep.subr.bf16.mxu0 0
        %1410 = vmatpush1.bf16.msra.mxu0 %v1164
        %1411 = vmatprep.subr.bf16.mxu0 0
        %1412 = vmatpush1.bf16.msra.mxu0 %v1165
        %1413 = vmatprep.subr.bf16.mxu0 0
        %1414 = vmatpush1.bf16.msra.mxu0 %v1166
        %1415 = vmatprep.subr.bf16.mxu0 0
        %1416 = vmatpush1.bf16.msra.mxu0 %v1167
        %1417 = vmatprep.subr.bf16.mxu0 0
        %1418 = vmatpush1.bf16.msra.mxu0 %v1168
        %1419 = vmatprep.subr.bf16.mxu0 0
        %1420 = vmatpush1.bf16.msra.mxu0 %v1169
        %1421 = vmatprep.subr.bf16.mxu0 0
        %1422 = vmatpush1.bf16.msra.mxu0 %v1170
        %1423 = vmatprep.subr.bf16.mxu0 0
        %1424 = vmatpush1.bf16.msra.mxu0 %v1171
        %1425 = vmatprep.subr.bf16.mxu0 0
        %1426 = vmatpush1.bf16.msra.mxu0 %v1172
        %1427 = vmatprep.subr.bf16.mxu0 0
        %1428 = vmatpush1.bf16.msra.mxu0 %v1173
        %1429 = vmatprep.subr.bf16.mxu0 0
        %1430 = vmatpush1.bf16.msra.mxu0 %v1174
        %1431 = vmatprep.subr.bf16.mxu0 0
        %1432 = vmatpush1.bf16.msra.mxu0 %v1175
        %1433 = vmatprep.mubr.bf16.mxu0 %v660
        %1434 = vmatmul.mubr.bf16.gmra.mrb[0].mxu0 %v659
        %v1435 = vpop.f32.mrb[0].mxu0
        %v1436 = vadd.f32 %v1307, %v1435
        %v1437 = vpop.f32.mrb[0].mxu0
        %v1438 = vpop.f32.mrb[0].mxu0
        %v1439 = vadd.f32 %v1310, %v1438
        %v1440 = vpop.f32.mrb[0].mxu0
        %1441 = vmatprep.mubr.bf16.mxu0 %v668
        %1442 = vmatmul.mubr.bf16.gmra.mrb[0].mxu0 %v667
        %v1443 = vpop.f32.mrb[0].mxu0
        %v1444 = vadd.f32 %v1315, %v1443
        %v1445 = vpop.f32.mrb[0].mxu0
        %v1446 = vpop.f32.mrb[0].mxu0
        %v1447 = vadd.f32 %v1318, %v1446
        %v1448 = vpop.f32.mrb[0].mxu0
        %1449 = vmatprep.mubr.bf16.mxu0 %v676
        %1450 = vmatmul.mubr.bf16.gmra.mrb[0].mxu0 %v675
        %v1451 = vpop.f32.mrb[0].mxu0
        %v1452 = vadd.f32 %v1323, %v1451
        %v1453 = vpop.f32.mrb[0].mxu0
        %v1454 = vpop.f32.mrb[0].mxu0
        %v1455 = vadd.f32 %v1326, %v1454
        %v1456 = vpop.f32.mrb[0].mxu0
        %1457 = vmatprep.mubr.bf16.mxu0 %v684
        %1458 = vmatmul.mubr.bf16.gmra.mrb[0].mxu0 %v683
        %v1459 = vpop.f32.mrb[0].mxu0
        %v1460 = vadd.f32 %v1331, %v1459
        %v1461 = vpop.f32.mrb[0].mxu0
        %v1462 = vpop.f32.mrb[0].mxu0
        %v1463 = vadd.f32 %v1334, %v1462
        %v1464 = vpop.f32.mrb[0].mxu0
        %1465 = vmatprep.mubr.bf16.mxu0 %v692
        %1466 = vmatmul.mubr.bf16.gmra.mrb[0].mxu0 %v691
        %v1467 = vpop.f32.mrb[0].mxu0
        %v1468 = vadd.f32 %v1339, %v1467
        %v1469 = vpop.f32.mrb[0].mxu0
        %v1470 = vpop.f32.mrb[0].mxu0
        %v1471 = vadd.f32 %v1342, %v1470
        %v1472 = vpop.f32.mrb[0].mxu0
        %1473 = vmatprep.mubr.bf16.mxu0 %v700
        %1474 = vmatmul.mubr.bf16.gmra.mrb[0].mxu0 %v699
        %v1475 = vpop.f32.mrb[0].mxu0
        %v1476 = vadd.f32 %v1347, %v1475
        %v1477 = vpop.f32.mrb[0].mxu0
        %v1478 = vpop.f32.mrb[0].mxu0
        %v1479 = vadd.f32 %v1350, %v1478
        %v1480 = vpop.f32.mrb[0].mxu0
        %1481 = vmatprep.mubr.bf16.mxu0 %v708
        %1482 = vmatmul.mubr.bf16.gmra.mrb[0].mxu0 %v707
        %v1483 = vpop.f32.mrb[0].mxu0
        %v1484 = vadd.f32 %v1355, %v1483
        %v1485 = vpop.f32.mrb[0].mxu0
        %v1486 = vpop.f32.mrb[0].mxu0
        %v1487 = vadd.f32 %v1358, %v1486
        %v1488 = vpop.f32.mrb[0].mxu0
        %1489 = vmatprep.mubr.bf16.mxu0 %v716
        %1490 = vmatmul.mubr.bf16.gmra.mrb[0].mxu0 %v715
        %v1491 = vpop.f32.mrb[0].mxu0
        %v1492 = vadd.f32 %v1363, %v1491
        %v1493 = vpop.f32.mrb[0].mxu0
        %v1494 = vpop.f32.mrb[0].mxu0
        %v1495 = vadd.f32 %v1366, %v1494
        %v1496 = vpop.f32.mrb[0].mxu0
        %1497 = vmatprep.mubr.bf16.mxu0 %v724
        %1498 = vmatmul.mubr.bf16.gmra.mrb[0].mxu0 %v723
        %v1499 = vpop.f32.mrb[0].mxu0
        %v1500 = vadd.f32 %v1371, %v1499
        %v1501 = vpop.f32.mrb[0].mxu0
        %v1502 = vpop.f32.mrb[0].mxu0
        %v1503 = vadd.f32 %v1374, %v1502
        %v1504 = vpop.f32.mrb[0].mxu0
        %1505 = vmatprep.mubr.bf16.mxu0 %v732
        %1506 = vmatmul.mubr.bf16.gmra.mrb[0].mxu0 %v731
        %v1507 = vpop.f32.mrb[0].mxu0
        %v1508 = vadd.f32 %v1379, %v1507
        %v1509 = vpop.f32.mrb[0].mxu0
        %v1510 = vpop.f32.mrb[0].mxu0
        %v1511 = vadd.f32 %v1382, %v1510
        %v1512 = vpop.f32.mrb[0].mxu0
        %1513 = vmatprep.mubr.bf16.mxu0 %v740
        %1514 = vmatmul.mubr.bf16.gmra.mrb[0].mxu0 %v739
        %v1515 = vpop.f32.mrb[0].mxu0
        %v1516 = vadd.f32 %v1387, %v1515
        %v1517 = vpop.f32.mrb[0].mxu0
        %v1518 = vpop.f32.mrb[0].mxu0
        %v1519 = vadd.f32 %v1390, %v1518
        %v1520 = vpop.f32.mrb[0].mxu0
        %1521 = vmatprep.mubr.bf16.mxu0 %v748
        %1522 = vmatmul.mubr.bf16.gmra.mrb[0].mxu0 %v747
        %v1523 = vpop.f32.mrb[0].mxu0
        %v1524 = vadd.f32 %v1395, %v1523
        %v1525 = vpop.f32.mrb[0].mxu0
        %v1526 = vpop.f32.mrb[0].mxu0
        %v1527 = vadd.f32 %v1398, %v1526
        %v1528 = vpop.f32.mrb[0].mxu0
        %1529 = vdwg.mxu0
        %1530 = vmatprep.subr.bf16.mxu0 0
        %1531 = vmatpush1.bf16.msra.mxu0 %v1176
        %1532 = vmatprep.subr.bf16.mxu0 0
        %1533 = vmatpush1.bf16.msra.mxu0 %v1177
        %1534 = vmatprep.subr.bf16.mxu0 0
        %1535 = vmatpush1.bf16.msra.mxu0 %v1178
        %1536 = vmatprep.subr.bf16.mxu0 0
        %1537 = vmatpush1.bf16.msra.mxu0 %v1179
        %1538 = vmatprep.subr.bf16.mxu0 0
        %1539 = vmatpush1.bf16.msra.mxu0 %v1180
        %1540 = vmatprep.subr.bf16.mxu0 0
        %1541 = vmatpush1.bf16.msra.mxu0 %v1181
        %1542 = vmatprep.subr.bf16.mxu0 0
        %1543 = vmatpush1.bf16.msra.mxu0 %v1182
        %1544 = vmatprep.subr.bf16.mxu0 0
        %1545 = vmatpush1.bf16.msra.mxu0 %v1183
        %1546 = vmatprep.subr.bf16.mxu0 0
        %1547 = vmatpush1.bf16.msra.mxu0 %v1184
        %1548 = vmatprep.subr.bf16.mxu0 0
        %1549 = vmatpush1.bf16.msra.mxu0 %v1185
        %1550 = vmatprep.subr.bf16.mxu0 0
        %1551 = vmatpush1.bf16.msra.mxu0 %v1186
        %1552 = vmatprep.subr.bf16.mxu0 0
        %1553 = vmatpush1.bf16.msra.mxu0 %v1187
        %1554 = vmatprep.subr.bf16.mxu0 0
        %1555 = vmatpush1.bf16.msra.mxu0 %v1188
        %1556 = vmatprep.subr.bf16.mxu0 0
        %1557 = vmatpush1.bf16.msra.mxu0 %v1189
        %1558 = vmatprep.subr.bf16.mxu0 0
        %1559 = vmatpush1.bf16.msra.mxu0 %v1190
        %1560 = vmatprep.subr.bf16.mxu0 0
        %1561 = vmatpush1.bf16.msra.mxu0 %v1191
        %1562 = vmatprep.mubr.bf16.mxu0 %v662
        %1563 = vmatmul.mubr.bf16.gmra.mrb[0].mxu0 %v661
        %v1564 = vpop.f32.mrb[0].mxu0
        %v1565 = vadd.f32 %v1436, %v1564
        %v1566 = vpop.f32.mrb[0].mxu0
        %v1567 = vpop.f32.mrb[0].mxu0
        %v1568 = vadd.f32 %v1439, %v1567
        %v1569 = vpop.f32.mrb[0].mxu0
        %1570 = vmatprep.mubr.bf16.mxu0 %v670
        %1571 = vmatmul.mubr.bf16.gmra.mrb[0].mxu0 %v669
        %v1572 = vpop.f32.mrb[0].mxu0
        %v1573 = vadd.f32 %v1444, %v1572
        %v1574 = vpop.f32.mrb[0].mxu0
        %v1575 = vpop.f32.mrb[0].mxu0
        %v1576 = vadd.f32 %v1447, %v1575
        %v1577 = vpop.f32.mrb[0].mxu0
        %1578 = vmatprep.mubr.bf16.mxu0 %v678
        %1579 = vmatmul.mubr.bf16.gmra.mrb[0].mxu0 %v677
        %v1580 = vpop.f32.mrb[0].mxu0
        %v1581 = vadd.f32 %v1452, %v1580
        %v1582 = vpop.f32.mrb[0].mxu0
        %v1583 = vpop.f32.mrb[0].mxu0
        %v1584 = vadd.f32 %v1455, %v1583
        %v1585 = vpop.f32.mrb[0].mxu0
        %1586 = vmatprep.mubr.bf16.mxu0 %v686
        %1587 = vmatmul.mubr.bf16.gmra.mrb[0].mxu0 %v685
        %v1588 = vpop.f32.mrb[0].mxu0
        %v1589 = vadd.f32 %v1460, %v1588
        %v1590 = vpop.f32.mrb[0].mxu0
        %v1591 = vpop.f32.mrb[0].mxu0
        %v1592 = vadd.f32 %v1463, %v1591
        %v1593 = vpop.f32.mrb[0].mxu0
        %1594 = vmatprep.mubr.bf16.mxu0 %v694
        %1595 = vmatmul.mubr.bf16.gmra.mrb[0].mxu0 %v693
        %v1596 = vpop.f32.mrb[0].mxu0
        %v1597 = vadd.f32 %v1468, %v1596
        %v1598 = vpop.f32.mrb[0].mxu0
        %v1599 = vpop.f32.mrb[0].mxu0
        %v1600 = vadd.f32 %v1471, %v1599
        %v1601 = vpop.f32.mrb[0].mxu0
        %1602 = vmatprep.mubr.bf16.mxu0 %v702
        %1603 = vmatmul.mubr.bf16.gmra.mrb[0].mxu0 %v701
        %v1604 = vpop.f32.mrb[0].mxu0
        %v1605 = vadd.f32 %v1476, %v1604
        %v1606 = vpop.f32.mrb[0].mxu0
        %v1607 = vpop.f32.mrb[0].mxu0
        %v1608 = vadd.f32 %v1479, %v1607
        %v1609 = vpop.f32.mrb[0].mxu0
        %1610 = vmatprep.mubr.bf16.mxu0 %v710
        %1611 = vmatmul.mubr.bf16.gmra.mrb[0].mxu0 %v709
        %v1612 = vpop.f32.mrb[0].mxu0
        %v1613 = vadd.f32 %v1484, %v1612
        %v1614 = vpop.f32.mrb[0].mxu0
        %v1615 = vpop.f32.mrb[0].mxu0
        %v1616 = vadd.f32 %v1487, %v1615
        %v1617 = vpop.f32.mrb[0].mxu0
        %1618 = vmatprep.mubr.bf16.mxu0 %v718
        %1619 = vmatmul.mubr.bf16.gmra.mrb[0].mxu0 %v717
        %v1620 = vpop.f32.mrb[0].mxu0
        %v1621 = vadd.f32 %v1492, %v1620
        %v1622 = vpop.f32.mrb[0].mxu0
        %v1623 = vpop.f32.mrb[0].mxu0
        %v1624 = vadd.f32 %v1495, %v1623
        %v1625 = vpop.f32.mrb[0].mxu0
        %1626 = vmatprep.mubr.bf16.mxu0 %v726
        %1627 = vmatmul.mubr.bf16.gmra.mrb[0].mxu0 %v725
        %v1628 = vpop.f32.mrb[0].mxu0
        %v1629 = vadd.f32 %v1500, %v1628
        %v1630 = vpop.f32.mrb[0].mxu0
        %v1631 = vpop.f32.mrb[0].mxu0
        %v1632 = vadd.f32 %v1503, %v1631
        %v1633 = vpop.f32.mrb[0].mxu0
        %1634 = vmatprep.mubr.bf16.mxu0 %v734
        %1635 = vmatmul.mubr.bf16.gmra.mrb[0].mxu0 %v733
        %v1636 = vpop.f32.mrb[0].mxu0
        %v1637 = vadd.f32 %v1508, %v1636
        %v1638 = vpop.f32.mrb[0].mxu0
        %v1639 = vpop.f32.mrb[0].mxu0
        %v1640 = vadd.f32 %v1511, %v1639
        %v1641 = vpop.f32.mrb[0].mxu0
        %1642 = vmatprep.mubr.bf16.mxu0 %v742
        %1643 = vmatmul.mubr.bf16.gmra.mrb[0].mxu0 %v741
        %v1644 = vpop.f32.mrb[0].mxu0
        %v1645 = vadd.f32 %v1516, %v1644
        %v1646 = vpop.f32.mrb[0].mxu0
        %v1647 = vpop.f32.mrb[0].mxu0
        %v1648 = vadd.f32 %v1519, %v1647
        %v1649 = vpop.f32.mrb[0].mxu0
        %1650 = vmatprep.mubr.bf16.mxu0 %v750
        %1651 = vmatmul.mubr.bf16.gmra.mrb[0].mxu0 %v749
        %v1652 = vpop.f32.mrb[0].mxu0
        %v1653 = vadd.f32 %v1524, %v1652
        %v1654 = vpop.f32.mrb[0].mxu0
        %v1655 = vpop.f32.mrb[0].mxu0
        %v1656 = vadd.f32 %v1527, %v1655
        %v1657 = vpop.f32.mrb[0].mxu0
        %1658 = vdwg.mxu0
        %1659 = vmatprep.subr.bf16.mxu0 0
        %1660 = vmatpush1.bf16.msra.mxu0 %v1192
        %1661 = vmatprep.subr.bf16.mxu0 0
        %1662 = vmatpush1.bf16.msra.mxu0 %v1193
        %1663 = vmatprep.subr.bf16.mxu0 0
        %1664 = vmatpush1.bf16.msra.mxu0 %v1194
        %1665 = vmatprep.subr.bf16.mxu0 0
        %1666 = vmatpush1.bf16.msra.mxu0 %v1195
        %1667 = vmatprep.subr.bf16.mxu0 0
        %1668 = vmatpush1.bf16.msra.mxu0 %v1196
        %1669 = vmatprep.subr.bf16.mxu0 0
        %1670 = vmatpush1.bf16.msra.mxu0 %v1197
        %1671 = vmatprep.subr.bf16.mxu0 0
        %1672 = vmatpush1.bf16.msra.mxu0 %v1198
        %1673 = vmatprep.subr.bf16.mxu0 0
        %1674 = vmatpush1.bf16.msra.mxu0 %v1199
        %1675 = vmatprep.subr.bf16.mxu0 0
        %1676 = vmatpush1.bf16.msra.mxu0 %v1200
        %1677 = vmatprep.subr.bf16.mxu0 0
        %1678 = vmatpush1.bf16.msra.mxu0 %v1201
        %1679 = vmatprep.subr.bf16.mxu0 0
        %1680 = vmatpush1.bf16.msra.mxu0 %v1202
        %1681 = vmatprep.subr.bf16.mxu0 0
        %1682 = vmatpush1.bf16.msra.mxu0 %v1203
        %1683 = vmatprep.subr.bf16.mxu0 0
        %1684 = vmatpush1.bf16.msra.mxu0 %v1204
        %1685 = vmatprep.subr.bf16.mxu0 0
        %1686 = vmatpush1.bf16.msra.mxu0 %v1205
        %1687 = vmatprep.subr.bf16.mxu0 0
        %1688 = vmatpush1.bf16.msra.mxu0 %v1206
        %1689 = vmatprep.subr.bf16.mxu0 0
        %1690 = vmatpush1.bf16.msra.mxu0 %v1207
        %1691 = vmatprep.mubr.bf16.mxu0 %v664
        %1692 = vmatmul.mubr.bf16.gmra.mrb[0].mxu0 %v663
        %v1693 = vpop.f32.mrb[0].mxu0
        %v1694 = vadd.f32 %v1565, %v1693
        %v1695 = vpop.f32.mrb[0].mxu0
        %v1696 = vpop.f32.mrb[0].mxu0
        %v1697 = vadd.f32 %v1568, %v1696
        %v1698 = vpop.f32.mrb[0].mxu0
        %1699 = vmatprep.mubr.bf16.mxu0 %v672
        %1700 = vmatmul.mubr.bf16.gmra.mrb[0].mxu0 %v671
        %v1701 = vpop.f32.mrb[0].mxu0
        %v1702 = vadd.f32 %v1573, %v1701
        %v1703 = vpop.f32.mrb[0].mxu0
        %v1704 = vpop.f32.mrb[0].mxu0
        %v1705 = vadd.f32 %v1576, %v1704
        %v1706 = vpop.f32.mrb[0].mxu0
        %1707 = vmatprep.mubr.bf16.mxu0 %v680
        %1708 = vmatmul.mubr.bf16.gmra.mrb[0].mxu0 %v679
        %v1709 = vpop.f32.mrb[0].mxu0
        %v1710 = vadd.f32 %v1581, %v1709
        %v1711 = vpop.f32.mrb[0].mxu0
        %v1712 = vpop.f32.mrb[0].mxu0
        %v1713 = vadd.f32 %v1584, %v1712
        %v1714 = vpop.f32.mrb[0].mxu0
        %1715 = vmatprep.mubr.bf16.mxu0 %v688
        %1716 = vmatmul.mubr.bf16.gmra.mrb[0].mxu0 %v687
        %v1717 = vpop.f32.mrb[0].mxu0
        %v1718 = vadd.f32 %v1589, %v1717
        %v1719 = vpop.f32.mrb[0].mxu0
        %v1720 = vpop.f32.mrb[0].mxu0
        %v1721 = vadd.f32 %v1592, %v1720
        %v1722 = vpop.f32.mrb[0].mxu0
        %1723 = vmatprep.mubr.bf16.mxu0 %v696
        %1724 = vmatmul.mubr.bf16.gmra.mrb[0].mxu0 %v695
        %v1725 = vpop.f32.mrb[0].mxu0
        %v1726 = vadd.f32 %v1597, %v1725
        %v1727 = vpop.f32.mrb[0].mxu0
        %v1728 = vpop.f32.mrb[0].mxu0
        %v1729 = vadd.f32 %v1600, %v1728
        %v1730 = vpop.f32.mrb[0].mxu0
        %1731 = vmatprep.mubr.bf16.mxu0 %v704
        %1732 = vmatmul.mubr.bf16.gmra.mrb[0].mxu0 %v703
        %v1733 = vpop.f32.mrb[0].mxu0
        %v1734 = vadd.f32 %v1605, %v1733
        %v1735 = vpop.f32.mrb[0].mxu0
        %v1736 = vpop.f32.mrb[0].mxu0
        %v1737 = vadd.f32 %v1608, %v1736
        %v1738 = vpop.f32.mrb[0].mxu0
        %1739 = vmatprep.mubr.bf16.mxu0 %v712
        %1740 = vmatmul.mubr.bf16.gmra.mrb[0].mxu0 %v711
        %v1741 = vpop.f32.mrb[0].mxu0
        %v1742 = vadd.f32 %v1613, %v1741
        %v1743 = vpop.f32.mrb[0].mxu0
        %v1744 = vpop.f32.mrb[0].mxu0
        %v1745 = vadd.f32 %v1616, %v1744
        %v1746 = vpop.f32.mrb[0].mxu0
        %1747 = vmatprep.mubr.bf16.mxu0 %v720
        %1748 = vmatmul.mubr.bf16.gmra.mrb[0].mxu0 %v719
        %v1749 = vpop.f32.mrb[0].mxu0
        %v1750 = vadd.f32 %v1621, %v1749
        %v1751 = vpop.f32.mrb[0].mxu0
        %v1752 = vpop.f32.mrb[0].mxu0
        %v1753 = vadd.f32 %v1624, %v1752
        %v1754 = vpop.f32.mrb[0].mxu0
        %1755 = vmatprep.mubr.bf16.mxu0 %v728
        %1756 = vmatmul.mubr.bf16.gmra.mrb[0].mxu0 %v727
        %v1757 = vpop.f32.mrb[0].mxu0
        %v1758 = vadd.f32 %v1629, %v1757
        %v1759 = vpop.f32.mrb[0].mxu0
        %v1760 = vpop.f32.mrb[0].mxu0
        %v1761 = vadd.f32 %v1632, %v1760
        %v1762 = vpop.f32.mrb[0].mxu0
        %1763 = vmatprep.mubr.bf16.mxu0 %v736
        %1764 = vmatmul.mubr.bf16.gmra.mrb[0].mxu0 %v735
        %v1765 = vpop.f32.mrb[0].mxu0
        %v1766 = vadd.f32 %v1637, %v1765
        %v1767 = vpop.f32.mrb[0].mxu0
        %v1768 = vpop.f32.mrb[0].mxu0
        %v1769 = vadd.f32 %v1640, %v1768
        %v1770 = vpop.f32.mrb[0].mxu0
        %1771 = vmatprep.mubr.bf16.mxu0 %v744
        %1772 = vmatmul.mubr.bf16.gmra.mrb[0].mxu0 %v743
        %v1773 = vpop.f32.mrb[0].mxu0
        %v1774 = vadd.f32 %v1645, %v1773
        %v1775 = vpop.f32.mrb[0].mxu0
        %v1776 = vpop.f32.mrb[0].mxu0
        %v1777 = vadd.f32 %v1648, %v1776
        %v1778 = vpop.f32.mrb[0].mxu0
        %1779 = vmatprep.mubr.bf16.mxu0 %v752
        %1780 = vmatmul.mubr.bf16.gmra.mrb[0].mxu0 %v751
        %v1781 = vpop.f32.mrb[0].mxu0
        %v1782 = vadd.f32 %v1653, %v1781
        %v1783 = vpop.f32.mrb[0].mxu0
        %v1784 = vpop.f32.mrb[0].mxu0
        %v1785 = vadd.f32 %v1656, %v1784
        %v1786 = vpop.f32.mrb[0].mxu0
        %1787 = vdwg.mxu0
        %v1788 = vpack.c.bf16 %v1697, %v1694
        %v1789 = vpack.c.bf16 %v1705, %v1702
        %v1790 = vpack.c.bf16 %v1713, %v1710
        %v1791 = vpack.c.bf16 %v1721, %v1718
        %v1792 = vpack.c.bf16 %v1729, %v1726
        %v1793 = vpack.c.bf16 %v1737, %v1734
        %v1794 = vpack.c.bf16 %v1745, %v1742
        %v1795 = vpack.c.bf16 %v1753, %v1750
        %v1796 = vpack.c.bf16 %v1761, %v1758
        %v1797 = vpack.c.bf16 %v1769, %v1766
        %v1798 = vpack.c.bf16 %v1777, %v1774
        %v1799 = vpack.c.bf16 %v1785, %v1782
        %v1800 = vmul.bf16 %v1788, 1056980736
        %v1801 = vmul.bf16 %v1789, 1056980736
        %v1802 = vmul.bf16 %v1790, 1056980736
        %v1803 = vmul.bf16 %v1791, 1056980736
        %v1804 = vmul.bf16 %v1792, 1056980736
        %v1805 = vmul.bf16 %v1793, 1056980736
        %v1806 = vmul.bf16 %v1794, 1056980736
        %v1807 = vmul.bf16 %v1795, 1056980736
        %v1808 = vmul.bf16 %v1796, 1056980736
        %v1809 = vmul.bf16 %v1797, 1056980736
        %v1810 = vmul.bf16 %v1798, 1056980736
        %v1811 = vmul.bf16 %v1799, 1056980736
        %v1812 = vtanh.bf16.pop %v1800
        %v1813 = vtanh.bf16.pop %v1801
        %v1814 = vtanh.bf16.pop %v1802
        %v1815 = vtanh.bf16.pop %v1803
        %v1816 = vtanh.bf16.pop %v1804
        %v1817 = vtanh.bf16.pop %v1805
        %v1818 = vtanh.bf16.pop %v1806
        %v1819 = vtanh.bf16.pop %v1807
        %v1820 = vtanh.bf16.pop %v1808
        %v1821 = vtanh.bf16.pop %v1809
        %v1822 = vtanh.bf16.pop %v1810
        %v1823 = vtanh.bf16.pop %v1811
        %v1824 = vadd.bf16 %v1812, 1065369472
        %v1825 = vadd.bf16 %v1813, 1065369472
        %v1826 = vadd.bf16 %v1814, 1065369472
        %v1827 = vadd.bf16 %v1815, 1065369472
        %v1828 = vadd.bf16 %v1816, 1065369472
        %v1829 = vadd.bf16 %v1817, 1065369472
        %v1830 = vadd.bf16 %v1818, 1065369472
        %v1831 = vadd.bf16 %v1819, 1065369472
        %v1832 = vadd.bf16 %v1820, 1065369472
        %v1833 = vadd.bf16 %v1821, 1065369472
        %v1834 = vadd.bf16 %v1822, 1065369472
        %v1835 = vadd.bf16 %v1823, 1065369472
        %v1836 = vmul.bf16 %v1824, 1056980736
        %v1837 = vmul.bf16 %v1825, 1056980736
        %v1838 = vmul.bf16 %v1826, 1056980736
        %v1839 = vmul.bf16 %v1827, 1056980736
        %v1840 = vmul.bf16 %v1828, 1056980736
        %v1841 = vmul.bf16 %v1829, 1056980736
        %v1842 = vmul.bf16 %v1830, 1056980736
        %v1843 = vmul.bf16 %v1831, 1056980736
        %v1844 = vmul.bf16 %v1832, 1056980736
        %v1845 = vmul.bf16 %v1833, 1056980736
        %v1846 = vmul.bf16 %v1834, 1056980736
        %v1847 = vmul.bf16 %v1835, 1056980736
        %v1848 = vld [vmem:[#allocation8] sm:$0xf]
        %v1849 = vld [vmem:[#allocation8 + $0x4] sm:$0xf]
        %v1850 = vld [vmem:[#allocation8 + $0x8] sm:$0xf]
        %v1851 = vld [vmem:[#allocation8 + $0xc] sm:$0xf]
        %v1852 = vld [vmem:[#allocation8 + $0x10] sm:$0xf]
        %v1853 = vld [vmem:[#allocation8 + $0x14] sm:$0xf]
        %v1854 = vld [vmem:[#allocation8 + $0x18] sm:$0xf]
        %v1855 = vld [vmem:[#allocation8 + $0x1c] sm:$0xf]
        %v1856 = vld [vmem:[#allocation8 + $0x20] sm:$0xf]
        %v1857 = vld [vmem:[#allocation8 + $0x24] sm:$0xf]
        %v1858 = vld [vmem:[#allocation8 + $0x28] sm:$0xf]
        %v1859 = vld [vmem:[#allocation8 + $0x2c] sm:$0xf]
        %v1860 = vld [vmem:[#allocation8 + $0x30] sm:$0xf]
        %v1861 = vld [vmem:[#allocation8 + $0x34] sm:$0xf]
        %v1862 = vld [vmem:[#allocation8 + $0x38] sm:$0xf]
        %v1863 = vld [vmem:[#allocation8 + $0x3c] sm:$0xf]
        %v1864 = vld [vmem:[#allocation10] sm:$0x1]
        %v1866 = vlaneseq
        %v1867 = vshrl.u32 %v1866, 7
        %v1868 = vsub.s32 0, %v1867
        %v1869 = vrot.slane %v1864, %v1868
        %v1887 = vunpack.c.l.b16 %v1848
        %v1888 = vunpack.c.l.b16 %v1849
        %v1889 = vunpack.c.l.b16 %v1850
        %v1890 = vunpack.c.l.b16 %v1851
        %v1891 = vunpack.c.l.b16 %v1852
        %v1892 = vunpack.c.l.b16 %v1853
        %v1893 = vunpack.c.l.b16 %v1854
        %v1894 = vunpack.c.l.b16 %v1855
        %v1895 = vunpack.c.l.b16 %v1856
        %v1896 = vunpack.c.l.b16 %v1857
        %v1897 = vunpack.c.l.b16 %v1858
        %v1898 = vunpack.c.l.b16 %v1859
        %v1899 = vunpack.c.l.b16 %v1860
        %v1900 = vunpack.c.l.b16 %v1861
        %v1901 = vunpack.c.l.b16 %v1862
        %v1902 = vunpack.c.l.b16 %v1863
        %v1903 = vpack.c.b16 %v1888, %v1887
        %v1904 = vpack.c.b16 %v1890, %v1889
        %v1905 = vpack.c.b16 %v1892, %v1891
        %v1906 = vpack.c.b16 %v1894, %v1893
        %v1907 = vpack.c.b16 %v1896, %v1895
        %v1908 = vpack.c.b16 %v1898, %v1897
        %v1909 = vpack.c.b16 %v1900, %v1899
        %v1910 = vpack.c.b16 %v1902, %v1901
        %1919 = vmatprep.subr.bf16.mxu0 0
        %1920 = vmatpush1.bf16.msra.mxu0 %v1903
        %1921 = vmatprep.subr.bf16.mxu0 0
        %1922 = vmatpush1.bf16.msra.mxu0 %v1904
        %1923 = vmatprep.subr.bf16.mxu0 0
        %1924 = vmatpush1.bf16.msra.mxu0 %v1905
        %1925 = vmatprep.subr.bf16.mxu0 0
        %1926 = vmatpush1.bf16.msra.mxu0 %v1906
        %1927 = vmatprep.subr.bf16.mxu0 0
        %1928 = vmatpush1.bf16.msra.mxu0 %v1907
        %1929 = vmatprep.subr.bf16.mxu0 0
        %1930 = vmatpush1.bf16.msra.mxu0 %v1908
        %1931 = vmatprep.subr.bf16.mxu0 0
        %1932 = vmatpush1.bf16.msra.mxu0 %v1909
        %1933 = vmatprep.subr.bf16.mxu0 0
        %1934 = vmatpush1.bf16.msra.mxu0 %v1910
        %1935 = vmatprep.subr.bf16.mxu0 0
        %1936 = vmatpush1.bf16.msra.mxu0 0
        %1937 = vmatprep.subr.bf16.mxu0 0
        %1938 = vmatpush1.bf16.msra.mxu0 0
        %1939 = vmatprep.subr.bf16.mxu0 0
        %1940 = vmatpush1.bf16.msra.mxu0 0
        %1941 = vmatprep.subr.bf16.mxu0 0
        %1942 = vmatpush1.bf16.msra.mxu0 0
        %1943 = vmatprep.subr.bf16.mxu0 0
        %1944 = vmatpush1.bf16.msra.mxu0 0
        %1945 = vmatprep.subr.bf16.mxu0 0
        %1946 = vmatpush1.bf16.msra.mxu0 0
        %1947 = vmatprep.subr.bf16.mxu0 0
        %1948 = vmatpush1.bf16.msra.mxu0 0
        %1949 = vmatprep.subr.bf16.mxu0 0
        %1950 = vmatpush1.bf16.msra.mxu0 0
        %1951 = vmatprep.mubr.bf16.mxu0 0
        %1952 = vmatmul.mubr.bf16.gmra.mrb[0].mxu0 %v1836
        %v1953 = vpop.f32.mrb[0].mxu0
        %v1954 = vadd.f32 %v1869, %v1953
        %v1955 = vpop.f32.mrb[0].mxu0
        %v1956 = vpop.f32.mrb[0].mxu0
        %v1957 = vadd.f32 %v1869, %v1956
        %v1958 = vpop.f32.mrb[0].mxu0
        %1959 = vmatprep.mubr.bf16.mxu0 0
        %1960 = vmatmul.mubr.bf16.gmra.mrb[0].mxu0 %v1837
        %v1961 = vpop.f32.mrb[0].mxu0
        %v1962 = vadd.f32 %v1869, %v1961
        %v1963 = vpop.f32.mrb[0].mxu0
        %v1964 = vpop.f32.mrb[0].mxu0
        %v1965 = vadd.f32 %v1869, %v1964
        %v1966 = vpop.f32.mrb[0].mxu0
        %1967 = vmatprep.mubr.bf16.mxu0 0
        %1968 = vmatmul.mubr.bf16.gmra.mrb[0].mxu0 %v1838
        %v1969 = vpop.f32.mrb[0].mxu0
        %v1970 = vadd.f32 %v1869, %v1969
        %v1971 = vpop.f32.mrb[0].mxu0
        %v1972 = vpop.f32.mrb[0].mxu0
        %v1973 = vadd.f32 %v1869, %v1972
        %v1974 = vpop.f32.mrb[0].mxu0
        %1975 = vmatprep.mubr.bf16.mxu0 0
        %1976 = vmatmul.mubr.bf16.gmra.mrb[0].mxu0 %v1839
        %v1977 = vpop.f32.mrb[0].mxu0
        %v1978 = vadd.f32 %v1869, %v1977
        %v1979 = vpop.f32.mrb[0].mxu0
        %v1980 = vpop.f32.mrb[0].mxu0
        %v1981 = vadd.f32 %v1869, %v1980
        %v1982 = vpop.f32.mrb[0].mxu0
        %1983 = vmatprep.mubr.bf16.mxu0 0
        %1984 = vmatmul.mubr.bf16.gmra.mrb[0].mxu0 %v1840
        %v1985 = vpop.f32.mrb[0].mxu0
        %v1986 = vadd.f32 %v1869, %v1985
        %v1987 = vpop.f32.mrb[0].mxu0
        %v1988 = vpop.f32.mrb[0].mxu0
        %v1989 = vadd.f32 %v1869, %v1988
        %v1990 = vpop.f32.mrb[0].mxu0
        %1991 = vmatprep.mubr.bf16.mxu0 0
        %1992 = vmatmul.mubr.bf16.gmra.mrb[0].mxu0 %v1841
        %v1993 = vpop.f32.mrb[0].mxu0
        %v1994 = vadd.f32 %v1869, %v1993
        %v1995 = vpop.f32.mrb[0].mxu0
        %v1996 = vpop.f32.mrb[0].mxu0
        %v1997 = vadd.f32 %v1869, %v1996
        %v1998 = vpop.f32.mrb[0].mxu0
        %1999 = vmatprep.mubr.bf16.mxu0 0
        %2000 = vmatmul.mubr.bf16.gmra.mrb[0].mxu0 %v1842
        %v2001 = vpop.f32.mrb[0].mxu0
        %v2002 = vadd.f32 %v1869, %v2001
        %v2003 = vpop.f32.mrb[0].mxu0
        %v2004 = vpop.f32.mrb[0].mxu0
        %v2005 = vadd.f32 %v1869, %v2004
        %v2006 = vpop.f32.mrb[0].mxu0
        %2007 = vmatprep.mubr.bf16.mxu0 0
        %2008 = vmatmul.mubr.bf16.gmra.mrb[0].mxu0 %v1843
        %v2009 = vpop.f32.mrb[0].mxu0
        %v2010 = vadd.f32 %v1869, %v2009
        %v2011 = vpop.f32.mrb[0].mxu0
        %v2012 = vpop.f32.mrb[0].mxu0
        %v2013 = vadd.f32 %v1869, %v2012
        %v2014 = vpop.f32.mrb[0].mxu0
        %2015 = vmatprep.mubr.bf16.mxu0 0
        %2016 = vmatmul.mubr.bf16.gmra.mrb[0].mxu0 %v1844
        %v2017 = vpop.f32.mrb[0].mxu0
        %v2018 = vadd.f32 %v1869, %v2017
        %v2019 = vpop.f32.mrb[0].mxu0
        %v2020 = vpop.f32.mrb[0].mxu0
        %v2021 = vadd.f32 %v1869, %v2020
        %v2022 = vpop.f32.mrb[0].mxu0
        %2023 = vmatprep.mubr.bf16.mxu0 0
        %2024 = vmatmul.mubr.bf16.gmra.mrb[0].mxu0 %v1845
        %v2025 = vpop.f32.mrb[0].mxu0
        %v2026 = vadd.f32 %v1869, %v2025
        %v2027 = vpop.f32.mrb[0].mxu0
        %v2028 = vpop.f32.mrb[0].mxu0
        %v2029 = vadd.f32 %v1869, %v2028
        %v2030 = vpop.f32.mrb[0].mxu0
        %2031 = vmatprep.mubr.bf16.mxu0 0
        %2032 = vmatmul.mubr.bf16.gmra.mrb[0].mxu0 %v1846
        %v2033 = vpop.f32.mrb[0].mxu0
        %v2034 = vadd.f32 %v1869, %v2033
        %v2035 = vpop.f32.mrb[0].mxu0
        %v2036 = vpop.f32.mrb[0].mxu0
        %v2037 = vadd.f32 %v1869, %v2036
        %v2038 = vpop.f32.mrb[0].mxu0
        %2039 = vmatprep.mubr.bf16.mxu0 0
        %2040 = vmatmul.mubr.bf16.gmra.mrb[0].mxu0 %v1847
        %v2041 = vpop.f32.mrb[0].mxu0
        %v2042 = vadd.f32 %v1869, %v2041
        %v2043 = vpop.f32.mrb[0].mxu0
        %v2044 = vpop.f32.mrb[0].mxu0
        %v2045 = vadd.f32 %v1869, %v2044
        %v2046 = vpop.f32.mrb[0].mxu0
        %2047 = vdwg.mxu0
        %v2048 = vpack.c.bf16 %v1957, %v1954
        %v2049 = vpack.c.bf16 %v1965, %v1962
        %v2050 = vpack.c.bf16 %v1973, %v1970
        %v2051 = vpack.c.bf16 %v1981, %v1978
        %v2052 = vpack.c.bf16 %v1989, %v1986
        %v2053 = vpack.c.bf16 %v1997, %v1994
        %v2054 = vpack.c.bf16 %v2005, %v2002
        %v2055 = vpack.c.bf16 %v2013, %v2010
        %v2056 = vpack.c.bf16 %v2021, %v2018
        %v2057 = vpack.c.bf16 %v2029, %v2026
        %v2058 = vpack.c.bf16 %v2037, %v2034
        %v2059 = vpack.c.bf16 %v2045, %v2042
        %v2060 = vmul.bf16 %v2048, 1056980736
        %v2061 = vmul.bf16 %v2049, 1056980736
        %v2062 = vmul.bf16 %v2050, 1056980736
        %v2063 = vmul.bf16 %v2051, 1056980736
        %v2064 = vmul.bf16 %v2052, 1056980736
        %v2065 = vmul.bf16 %v2053, 1056980736
        %v2066 = vmul.bf16 %v2054, 1056980736
        %v2067 = vmul.bf16 %v2055, 1056980736
        %v2068 = vmul.bf16 %v2056, 1056980736
        %v2069 = vmul.bf16 %v2057, 1056980736
        %v2070 = vmul.bf16 %v2058, 1056980736
        %v2071 = vmul.bf16 %v2059, 1056980736
        %v2072 = vtanh.bf16.pop %v2060
        %v2073 = vtanh.bf16.pop %v2061
        %v2074 = vtanh.bf16.pop %v2062
        %v2075 = vtanh.bf16.pop %v2063
        %v2076 = vtanh.bf16.pop %v2064
        %v2077 = vtanh.bf16.pop %v2065
        %v2078 = vtanh.bf16.pop %v2066
        %v2079 = vtanh.bf16.pop %v2067
        %v2080 = vtanh.bf16.pop %v2068
        %v2081 = vtanh.bf16.pop %v2069
        %v2082 = vtanh.bf16.pop %v2070
        %v2083 = vtanh.bf16.pop %v2071
        %v2084 = vadd.bf16 %v2072, 1065369472
        %v2085 = vadd.bf16 %v2073, 1065369472
        %v2086 = vadd.bf16 %v2074, 1065369472
        %v2087 = vadd.bf16 %v2075, 1065369472
        %v2088 = vadd.bf16 %v2076, 1065369472
        %v2089 = vadd.bf16 %v2077, 1065369472
        %v2090 = vadd.bf16 %v2078, 1065369472
        %v2091 = vadd.bf16 %v2079, 1065369472
        %v2092 = vadd.bf16 %v2080, 1065369472
        %v2093 = vadd.bf16 %v2081, 1065369472
        %v2094 = vadd.bf16 %v2082, 1065369472
        %v2095 = vadd.bf16 %v2083, 1065369472
        %v2096 = vmul.bf16 %v2084, 1056980736
        %v2097 = vmul.bf16 %v2085, 1056980736
        %v2098 = vmul.bf16 %v2086, 1056980736
        %v2099 = vmul.bf16 %v2087, 1056980736
        %v2100 = vmul.bf16 %v2088, 1056980736
        %v2101 = vmul.bf16 %v2089, 1056980736
        %v2102 = vmul.bf16 %v2090, 1056980736
        %v2103 = vmul.bf16 %v2091, 1056980736
        %v2104 = vmul.bf16 %v2092, 1056980736
        %v2105 = vmul.bf16 %v2093, 1056980736
        %v2106 = vmul.bf16 %v2094, 1056980736
        %v2107 = vmul.bf16 %v2095, 1056980736
        %v2108 = vld [vmem:[#allocation11] sm:$0xf]
        %v2109 = vld [vmem:[#allocation11 + $0x4] sm:$0xf]
        %v2110 = vld [vmem:[#allocation11 + $0x8] sm:$0xf]
        %v2111 = vld [vmem:[#allocation11 + $0xc] sm:$0xf]
        %v2112 = vld [vmem:[#allocation11 + $0x10] sm:$0xf]
        %v2113 = vld [vmem:[#allocation11 + $0x14] sm:$0xf]
        %v2114 = vld [vmem:[#allocation11 + $0x18] sm:$0xf]
        %v2115 = vld [vmem:[#allocation11 + $0x1c] sm:$0xf]
        %v2116 = vld [vmem:[#allocation11 + $0x20] sm:$0xf]
        %v2117 = vld [vmem:[#allocation11 + $0x24] sm:$0xf]
        %v2118 = vld [vmem:[#allocation11 + $0x28] sm:$0xf]
        %v2119 = vld [vmem:[#allocation11 + $0x2c] sm:$0xf]
        %v2120 = vld [vmem:[#allocation11 + $0x30] sm:$0xf]
        %v2121 = vld [vmem:[#allocation11 + $0x34] sm:$0xf]
        %v2122 = vld [vmem:[#allocation11 + $0x38] sm:$0xf]
        %v2123 = vld [vmem:[#allocation11 + $0x3c] sm:$0xf]
        %v2124 = vld [vmem:[#allocation13] sm:$0x1]
        %v2126 = vlaneseq
        %v2127 = vshrl.u32 %v2126, 7
        %v2128 = vsub.s32 0, %v2127
        %v2129 = vrot.slane %v2124, %v2128
        %v2147 = vunpack.c.l.b16 %v2108
        %v2148 = vunpack.c.l.b16 %v2109
        %v2149 = vunpack.c.l.b16 %v2110
        %v2150 = vunpack.c.l.b16 %v2111
        %v2151 = vunpack.c.l.b16 %v2112
        %v2152 = vunpack.c.l.b16 %v2113
        %v2153 = vunpack.c.l.b16 %v2114
        %v2154 = vunpack.c.l.b16 %v2115
        %v2155 = vunpack.c.l.b16 %v2116
        %v2156 = vunpack.c.l.b16 %v2117
        %v2157 = vunpack.c.l.b16 %v2118
        %v2158 = vunpack.c.l.b16 %v2119
        %v2159 = vunpack.c.l.b16 %v2120
        %v2160 = vunpack.c.l.b16 %v2121
        %v2161 = vunpack.c.l.b16 %v2122
        %v2162 = vunpack.c.l.b16 %v2123
        %v2163 = vpack.c.b16 %v2148, %v2147
        %v2164 = vpack.c.b16 %v2150, %v2149
        %v2165 = vpack.c.b16 %v2152, %v2151
        %v2166 = vpack.c.b16 %v2154, %v2153
        %v2167 = vpack.c.b16 %v2156, %v2155
        %v2168 = vpack.c.b16 %v2158, %v2157
        %v2169 = vpack.c.b16 %v2160, %v2159
        %v2170 = vpack.c.b16 %v2162, %v2161
        %2179 = vmatprep.subr.bf16.mxu0 0
        %2180 = vmatpush1.bf16.msra.mxu0 %v2163
        %2181 = vmatprep.subr.bf16.mxu0 0
        %2182 = vmatpush1.bf16.msra.mxu0 %v2164
        %2183 = vmatprep.subr.bf16.mxu0 0
        %2184 = vmatpush1.bf16.msra.mxu0 %v2165
        %2185 = vmatprep.subr.bf16.mxu0 0
        %2186 = vmatpush1.bf16.msra.mxu0 %v2166
        %2187 = vmatprep.subr.bf16.mxu0 0
        %2188 = vmatpush1.bf16.msra.mxu0 %v2167
        %2189 = vmatprep.subr.bf16.mxu0 0
        %2190 = vmatpush1.bf16.msra.mxu0 %v2168
        %2191 = vmatprep.subr.bf16.mxu0 0
        %2192 = vmatpush1.bf16.msra.mxu0 %v2169
        %2193 = vmatprep.subr.bf16.mxu0 0
        %2194 = vmatpush1.bf16.msra.mxu0 %v2170
        %2195 = vmatprep.subr.bf16.mxu0 0
        %2196 = vmatpush1.bf16.msra.mxu0 0
        %2197 = vmatprep.subr.bf16.mxu0 0
        %2198 = vmatpush1.bf16.msra.mxu0 0
        %2199 = vmatprep.subr.bf16.mxu0 0
        %2200 = vmatpush1.bf16.msra.mxu0 0
        %2201 = vmatprep.subr.bf16.mxu0 0
        %2202 = vmatpush1.bf16.msra.mxu0 0
        %2203 = vmatprep.subr.bf16.mxu0 0
        %2204 = vmatpush1.bf16.msra.mxu0 0
        %2205 = vmatprep.subr.bf16.mxu0 0
        %2206 = vmatpush1.bf16.msra.mxu0 0
        %2207 = vmatprep.subr.bf16.mxu0 0
        %2208 = vmatpush1.bf16.msra.mxu0 0
        %2209 = vmatprep.subr.bf16.mxu0 0
        %2210 = vmatpush1.bf16.msra.mxu0 0
        %2211 = vmatprep.mubr.bf16.mxu0 0
        %2212 = vmatmul.mubr.bf16.gmra.mrb[0].mxu0 %v2096
        %v2213 = vpop.f32.mrb[0].mxu0
        %v2214 = vadd.f32 %v2129, %v2213
        %v2215 = vpop.f32.mrb[0].mxu0
        %v2216 = vpop.f32.mrb[0].mxu0
        %v2217 = vadd.f32 %v2129, %v2216
        %v2218 = vpop.f32.mrb[0].mxu0
        %2219 = vmatprep.mubr.bf16.mxu0 0
        %2220 = vmatmul.mubr.bf16.gmra.mrb[0].mxu0 %v2097
        %v2221 = vpop.f32.mrb[0].mxu0
        %v2222 = vadd.f32 %v2129, %v2221
        %v2223 = vpop.f32.mrb[0].mxu0
        %v2224 = vpop.f32.mrb[0].mxu0
        %v2225 = vadd.f32 %v2129, %v2224
        %v2226 = vpop.f32.mrb[0].mxu0
        %2227 = vmatprep.mubr.bf16.mxu0 0
        %2228 = vmatmul.mubr.bf16.gmra.mrb[0].mxu0 %v2098
        %v2229 = vpop.f32.mrb[0].mxu0
        %v2230 = vadd.f32 %v2129, %v2229
        %v2231 = vpop.f32.mrb[0].mxu0
        %v2232 = vpop.f32.mrb[0].mxu0
        %v2233 = vadd.f32 %v2129, %v2232
        %v2234 = vpop.f32.mrb[0].mxu0
        %2235 = vmatprep.mubr.bf16.mxu0 0
        %2236 = vmatmul.mubr.bf16.gmra.mrb[0].mxu0 %v2099
        %v2237 = vpop.f32.mrb[0].mxu0
        %v2238 = vadd.f32 %v2129, %v2237
        %v2239 = vpop.f32.mrb[0].mxu0
        %v2240 = vpop.f32.mrb[0].mxu0
        %v2241 = vadd.f32 %v2129, %v2240
        %v2242 = vpop.f32.mrb[0].mxu0
        %2243 = vmatprep.mubr.bf16.mxu0 0
        %2244 = vmatmul.mubr.bf16.gmra.mrb[0].mxu0 %v2100
        %v2245 = vpop.f32.mrb[0].mxu0
        %v2246 = vadd.f32 %v2129, %v2245
        %v2247 = vpop.f32.mrb[0].mxu0
        %v2248 = vpop.f32.mrb[0].mxu0
        %v2249 = vadd.f32 %v2129, %v2248
        %v2250 = vpop.f32.mrb[0].mxu0
        %2251 = vmatprep.mubr.bf16.mxu0 0
        %2252 = vmatmul.mubr.bf16.gmra.mrb[0].mxu0 %v2101
        %v2253 = vpop.f32.mrb[0].mxu0
        %v2254 = vadd.f32 %v2129, %v2253
        %v2255 = vpop.f32.mrb[0].mxu0
        %v2256 = vpop.f32.mrb[0].mxu0
        %v2257 = vadd.f32 %v2129, %v2256
        %v2258 = vpop.f32.mrb[0].mxu0
        %2259 = vmatprep.mubr.bf16.mxu0 0
        %2260 = vmatmul.mubr.bf16.gmra.mrb[0].mxu0 %v2102
        %v2261 = vpop.f32.mrb[0].mxu0
        %v2262 = vadd.f32 %v2129, %v2261
        %v2263 = vpop.f32.mrb[0].mxu0
        %v2264 = vpop.f32.mrb[0].mxu0
        %v2265 = vadd.f32 %v2129, %v2264
        %v2266 = vpop.f32.mrb[0].mxu0
        %2267 = vmatprep.mubr.bf16.mxu0 0
        %2268 = vmatmul.mubr.bf16.gmra.mrb[0].mxu0 %v2103
        %v2269 = vpop.f32.mrb[0].mxu0
        %v2270 = vadd.f32 %v2129, %v2269
        %v2271 = vpop.f32.mrb[0].mxu0
        %v2272 = vpop.f32.mrb[0].mxu0
        %v2273 = vadd.f32 %v2129, %v2272
        %v2274 = vpop.f32.mrb[0].mxu0
        %2275 = vmatprep.mubr.bf16.mxu0 0
        %2276 = vmatmul.mubr.bf16.gmra.mrb[0].mxu0 %v2104
        %v2277 = vpop.f32.mrb[0].mxu0
        %v2278 = vadd.f32 %v2129, %v2277
        %v2279 = vpop.f32.mrb[0].mxu0
        %v2280 = vpop.f32.mrb[0].mxu0
        %v2281 = vadd.f32 %v2129, %v2280
        %v2282 = vpop.f32.mrb[0].mxu0
        %2283 = vmatprep.mubr.bf16.mxu0 0
        %2284 = vmatmul.mubr.bf16.gmra.mrb[0].mxu0 %v2105
        %v2285 = vpop.f32.mrb[0].mxu0
        %v2286 = vadd.f32 %v2129, %v2285
        %v2287 = vpop.f32.mrb[0].mxu0
        %v2288 = vpop.f32.mrb[0].mxu0
        %v2289 = vadd.f32 %v2129, %v2288
        %v2290 = vpop.f32.mrb[0].mxu0
        %2291 = vmatprep.mubr.bf16.mxu0 0
        %2292 = vmatmul.mubr.bf16.gmra.mrb[0].mxu0 %v2106
        %v2293 = vpop.f32.mrb[0].mxu0
        %v2294 = vadd.f32 %v2129, %v2293
        %v2295 = vpop.f32.mrb[0].mxu0
        %v2296 = vpop.f32.mrb[0].mxu0
        %v2297 = vadd.f32 %v2129, %v2296
        %v2298 = vpop.f32.mrb[0].mxu0
        %2299 = vmatprep.mubr.bf16.mxu0 0
        %2300 = vmatmul.mubr.bf16.gmra.mrb[0].mxu0 %v2107
        %v2301 = vpop.f32.mrb[0].mxu0
        %v2302 = vadd.f32 %v2129, %v2301
        %v2303 = vpop.f32.mrb[0].mxu0
        %v2304 = vpop.f32.mrb[0].mxu0
        %v2305 = vadd.f32 %v2129, %v2304
        %v2306 = vpop.f32.mrb[0].mxu0
        %2307 = vdwg.mxu0
        %v2308 = vpack.c.bf16 %v2217, %v2214
        %v2309 = vpack.c.bf16 %v2225, %v2222
        %v2310 = vpack.c.bf16 %v2233, %v2230
        %v2311 = vpack.c.bf16 %v2241, %v2238
        %v2312 = vpack.c.bf16 %v2249, %v2246
        %v2313 = vpack.c.bf16 %v2257, %v2254
        %v2314 = vpack.c.bf16 %v2265, %v2262
        %v2315 = vpack.c.bf16 %v2273, %v2270
        %v2316 = vpack.c.bf16 %v2281, %v2278
        %v2317 = vpack.c.bf16 %v2289, %v2286
        %v2318 = vpack.c.bf16 %v2297, %v2294
        %v2319 = vpack.c.bf16 %v2305, %v2302
        %v2320 = vmul.bf16 %v2308, 1056980736
        %v2321 = vmul.bf16 %v2309, 1056980736
        %v2322 = vmul.bf16 %v2310, 1056980736
        %v2323 = vmul.bf16 %v2311, 1056980736
        %v2324 = vmul.bf16 %v2312, 1056980736
        %v2325 = vmul.bf16 %v2313, 1056980736
        %v2326 = vmul.bf16 %v2314, 1056980736
        %v2327 = vmul.bf16 %v2315, 1056980736
        %v2328 = vmul.bf16 %v2316, 1056980736
        %v2329 = vmul.bf16 %v2317, 1056980736
        %v2330 = vmul.bf16 %v2318, 1056980736
        %v2331 = vmul.bf16 %v2319, 1056980736
        %v2332 = vtanh.bf16.pop %v2320
        %v2333 = vtanh.bf16.pop %v2321
        %v2334 = vtanh.bf16.pop %v2322
        %v2335 = vtanh.bf16.pop %v2323
        %v2336 = vtanh.bf16.pop %v2324
        %v2337 = vtanh.bf16.pop %v2325
        %v2338 = vtanh.bf16.pop %v2326
        %v2339 = vtanh.bf16.pop %v2327
        %v2340 = vtanh.bf16.pop %v2328
        %v2341 = vtanh.bf16.pop %v2329
        %v2342 = vtanh.bf16.pop %v2330
        %v2343 = vtanh.bf16.pop %v2331
        %v2344 = vadd.bf16 %v2332, 1065369472
        %v2345 = vadd.bf16 %v2333, 1065369472
        %v2346 = vadd.bf16 %v2334, 1065369472
        %v2347 = vadd.bf16 %v2335, 1065369472
        %v2348 = vadd.bf16 %v2336, 1065369472
        %v2349 = vadd.bf16 %v2337, 1065369472
        %v2350 = vadd.bf16 %v2338, 1065369472
        %v2351 = vadd.bf16 %v2339, 1065369472
        %v2352 = vadd.bf16 %v2340, 1065369472
        %v2353 = vadd.bf16 %v2341, 1065369472
        %v2354 = vadd.bf16 %v2342, 1065369472
        %v2355 = vadd.bf16 %v2343, 1065369472
        %v2356 = vmul.bf16 %v2344, 1056980736
        %v2357 = vmul.bf16 %v2345, 1056980736
        %v2358 = vmul.bf16 %v2346, 1056980736
        %v2359 = vmul.bf16 %v2347, 1056980736
        %v2360 = vmul.bf16 %v2348, 1056980736
        %v2361 = vmul.bf16 %v2349, 1056980736
        %v2362 = vmul.bf16 %v2350, 1056980736
        %v2363 = vmul.bf16 %v2351, 1056980736
        %v2364 = vmul.bf16 %v2352, 1056980736
        %v2365 = vmul.bf16 %v2353, 1056980736
        %v2366 = vmul.bf16 %v2354, 1056980736
        %v2367 = vmul.bf16 %v2355, 1056980736
        %v2368 = vld [vmem:[#allocation14] sm:$0xff]
        %v2369 = vld [vmem:[#allocation14 + $0x8] sm:$0xff]
        %v2370 = vld [vmem:[#allocation14 + $0x10] sm:$0xff]
        %v2371 = vld [vmem:[#allocation14 + $0x18] sm:$0xff]
        %v2372 = vld [vmem:[#allocation14 + $0x20] sm:$0xff]
        %v2373 = vld [vmem:[#allocation14 + $0x28] sm:$0xff]
        %v2374 = vld [vmem:[#allocation14 + $0x30] sm:$0xff]
        %v2375 = vld [vmem:[#allocation14 + $0x38] sm:$0xff]
        %v2376 = vld [vmem:[#allocation14 + $0x40] sm:$0xff]
        %v2377 = vld [vmem:[#allocation14 + $0x48] sm:$0xff]
        %v2378 = vld [vmem:[#allocation14 + $0x50] sm:$0xff]
        %v2379 = vld [vmem:[#allocation14 + $0x58] sm:$0xff]
        %v2380 = vld [vmem:[#allocation14 + $0x60] sm:$0xff]
        %v2381 = vld [vmem:[#allocation14 + $0x68] sm:$0xff]
        %v2382 = vld [vmem:[#allocation14 + $0x70] sm:$0xff]
        %v2383 = vld [vmem:[#allocation14 + $0x78] sm:$0xff]
        %v2384 = vld [vmem:[#allocation14 + $0x80] sm:$0xff]
        %v2385 = vld [vmem:[#allocation14 + $0x88] sm:$0xff]
        %v2386 = vld [vmem:[#allocation14 + $0x90] sm:$0xff]
        %v2387 = vld [vmem:[#allocation14 + $0x98] sm:$0xff]
        %v2388 = vld [vmem:[#allocation14 + $0xa0] sm:$0xff]
        %v2389 = vld [vmem:[#allocation14 + $0xa8] sm:$0xff]
        %v2390 = vld [vmem:[#allocation14 + $0xb0] sm:$0xff]
        %v2391 = vld [vmem:[#allocation14 + $0xb8] sm:$0xff]
        %v2392 = vld [vmem:[#allocation14 + $0xc0] sm:$0xff]
        %v2393 = vld [vmem:[#allocation14 + $0xc8] sm:$0xff]
        %v2394 = vld [vmem:[#allocation14 + $0xd0] sm:$0xff]
        %v2395 = vld [vmem:[#allocation14 + $0xd8] sm:$0xff]
        %v2396 = vld [vmem:[#allocation14 + $0xe0] sm:$0xff]
        %v2397 = vld [vmem:[#allocation14 + $0xe8] sm:$0xff]
        %v2398 = vld [vmem:[#allocation14 + $0xf0] sm:$0xff]
        %v2399 = vld [vmem:[#allocation14 + $0xf8] sm:$0xff]
        %v2400 = vld [vmem:[#allocation14 + $0x100] sm:$0xff]
        %v2401 = vld [vmem:[#allocation14 + $0x108] sm:$0xff]
        %v2402 = vld [vmem:[#allocation14 + $0x110] sm:$0xff]
        %v2403 = vld [vmem:[#allocation14 + $0x118] sm:$0xff]
        %v2404 = vld [vmem:[#allocation14 + $0x120] sm:$0xff]
        %v2405 = vld [vmem:[#allocation14 + $0x128] sm:$0xff]
        %v2406 = vld [vmem:[#allocation14 + $0x130] sm:$0xff]
        %v2407 = vld [vmem:[#allocation14 + $0x138] sm:$0xff]
        %v2408 = vld [vmem:[#allocation14 + $0x140] sm:$0xff]
        %v2409 = vld [vmem:[#allocation14 + $0x148] sm:$0xff]
        %v2410 = vld [vmem:[#allocation14 + $0x150] sm:$0xff]
        %v2411 = vld [vmem:[#allocation14 + $0x158] sm:$0xff]
        %v2412 = vld [vmem:[#allocation14 + $0x160] sm:$0xff]
        %v2413 = vld [vmem:[#allocation14 + $0x168] sm:$0xff]
        %v2414 = vld [vmem:[#allocation14 + $0x170] sm:$0xff]
        %v2415 = vld [vmem:[#allocation14 + $0x178] sm:$0xff]
        %v2416 = vld [vmem:[#allocation14 + $0x180] sm:$0xff]
        %v2417 = vld [vmem:[#allocation14 + $0x188] sm:$0xff]
        %v2418 = vld [vmem:[#allocation14 + $0x190] sm:$0xff]
        %v2419 = vld [vmem:[#allocation14 + $0x198] sm:$0xff]
        %v2420 = vld [vmem:[#allocation14 + $0x1a0] sm:$0xff]
        %v2421 = vld [vmem:[#allocation14 + $0x1a8] sm:$0xff]
        %v2422 = vld [vmem:[#allocation14 + $0x1b0] sm:$0xff]
        %v2423 = vld [vmem:[#allocation14 + $0x1b8] sm:$0xff]
        %v2424 = vld [vmem:[#allocation14 + $0x1c0] sm:$0xff]
        %v2425 = vld [vmem:[#allocation14 + $0x1c8] sm:$0xff]
        %v2426 = vld [vmem:[#allocation14 + $0x1d0] sm:$0xff]
        %v2427 = vld [vmem:[#allocation14 + $0x1d8] sm:$0xff]
        %v2428 = vld [vmem:[#allocation14 + $0x1e0] sm:$0xff]
        %v2429 = vld [vmem:[#allocation14 + $0x1e8] sm:$0xff]
        %v2430 = vld [vmem:[#allocation14 + $0x1f0] sm:$0xff]
        %v2431 = vld [vmem:[#allocation14 + $0x1f8] sm:$0xff]
        %v2432 = vld [vmem:[#allocation16] sm:$0xff]
        %v2434 = vlaneseq
        %v2435 = vshrl.u32 %v2434, 7
        %v2436 = vsub.s32 0, %v2435
        %v2437 = vrot.slane %v2432, %v2436
        %v2438 = vlaneseq
        %v2439 = vshrl.u32 %v2438, 7
        %v2440 = vsub.s32 1, %v2439
        %v2441 = vrot.slane %v2432, %v2440
        %v2442 = vlaneseq
        %v2443 = vshrl.u32 %v2442, 7
        %v2444 = vsub.s32 2, %v2443
        %v2445 = vrot.slane %v2432, %v2444
        %v2446 = vlaneseq
        %v2447 = vshrl.u32 %v2446, 7
        %v2448 = vsub.s32 3, %v2447
        %v2449 = vrot.slane %v2432, %v2448
        %v2450 = vlaneseq
        %v2451 = vshrl.u32 %v2450, 7
        %v2452 = vsub.s32 4, %v2451
        %v2453 = vrot.slane %v2432, %v2452
        %v2454 = vlaneseq
        %v2455 = vshrl.u32 %v2454, 7
        %v2456 = vsub.s32 5, %v2455
        %v2457 = vrot.slane %v2432, %v2456
        %v2458 = vlaneseq
        %v2459 = vshrl.u32 %v2458, 7
        %v2460 = vsub.s32 6, %v2459
        %v2461 = vrot.slane %v2432, %v2460
        %v2462 = vlaneseq
        %v2463 = vshrl.u32 %v2462, 7
        %v2464 = vsub.s32 7, %v2463
        %v2465 = vrot.slane %v2432, %v2464
        %v2538 = vunpack.c.l.b16 %v2368
        %v2539 = vunpack.c.h.b16 %v2368
        %v2540 = vunpack.c.l.b16 %v2369
        %v2541 = vunpack.c.h.b16 %v2369
        %v2542 = vunpack.c.l.b16 %v2370
        %v2543 = vunpack.c.h.b16 %v2370
        %v2544 = vunpack.c.l.b16 %v2371
        %v2545 = vunpack.c.h.b16 %v2371
        %v2546 = vunpack.c.l.b16 %v2372
        %v2547 = vunpack.c.h.b16 %v2372
        %v2548 = vunpack.c.l.b16 %v2373
        %v2549 = vunpack.c.h.b16 %v2373
        %v2550 = vunpack.c.l.b16 %v2374
        %v2551 = vunpack.c.h.b16 %v2374
        %v2552 = vunpack.c.l.b16 %v2375
        %v2553 = vunpack.c.h.b16 %v2375
        %v2554 = vunpack.c.l.b16 %v2376
        %v2555 = vunpack.c.h.b16 %v2376
        %v2556 = vunpack.c.l.b16 %v2377
        %v2557 = vunpack.c.h.b16 %v2377
        %v2558 = vunpack.c.l.b16 %v2378
        %v2559 = vunpack.c.h.b16 %v2378
        %v2560 = vunpack.c.l.b16 %v2379
        %v2561 = vunpack.c.h.b16 %v2379
        %v2562 = vunpack.c.l.b16 %v2380
        %v2563 = vunpack.c.h.b16 %v2380
        %v2564 = vunpack.c.l.b16 %v2381
        %v2565 = vunpack.c.h.b16 %v2381
        %v2566 = vunpack.c.l.b16 %v2382
        %v2567 = vunpack.c.h.b16 %v2382
        %v2568 = vunpack.c.l.b16 %v2383
        %v2569 = vunpack.c.h.b16 %v2383
        %v2570 = vunpack.c.l.b16 %v2384
        %v2571 = vunpack.c.h.b16 %v2384
        %v2572 = vunpack.c.l.b16 %v2385
        %v2573 = vunpack.c.h.b16 %v2385
        %v2574 = vunpack.c.l.b16 %v2386
        %v2575 = vunpack.c.h.b16 %v2386
        %v2576 = vunpack.c.l.b16 %v2387
        %v2577 = vunpack.c.h.b16 %v2387
        %v2578 = vunpack.c.l.b16 %v2388
        %v2579 = vunpack.c.h.b16 %v2388
        %v2580 = vunpack.c.l.b16 %v2389
        %v2581 = vunpack.c.h.b16 %v2389
        %v2582 = vunpack.c.l.b16 %v2390
        %v2583 = vunpack.c.h.b16 %v2390
        %v2584 = vunpack.c.l.b16 %v2391
        %v2585 = vunpack.c.h.b16 %v2391
        %v2586 = vunpack.c.l.b16 %v2392
        %v2587 = vunpack.c.h.b16 %v2392
        %v2588 = vunpack.c.l.b16 %v2393
        %v2589 = vunpack.c.h.b16 %v2393
        %v2590 = vunpack.c.l.b16 %v2394
        %v2591 = vunpack.c.h.b16 %v2394
        %v2592 = vunpack.c.l.b16 %v2395
        %v2593 = vunpack.c.h.b16 %v2395
        %v2594 = vunpack.c.l.b16 %v2396
        %v2595 = vunpack.c.h.b16 %v2396
        %v2596 = vunpack.c.l.b16 %v2397
        %v2597 = vunpack.c.h.b16 %v2397
        %v2598 = vunpack.c.l.b16 %v2398
        %v2599 = vunpack.c.h.b16 %v2398
        %v2600 = vunpack.c.l.b16 %v2399
        %v2601 = vunpack.c.h.b16 %v2399
        %v2602 = vunpack.c.l.b16 %v2400
        %v2603 = vunpack.c.h.b16 %v2400
        %v2604 = vunpack.c.l.b16 %v2401
        %v2605 = vunpack.c.h.b16 %v2401
        %v2606 = vunpack.c.l.b16 %v2402
        %v2607 = vunpack.c.h.b16 %v2402
        %v2608 = vunpack.c.l.b16 %v2403
        %v2609 = vunpack.c.h.b16 %v2403
        %v2610 = vunpack.c.l.b16 %v2404
        %v2611 = vunpack.c.h.b16 %v2404
        %v2612 = vunpack.c.l.b16 %v2405
        %v2613 = vunpack.c.h.b16 %v2405
        %v2614 = vunpack.c.l.b16 %v2406
        %v2615 = vunpack.c.h.b16 %v2406
        %v2616 = vunpack.c.l.b16 %v2407
        %v2617 = vunpack.c.h.b16 %v2407
        %v2618 = vunpack.c.l.b16 %v2408
        %v2619 = vunpack.c.h.b16 %v2408
        %v2620 = vunpack.c.l.b16 %v2409
        %v2621 = vunpack.c.h.b16 %v2409
        %v2622 = vunpack.c.l.b16 %v2410
        %v2623 = vunpack.c.h.b16 %v2410
        %v2624 = vunpack.c.l.b16 %v2411
        %v2625 = vunpack.c.h.b16 %v2411
        %v2626 = vunpack.c.l.b16 %v2412
        %v2627 = vunpack.c.h.b16 %v2412
        %v2628 = vunpack.c.l.b16 %v2413
        %v2629 = vunpack.c.h.b16 %v2413
        %v2630 = vunpack.c.l.b16 %v2414
        %v2631 = vunpack.c.h.b16 %v2414
        %v2632 = vunpack.c.l.b16 %v2415
        %v2633 = vunpack.c.h.b16 %v2415
        %v2634 = vunpack.c.l.b16 %v2416
        %v2635 = vunpack.c.h.b16 %v2416
        %v2636 = vunpack.c.l.b16 %v2417
        %v2637 = vunpack.c.h.b16 %v2417
        %v2638 = vunpack.c.l.b16 %v2418
        %v2639 = vunpack.c.h.b16 %v2418
        %v2640 = vunpack.c.l.b16 %v2419
        %v2641 = vunpack.c.h.b16 %v2419
        %v2642 = vunpack.c.l.b16 %v2420
        %v2643 = vunpack.c.h.b16 %v2420
        %v2644 = vunpack.c.l.b16 %v2421
        %v2645 = vunpack.c.h.b16 %v2421
        %v2646 = vunpack.c.l.b16 %v2422
        %v2647 = vunpack.c.h.b16 %v2422
        %v2648 = vunpack.c.l.b16 %v2423
        %v2649 = vunpack.c.h.b16 %v2423
        %v2650 = vunpack.c.l.b16 %v2424
        %v2651 = vunpack.c.h.b16 %v2424
        %v2652 = vunpack.c.l.b16 %v2425
        %v2653 = vunpack.c.h.b16 %v2425
        %v2654 = vunpack.c.l.b16 %v2426
        %v2655 = vunpack.c.h.b16 %v2426
        %v2656 = vunpack.c.l.b16 %v2427
        %v2657 = vunpack.c.h.b16 %v2427
        %v2658 = vunpack.c.l.b16 %v2428
        %v2659 = vunpack.c.h.b16 %v2428
        %v2660 = vunpack.c.l.b16 %v2429
        %v2661 = vunpack.c.h.b16 %v2429
        %v2662 = vunpack.c.l.b16 %v2430
        %v2663 = vunpack.c.h.b16 %v2430
        %v2664 = vunpack.c.l.b16 %v2431
        %v2665 = vunpack.c.h.b16 %v2431
        %v2666 = vpack.c.b16 %v2546, %v2538
        %v2667 = vpack.c.b16 %v2547, %v2539
        %v2668 = vpack.c.b16 %v2548, %v2540
        %v2669 = vpack.c.b16 %v2549, %v2541
        %v2670 = vpack.c.b16 %v2550, %v2542
        %v2671 = vpack.c.b16 %v2551, %v2543
        %v2672 = vpack.c.b16 %v2552, %v2544
        %v2673 = vpack.c.b16 %v2553, %v2545
        %v2674 = vpack.c.b16 %v2562, %v2554
        %v2675 = vpack.c.b16 %v2563, %v2555
        %v2676 = vpack.c.b16 %v2564, %v2556
        %v2677 = vpack.c.b16 %v2565, %v2557
        %v2678 = vpack.c.b16 %v2566, %v2558
        %v2679 = vpack.c.b16 %v2567, %v2559
        %v2680 = vpack.c.b16 %v2568, %v2560
        %v2681 = vpack.c.b16 %v2569, %v2561
        %v2682 = vpack.c.b16 %v2578, %v2570
        %v2683 = vpack.c.b16 %v2579, %v2571
        %v2684 = vpack.c.b16 %v2580, %v2572
        %v2685 = vpack.c.b16 %v2581, %v2573
        %v2686 = vpack.c.b16 %v2582, %v2574
        %v2687 = vpack.c.b16 %v2583, %v2575
        %v2688 = vpack.c.b16 %v2584, %v2576
        %v2689 = vpack.c.b16 %v2585, %v2577
        %v2690 = vpack.c.b16 %v2594, %v2586
        %v2691 = vpack.c.b16 %v2595, %v2587
        %v2692 = vpack.c.b16 %v2596, %v2588
        %v2693 = vpack.c.b16 %v2597, %v2589
        %v2694 = vpack.c.b16 %v2598, %v2590
        %v2695 = vpack.c.b16 %v2599, %v2591
        %v2696 = vpack.c.b16 %v2600, %v2592
        %v2697 = vpack.c.b16 %v2601, %v2593
        %v2698 = vpack.c.b16 %v2610, %v2602
        %v2699 = vpack.c.b16 %v2611, %v2603
        %v2700 = vpack.c.b16 %v2612, %v2604
        %v2701 = vpack.c.b16 %v2613, %v2605
        %v2702 = vpack.c.b16 %v2614, %v2606
        %v2703 = vpack.c.b16 %v2615, %v2607
        %v2704 = vpack.c.b16 %v2616, %v2608
        %v2705 = vpack.c.b16 %v2617, %v2609
        %v2706 = vpack.c.b16 %v2626, %v2618
        %v2707 = vpack.c.b16 %v2627, %v2619
        %v2708 = vpack.c.b16 %v2628, %v2620
        %v2709 = vpack.c.b16 %v2629, %v2621
        %v2710 = vpack.c.b16 %v2630, %v2622
        %v2711 = vpack.c.b16 %v2631, %v2623
        %v2712 = vpack.c.b16 %v2632, %v2624
        %v2713 = vpack.c.b16 %v2633, %v2625
        %v2714 = vpack.c.b16 %v2642, %v2634
        %v2715 = vpack.c.b16 %v2643, %v2635
        %v2716 = vpack.c.b16 %v2644, %v2636
        %v2717 = vpack.c.b16 %v2645, %v2637
        %v2718 = vpack.c.b16 %v2646, %v2638
        %v2719 = vpack.c.b16 %v2647, %v2639
        %v2720 = vpack.c.b16 %v2648, %v2640
        %v2721 = vpack.c.b16 %v2649, %v2641
        %v2722 = vpack.c.b16 %v2658, %v2650
        %v2723 = vpack.c.b16 %v2659, %v2651
        %v2724 = vpack.c.b16 %v2660, %v2652
        %v2725 = vpack.c.b16 %v2661, %v2653
        %v2726 = vpack.c.b16 %v2662, %v2654
        %v2727 = vpack.c.b16 %v2663, %v2655
        %v2728 = vpack.c.b16 %v2664, %v2656
        %v2729 = vpack.c.b16 %v2665, %v2657
        %2794 = vmatprep.subr.bf16.mxu0 %v2667
        %2795 = vmatpush1.bf16.msra.mxu0 %v2666
        %2796 = vmatprep.subr.bf16.mxu0 %v2675
        %2797 = vmatpush1.bf16.msra.mxu0 %v2674
        %2798 = vmatprep.subr.bf16.mxu0 %v2683
        %2799 = vmatpush1.bf16.msra.mxu0 %v2682
        %2800 = vmatprep.subr.bf16.mxu0 %v2691
        %2801 = vmatpush1.bf16.msra.mxu0 %v2690
        %2802 = vmatprep.subr.bf16.mxu0 %v2699
        %2803 = vmatpush1.bf16.msra.mxu0 %v2698
        %2804 = vmatprep.subr.bf16.mxu0 %v2707
        %2805 = vmatpush1.bf16.msra.mxu0 %v2706
        %2806 = vmatprep.subr.bf16.mxu0 %v2715
        %2807 = vmatpush1.bf16.msra.mxu0 %v2714
        %2808 = vmatprep.subr.bf16.mxu0 %v2723
        %2809 = vmatpush1.bf16.msra.mxu0 %v2722
        %2810 = vmatprep.subr.bf16.mxu0 0
        %2811 = vmatpush1.bf16.msra.mxu0 0
        %2812 = vmatprep.subr.bf16.mxu0 0
        %2813 = vmatpush1.bf16.msra.mxu0 0
        %2814 = vmatprep.subr.bf16.mxu0 0
        %2815 = vmatpush1.bf16.msra.mxu0 0
        %2816 = vmatprep.subr.bf16.mxu0 0
        %2817 = vmatpush1.bf16.msra.mxu0 0
        %2818 = vmatprep.subr.bf16.mxu0 0
        %2819 = vmatpush1.bf16.msra.mxu0 0
        %2820 = vmatprep.subr.bf16.mxu0 0
        %2821 = vmatpush1.bf16.msra.mxu0 0
        %2822 = vmatprep.subr.bf16.mxu0 0
        %2823 = vmatpush1.bf16.msra.mxu0 0
        %2824 = vmatprep.subr.bf16.mxu0 0
        %2825 = vmatpush1.bf16.msra.mxu0 0
        %2826 = vmatprep.mubr.bf16.mxu0 0
        %2827 = vmatmul.mubr.bf16.gmra.mrb[0].mxu0 %v2356
        %v2828 = vpop.f32.mrb[0].mxu0
        %v2829 = vadd.f32 %v2437, %v2828
        %v2830 = vpop.f32.mrb[0].mxu0
        %v2831 = vadd.f32 %v2441, %v2830
        %v2832 = vpop.f32.mrb[0].mxu0
        %v2833 = vadd.f32 %v2437, %v2832
        %v2834 = vpop.f32.mrb[0].mxu0
        %v2835 = vadd.f32 %v2441, %v2834
        %2836 = vmatprep.mubr.bf16.mxu0 0
        %2837 = vmatmul.mubr.bf16.gmra.mrb[0].mxu0 %v2357
        %v2838 = vpop.f32.mrb[0].mxu0
        %v2839 = vadd.f32 %v2437, %v2838
        %v2840 = vpop.f32.mrb[0].mxu0
        %v2841 = vadd.f32 %v2441, %v2840
        %v2842 = vpop.f32.mrb[0].mxu0
        %v2843 = vadd.f32 %v2437, %v2842
        %v2844 = vpop.f32.mrb[0].mxu0
        %v2845 = vadd.f32 %v2441, %v2844
        %2846 = vmatprep.mubr.bf16.mxu0 0
        %2847 = vmatmul.mubr.bf16.gmra.mrb[0].mxu0 %v2358
        %v2848 = vpop.f32.mrb[0].mxu0
        %v2849 = vadd.f32 %v2437, %v2848
        %v2850 = vpop.f32.mrb[0].mxu0
        %v2851 = vadd.f32 %v2441, %v2850
        %v2852 = vpop.f32.mrb[0].mxu0
        %v2853 = vadd.f32 %v2437, %v2852
        %v2854 = vpop.f32.mrb[0].mxu0
        %v2855 = vadd.f32 %v2441, %v2854
        %2856 = vmatprep.mubr.bf16.mxu0 0
        %2857 = vmatmul.mubr.bf16.gmra.mrb[0].mxu0 %v2359
        %v2858 = vpop.f32.mrb[0].mxu0
        %v2859 = vadd.f32 %v2437, %v2858
        %v2860 = vpop.f32.mrb[0].mxu0
        %v2861 = vadd.f32 %v2441, %v2860
        %v2862 = vpop.f32.mrb[0].mxu0
        %v2863 = vadd.f32 %v2437, %v2862
        %v2864 = vpop.f32.mrb[0].mxu0
        %v2865 = vadd.f32 %v2441, %v2864
        %2866 = vmatprep.mubr.bf16.mxu0 0
        %2867 = vmatmul.mubr.bf16.gmra.mrb[0].mxu0 %v2360
        %v2868 = vpop.f32.mrb[0].mxu0
        %v2869 = vadd.f32 %v2437, %v2868
        %v2870 = vpop.f32.mrb[0].mxu0
        %v2871 = vadd.f32 %v2441, %v2870
        %v2872 = vpop.f32.mrb[0].mxu0
        %v2873 = vadd.f32 %v2437, %v2872
        %v2874 = vpop.f32.mrb[0].mxu0
        %v2875 = vadd.f32 %v2441, %v2874
        %2876 = vmatprep.mubr.bf16.mxu0 0
        %2877 = vmatmul.mubr.bf16.gmra.mrb[0].mxu0 %v2361
        %v2878 = vpop.f32.mrb[0].mxu0
        %v2879 = vadd.f32 %v2437, %v2878
        %v2880 = vpop.f32.mrb[0].mxu0
        %v2881 = vadd.f32 %v2441, %v2880
        %v2882 = vpop.f32.mrb[0].mxu0
        %v2883 = vadd.f32 %v2437, %v2882
        %v2884 = vpop.f32.mrb[0].mxu0
        %v2885 = vadd.f32 %v2441, %v2884
        %2886 = vmatprep.mubr.bf16.mxu0 0
        %2887 = vmatmul.mubr.bf16.gmra.mrb[0].mxu0 %v2362
        %v2888 = vpop.f32.mrb[0].mxu0
        %v2889 = vadd.f32 %v2437, %v2888
        %v2890 = vpop.f32.mrb[0].mxu0
        %v2891 = vadd.f32 %v2441, %v2890
        %v2892 = vpop.f32.mrb[0].mxu0
        %v2893 = vadd.f32 %v2437, %v2892
        %v2894 = vpop.f32.mrb[0].mxu0
        %v2895 = vadd.f32 %v2441, %v2894
        %2896 = vmatprep.mubr.bf16.mxu0 0
        %2897 = vmatmul.mubr.bf16.gmra.mrb[0].mxu0 %v2363
        %v2898 = vpop.f32.mrb[0].mxu0
        %v2899 = vadd.f32 %v2437, %v2898
        %v2900 = vpop.f32.mrb[0].mxu0
        %v2901 = vadd.f32 %v2441, %v2900
        %v2902 = vpop.f32.mrb[0].mxu0
        %v2903 = vadd.f32 %v2437, %v2902
        %v2904 = vpop.f32.mrb[0].mxu0
        %v2905 = vadd.f32 %v2441, %v2904
        %2906 = vmatprep.mubr.bf16.mxu0 0
        %2907 = vmatmul.mubr.bf16.gmra.mrb[0].mxu0 %v2364
        %v2908 = vpop.f32.mrb[0].mxu0
        %v2909 = vadd.f32 %v2437, %v2908
        %v2910 = vpop.f32.mrb[0].mxu0
        %v2911 = vadd.f32 %v2441, %v2910
        %v2912 = vpop.f32.mrb[0].mxu0
        %v2913 = vadd.f32 %v2437, %v2912
        %v2914 = vpop.f32.mrb[0].mxu0
        %v2915 = vadd.f32 %v2441, %v2914
        %2916 = vmatprep.mubr.bf16.mxu0 0
        %2917 = vmatmul.mubr.bf16.gmra.mrb[0].mxu0 %v2365
        %v2918 = vpop.f32.mrb[0].mxu0
        %v2919 = vadd.f32 %v2437, %v2918
        %v2920 = vpop.f32.mrb[0].mxu0
        %v2921 = vadd.f32 %v2441, %v2920
        %v2922 = vpop.f32.mrb[0].mxu0
        %v2923 = vadd.f32 %v2437, %v2922
        %v2924 = vpop.f32.mrb[0].mxu0
        %v2925 = vadd.f32 %v2441, %v2924
        %2926 = vmatprep.mubr.bf16.mxu0 0
        %2927 = vmatmul.mubr.bf16.gmra.mrb[0].mxu0 %v2366
        %v2928 = vpop.f32.mrb[0].mxu0
        %v2929 = vadd.f32 %v2437, %v2928
        %v2930 = vpop.f32.mrb[0].mxu0
        %v2931 = vadd.f32 %v2441, %v2930
        %v2932 = vpop.f32.mrb[0].mxu0
        %v2933 = vadd.f32 %v2437, %v2932
        %v2934 = vpop.f32.mrb[0].mxu0
        %v2935 = vadd.f32 %v2441, %v2934
        %2936 = vmatprep.mubr.bf16.mxu0 0
        %2937 = vmatmul.mubr.bf16.gmra.mrb[0].mxu0 %v2367
        %v2938 = vpop.f32.mrb[0].mxu0
        %v2939 = vadd.f32 %v2437, %v2938
        %v2940 = vpop.f32.mrb[0].mxu0
        %v2941 = vadd.f32 %v2441, %v2940
        %v2942 = vpop.f32.mrb[0].mxu0
        %v2943 = vadd.f32 %v2437, %v2942
        %v2944 = vpop.f32.mrb[0].mxu0
        %v2945 = vadd.f32 %v2441, %v2944
        %2946 = vdwg.mxu0
        %2947 = vmatprep.subr.bf16.mxu0 %v2669
        %2948 = vmatpush1.bf16.msra.mxu0 %v2668
        %2949 = vmatprep.subr.bf16.mxu0 %v2677
        %2950 = vmatpush1.bf16.msra.mxu0 %v2676
        %2951 = vmatprep.subr.bf16.mxu0 %v2685
        %2952 = vmatpush1.bf16.msra.mxu0 %v2684
        %2953 = vmatprep.subr.bf16.mxu0 %v2693
        %2954 = vmatpush1.bf16.msra.mxu0 %v2692
        %2955 = vmatprep.subr.bf16.mxu0 %v2701
        %2956 = vmatpush1.bf16.msra.mxu0 %v2700
        %2957 = vmatprep.subr.bf16.mxu0 %v2709
        %2958 = vmatpush1.bf16.msra.mxu0 %v2708
        %2959 = vmatprep.subr.bf16.mxu0 %v2717
        %2960 = vmatpush1.bf16.msra.mxu0 %v2716
        %2961 = vmatprep.subr.bf16.mxu0 %v2725
        %2962 = vmatpush1.bf16.msra.mxu0 %v2724
        %2963 = vmatprep.subr.bf16.mxu0 0
        %2964 = vmatpush1.bf16.msra.mxu0 0
        %2965 = vmatprep.subr.bf16.mxu0 0
        %2966 = vmatpush1.bf16.msra.mxu0 0
        %2967 = vmatprep.subr.bf16.mxu0 0
        %2968 = vmatpush1.bf16.msra.mxu0 0
        %2969 = vmatprep.subr.bf16.mxu0 0
        %2970 = vmatpush1.bf16.msra.mxu0 0
        %2971 = vmatprep.subr.bf16.mxu0 0
        %2972 = vmatpush1.bf16.msra.mxu0 0
        %2973 = vmatprep.subr.bf16.mxu0 0
        %2974 = vmatpush1.bf16.msra.mxu0 0
        %2975 = vmatprep.subr.bf16.mxu0 0
        %2976 = vmatpush1.bf16.msra.mxu0 0
        %2977 = vmatprep.subr.bf16.mxu0 0
        %2978 = vmatpush1.bf16.msra.mxu0 0
        %2979 = vmatprep.mubr.bf16.mxu0 0
        %2980 = vmatmul.mubr.bf16.gmra.mrb[0].mxu0 %v2356
        %v2981 = vpop.f32.mrb[0].mxu0
        %v2982 = vadd.f32 %v2445, %v2981
        %v2983 = vpop.f32.mrb[0].mxu0
        %v2984 = vadd.f32 %v2449, %v2983
        %v2985 = vpop.f32.mrb[0].mxu0
        %v2986 = vadd.f32 %v2445, %v2985
        %v2987 = vpop.f32.mrb[0].mxu0
        %v2988 = vadd.f32 %v2449, %v2987
        %2989 = vmatprep.mubr.bf16.mxu0 0
        %2990 = vmatmul.mubr.bf16.gmra.mrb[0].mxu0 %v2357
        %v2991 = vpop.f32.mrb[0].mxu0
        %v2992 = vadd.f32 %v2445, %v2991
        %v2993 = vpop.f32.mrb[0].mxu0
        %v2994 = vadd.f32 %v2449, %v2993
        %v2995 = vpop.f32.mrb[0].mxu0
        %v2996 = vadd.f32 %v2445, %v2995
        %v2997 = vpop.f32.mrb[0].mxu0
        %v2998 = vadd.f32 %v2449, %v2997
        %2999 = vmatprep.mubr.bf16.mxu0 0
        %3000 = vmatmul.mubr.bf16.gmra.mrb[0].mxu0 %v2358
        %v3001 = vpop.f32.mrb[0].mxu0
        %v3002 = vadd.f32 %v2445, %v3001
        %v3003 = vpop.f32.mrb[0].mxu0
        %v3004 = vadd.f32 %v2449, %v3003
        %v3005 = vpop.f32.mrb[0].mxu0
        %v3006 = vadd.f32 %v2445, %v3005
        %v3007 = vpop.f32.mrb[0].mxu0
        %v3008 = vadd.f32 %v2449, %v3007
        %3009 = vmatprep.mubr.bf16.mxu0 0
        %3010 = vmatmul.mubr.bf16.gmra.mrb[0].mxu0 %v2359
        %v3011 = vpop.f32.mrb[0].mxu0
        %v3012 = vadd.f32 %v2445, %v3011
        %v3013 = vpop.f32.mrb[0].mxu0
        %v3014 = vadd.f32 %v2449, %v3013
        %v3015 = vpop.f32.mrb[0].mxu0
        %v3016 = vadd.f32 %v2445, %v3015
        %v3017 = vpop.f32.mrb[0].mxu0
        %v3018 = vadd.f32 %v2449, %v3017
        %3019 = vmatprep.mubr.bf16.mxu0 0
        %3020 = vmatmul.mubr.bf16.gmra.mrb[0].mxu0 %v2360
        %v3021 = vpop.f32.mrb[0].mxu0
        %v3022 = vadd.f32 %v2445, %v3021
        %v3023 = vpop.f32.mrb[0].mxu0
        %v3024 = vadd.f32 %v2449, %v3023
        %v3025 = vpop.f32.mrb[0].mxu0
        %v3026 = vadd.f32 %v2445, %v3025
        %v3027 = vpop.f32.mrb[0].mxu0
        %v3028 = vadd.f32 %v2449, %v3027
        %3029 = vmatprep.mubr.bf16.mxu0 0
        %3030 = vmatmul.mubr.bf16.gmra.mrb[0].mxu0 %v2361
        %v3031 = vpop.f32.mrb[0].mxu0
        %v3032 = vadd.f32 %v2445, %v3031
        %v3033 = vpop.f32.mrb[0].mxu0
        %v3034 = vadd.f32 %v2449, %v3033
        %v3035 = vpop.f32.mrb[0].mxu0
        %v3036 = vadd.f32 %v2445, %v3035
        %v3037 = vpop.f32.mrb[0].mxu0
        %v3038 = vadd.f32 %v2449, %v3037
        %3039 = vmatprep.mubr.bf16.mxu0 0
        %3040 = vmatmul.mubr.bf16.gmra.mrb[0].mxu0 %v2362
        %v3041 = vpop.f32.mrb[0].mxu0
        %v3042 = vadd.f32 %v2445, %v3041
        %v3043 = vpop.f32.mrb[0].mxu0
        %v3044 = vadd.f32 %v2449, %v3043
        %v3045 = vpop.f32.mrb[0].mxu0
        %v3046 = vadd.f32 %v2445, %v3045
        %v3047 = vpop.f32.mrb[0].mxu0
        %v3048 = vadd.f32 %v2449, %v3047
        %3049 = vmatprep.mubr.bf16.mxu0 0
        %3050 = vmatmul.mubr.bf16.gmra.mrb[0].mxu0 %v2363
        %v3051 = vpop.f32.mrb[0].mxu0
        %v3052 = vadd.f32 %v2445, %v3051
        %v3053 = vpop.f32.mrb[0].mxu0
        %v3054 = vadd.f32 %v2449, %v3053
        %v3055 = vpop.f32.mrb[0].mxu0
        %v3056 = vadd.f32 %v2445, %v3055
        %v3057 = vpop.f32.mrb[0].mxu0
        %v3058 = vadd.f32 %v2449, %v3057
        %3059 = vmatprep.mubr.bf16.mxu0 0
        %3060 = vmatmul.mubr.bf16.gmra.mrb[0].mxu0 %v2364
        %v3061 = vpop.f32.mrb[0].mxu0
        %v3062 = vadd.f32 %v2445, %v3061
        %v3063 = vpop.f32.mrb[0].mxu0
        %v3064 = vadd.f32 %v2449, %v3063
        %v3065 = vpop.f32.mrb[0].mxu0
        %v3066 = vadd.f32 %v2445, %v3065
        %v3067 = vpop.f32.mrb[0].mxu0
        %v3068 = vadd.f32 %v2449, %v3067
        %3069 = vmatprep.mubr.bf16.mxu0 0
        %3070 = vmatmul.mubr.bf16.gmra.mrb[0].mxu0 %v2365
        %v3071 = vpop.f32.mrb[0].mxu0
        %v3072 = vadd.f32 %v2445, %v3071
        %v3073 = vpop.f32.mrb[0].mxu0
        %v3074 = vadd.f32 %v2449, %v3073
        %v3075 = vpop.f32.mrb[0].mxu0
        %v3076 = vadd.f32 %v2445, %v3075
        %v3077 = vpop.f32.mrb[0].mxu0
        %v3078 = vadd.f32 %v2449, %v3077
        %3079 = vmatprep.mubr.bf16.mxu0 0
        %3080 = vmatmul.mubr.bf16.gmra.mrb[0].mxu0 %v2366
        %v3081 = vpop.f32.mrb[0].mxu0
        %v3082 = vadd.f32 %v2445, %v3081
        %v3083 = vpop.f32.mrb[0].mxu0
        %v3084 = vadd.f32 %v2449, %v3083
        %v3085 = vpop.f32.mrb[0].mxu0
        %v3086 = vadd.f32 %v2445, %v3085
        %v3087 = vpop.f32.mrb[0].mxu0
        %v3088 = vadd.f32 %v2449, %v3087
        %3089 = vmatprep.mubr.bf16.mxu0 0
        %3090 = vmatmul.mubr.bf16.gmra.mrb[0].mxu0 %v2367
        %v3091 = vpop.f32.mrb[0].mxu0
        %v3092 = vadd.f32 %v2445, %v3091
        %v3093 = vpop.f32.mrb[0].mxu0
        %v3094 = vadd.f32 %v2449, %v3093
        %v3095 = vpop.f32.mrb[0].mxu0
        %v3096 = vadd.f32 %v2445, %v3095
        %v3097 = vpop.f32.mrb[0].mxu0
        %v3098 = vadd.f32 %v2449, %v3097
        %3099 = vdwg.mxu0
        %3100 = vmatprep.subr.bf16.mxu0 %v2671
        %3101 = vmatpush1.bf16.msra.mxu0 %v2670
        %3102 = vmatprep.subr.bf16.mxu0 %v2679
        %3103 = vmatpush1.bf16.msra.mxu0 %v2678
        %3104 = vmatprep.subr.bf16.mxu0 %v2687
        %3105 = vmatpush1.bf16.msra.mxu0 %v2686
        %3106 = vmatprep.subr.bf16.mxu0 %v2695
        %3107 = vmatpush1.bf16.msra.mxu0 %v2694
        %3108 = vmatprep.subr.bf16.mxu0 %v2703
        %3109 = vmatpush1.bf16.msra.mxu0 %v2702
        %3110 = vmatprep.subr.bf16.mxu0 %v2711
        %3111 = vmatpush1.bf16.msra.mxu0 %v2710
        %3112 = vmatprep.subr.bf16.mxu0 %v2719
        %3113 = vmatpush1.bf16.msra.mxu0 %v2718
        %3114 = vmatprep.subr.bf16.mxu0 %v2727
        %3115 = vmatpush1.bf16.msra.mxu0 %v2726
        %3116 = vmatprep.subr.bf16.mxu0 0
        %3117 = vmatpush1.bf16.msra.mxu0 0
        %3118 = vmatprep.subr.bf16.mxu0 0
        %3119 = vmatpush1.bf16.msra.mxu0 0
        %3120 = vmatprep.subr.bf16.mxu0 0
        %3121 = vmatpush1.bf16.msra.mxu0 0
        %3122 = vmatprep.subr.bf16.mxu0 0
        %3123 = vmatpush1.bf16.msra.mxu0 0
        %3124 = vmatprep.subr.bf16.mxu0 0
        %3125 = vmatpush1.bf16.msra.mxu0 0
        %3126 = vmatprep.subr.bf16.mxu0 0
        %3127 = vmatpush1.bf16.msra.mxu0 0
        %3128 = vmatprep.subr.bf16.mxu0 0
        %3129 = vmatpush1.bf16.msra.mxu0 0
        %3130 = vmatprep.subr.bf16.mxu0 0
        %3131 = vmatpush1.bf16.msra.mxu0 0
        %3132 = vmatprep.mubr.bf16.mxu0 0
        %3133 = vmatmul.mubr.bf16.gmra.mrb[0].mxu0 %v2356
        %v3134 = vpop.f32.mrb[0].mxu0
        %v3135 = vadd.f32 %v2453, %v3134
        %v3136 = vpop.f32.mrb[0].mxu0
        %v3137 = vadd.f32 %v2457, %v3136
        %v3138 = vpop.f32.mrb[0].mxu0
        %v3139 = vadd.f32 %v2453, %v3138
        %v3140 = vpop.f32.mrb[0].mxu0
        %v3141 = vadd.f32 %v2457, %v3140
        %3142 = vmatprep.mubr.bf16.mxu0 0
        %3143 = vmatmul.mubr.bf16.gmra.mrb[0].mxu0 %v2357
        %v3144 = vpop.f32.mrb[0].mxu0
        %v3145 = vadd.f32 %v2453, %v3144
        %v3146 = vpop.f32.mrb[0].mxu0
        %v3147 = vadd.f32 %v2457, %v3146
        %v3148 = vpop.f32.mrb[0].mxu0
        %v3149 = vadd.f32 %v2453, %v3148
        %v3150 = vpop.f32.mrb[0].mxu0
        %v3151 = vadd.f32 %v2457, %v3150
        %3152 = vmatprep.mubr.bf16.mxu0 0
        %3153 = vmatmul.mubr.bf16.gmra.mrb[0].mxu0 %v2358
        %v3154 = vpop.f32.mrb[0].mxu0
        %v3155 = vadd.f32 %v2453, %v3154
        %v3156 = vpop.f32.mrb[0].mxu0
        %v3157 = vadd.f32 %v2457, %v3156
        %v3158 = vpop.f32.mrb[0].mxu0
        %v3159 = vadd.f32 %v2453, %v3158
        %v3160 = vpop.f32.mrb[0].mxu0
        %v3161 = vadd.f32 %v2457, %v3160
        %3162 = vmatprep.mubr.bf16.mxu0 0
        %3163 = vmatmul.mubr.bf16.gmra.mrb[0].mxu0 %v2359
        %v3164 = vpop.f32.mrb[0].mxu0
        %v3165 = vadd.f32 %v2453, %v3164
        %v3166 = vpop.f32.mrb[0].mxu0
        %v3167 = vadd.f32 %v2457, %v3166
        %v3168 = vpop.f32.mrb[0].mxu0
        %v3169 = vadd.f32 %v2453, %v3168
        %v3170 = vpop.f32.mrb[0].mxu0
        %v3171 = vadd.f32 %v2457, %v3170
        %3172 = vmatprep.mubr.bf16.mxu0 0
        %3173 = vmatmul.mubr.bf16.gmra.mrb[0].mxu0 %v2360
        %v3174 = vpop.f32.mrb[0].mxu0
        %v3175 = vadd.f32 %v2453, %v3174
        %v3176 = vpop.f32.mrb[0].mxu0
        %v3177 = vadd.f32 %v2457, %v3176
        %v3178 = vpop.f32.mrb[0].mxu0
        %v3179 = vadd.f32 %v2453, %v3178
        %v3180 = vpop.f32.mrb[0].mxu0
        %v3181 = vadd.f32 %v2457, %v3180
        %3182 = vmatprep.mubr.bf16.mxu0 0
        %3183 = vmatmul.mubr.bf16.gmra.mrb[0].mxu0 %v2361
        %v3184 = vpop.f32.mrb[0].mxu0
        %v3185 = vadd.f32 %v2453, %v3184
        %v3186 = vpop.f32.mrb[0].mxu0
        %v3187 = vadd.f32 %v2457, %v3186
        %v3188 = vpop.f32.mrb[0].mxu0
        %v3189 = vadd.f32 %v2453, %v3188
        %v3190 = vpop.f32.mrb[0].mxu0
        %v3191 = vadd.f32 %v2457, %v3190
        %3192 = vmatprep.mubr.bf16.mxu0 0
        %3193 = vmatmul.mubr.bf16.gmra.mrb[0].mxu0 %v2362
        %v3194 = vpop.f32.mrb[0].mxu0
        %v3195 = vadd.f32 %v2453, %v3194
        %v3196 = vpop.f32.mrb[0].mxu0
        %v3197 = vadd.f32 %v2457, %v3196
        %v3198 = vpop.f32.mrb[0].mxu0
        %v3199 = vadd.f32 %v2453, %v3198
        %v3200 = vpop.f32.mrb[0].mxu0
        %v3201 = vadd.f32 %v2457, %v3200
        %3202 = vmatprep.mubr.bf16.mxu0 0
        %3203 = vmatmul.mubr.bf16.gmra.mrb[0].mxu0 %v2363
        %v3204 = vpop.f32.mrb[0].mxu0
        %v3205 = vadd.f32 %v2453, %v3204
        %v3206 = vpop.f32.mrb[0].mxu0
        %v3207 = vadd.f32 %v2457, %v3206
        %v3208 = vpop.f32.mrb[0].mxu0
        %v3209 = vadd.f32 %v2453, %v3208
        %v3210 = vpop.f32.mrb[0].mxu0
        %v3211 = vadd.f32 %v2457, %v3210
        %3212 = vmatprep.mubr.bf16.mxu0 0
        %3213 = vmatmul.mubr.bf16.gmra.mrb[0].mxu0 %v2364
        %v3214 = vpop.f32.mrb[0].mxu0
        %v3215 = vadd.f32 %v2453, %v3214
        %v3216 = vpop.f32.mrb[0].mxu0
        %v3217 = vadd.f32 %v2457, %v3216
        %v3218 = vpop.f32.mrb[0].mxu0
        %v3219 = vadd.f32 %v2453, %v3218
        %v3220 = vpop.f32.mrb[0].mxu0
        %v3221 = vadd.f32 %v2457, %v3220
        %3222 = vmatprep.mubr.bf16.mxu0 0
        %3223 = vmatmul.mubr.bf16.gmra.mrb[0].mxu0 %v2365
        %v3224 = vpop.f32.mrb[0].mxu0
        %v3225 = vadd.f32 %v2453, %v3224
        %v3226 = vpop.f32.mrb[0].mxu0
        %v3227 = vadd.f32 %v2457, %v3226
        %v3228 = vpop.f32.mrb[0].mxu0
        %v3229 = vadd.f32 %v2453, %v3228
        %v3230 = vpop.f32.mrb[0].mxu0
        %v3231 = vadd.f32 %v2457, %v3230
        %3232 = vmatprep.mubr.bf16.mxu0 0
        %3233 = vmatmul.mubr.bf16.gmra.mrb[0].mxu0 %v2366
        %v3234 = vpop.f32.mrb[0].mxu0
        %v3235 = vadd.f32 %v2453, %v3234
        %v3236 = vpop.f32.mrb[0].mxu0
        %v3237 = vadd.f32 %v2457, %v3236
        %v3238 = vpop.f32.mrb[0].mxu0
        %v3239 = vadd.f32 %v2453, %v3238
        %v3240 = vpop.f32.mrb[0].mxu0
        %v3241 = vadd.f32 %v2457, %v3240
        %3242 = vmatprep.mubr.bf16.mxu0 0
        %3243 = vmatmul.mubr.bf16.gmra.mrb[0].mxu0 %v2367
        %v3244 = vpop.f32.mrb[0].mxu0
        %v3245 = vadd.f32 %v2453, %v3244
        %v3246 = vpop.f32.mrb[0].mxu0
        %v3247 = vadd.f32 %v2457, %v3246
        %v3248 = vpop.f32.mrb[0].mxu0
        %v3249 = vadd.f32 %v2453, %v3248
        %v3250 = vpop.f32.mrb[0].mxu0
        %v3251 = vadd.f32 %v2457, %v3250
        %3252 = vdwg.mxu0
        %3253 = vmatprep.subr.bf16.mxu0 %v2673
        %3254 = vmatpush1.bf16.msra.mxu0 %v2672
        %3255 = vmatprep.subr.bf16.mxu0 %v2681
        %3256 = vmatpush1.bf16.msra.mxu0 %v2680
        %3257 = vmatprep.subr.bf16.mxu0 %v2689
        %3258 = vmatpush1.bf16.msra.mxu0 %v2688
        %3259 = vmatprep.subr.bf16.mxu0 %v2697
        %3260 = vmatpush1.bf16.msra.mxu0 %v2696
        %3261 = vmatprep.subr.bf16.mxu0 %v2705
        %3262 = vmatpush1.bf16.msra.mxu0 %v2704
        %3263 = vmatprep.subr.bf16.mxu0 %v2713
        %3264 = vmatpush1.bf16.msra.mxu0 %v2712
        %3265 = vmatprep.subr.bf16.mxu0 %v2721
        %3266 = vmatpush1.bf16.msra.mxu0 %v2720
        %3267 = vmatprep.subr.bf16.mxu0 %v2729
        %3268 = vmatpush1.bf16.msra.mxu0 %v2728
        %3269 = vmatprep.subr.bf16.mxu0 0
        %3270 = vmatpush1.bf16.msra.mxu0 0
        %3271 = vmatprep.subr.bf16.mxu0 0
        %3272 = vmatpush1.bf16.msra.mxu0 0
        %3273 = vmatprep.subr.bf16.mxu0 0
        %3274 = vmatpush1.bf16.msra.mxu0 0
        %3275 = vmatprep.subr.bf16.mxu0 0
        %3276 = vmatpush1.bf16.msra.mxu0 0
        %3277 = vmatprep.subr.bf16.mxu0 0
        %3278 = vmatpush1.bf16.msra.mxu0 0
        %3279 = vmatprep.subr.bf16.mxu0 0
        %3280 = vmatpush1.bf16.msra.mxu0 0
        %3281 = vmatprep.subr.bf16.mxu0 0
        %3282 = vmatpush1.bf16.msra.mxu0 0
        %3283 = vmatprep.subr.bf16.mxu0 0
        %3284 = vmatpush1.bf16.msra.mxu0 0
        %3285 = vmatprep.mubr.bf16.mxu0 0
        %3286 = vmatmul.mubr.bf16.gmra.mrb[0].mxu0 %v2356
        %v3287 = vpop.f32.mrb[0].mxu0
        %v3288 = vadd.f32 %v2461, %v3287
        %v3289 = vpop.f32.mrb[0].mxu0
        %v3290 = vadd.f32 %v2465, %v3289
        %v3291 = vpop.f32.mrb[0].mxu0
        %v3292 = vadd.f32 %v2461, %v3291
        %v3293 = vpop.f32.mrb[0].mxu0
        %v3294 = vadd.f32 %v2465, %v3293
        %3295 = vmatprep.mubr.bf16.mxu0 0
        %3296 = vmatmul.mubr.bf16.gmra.mrb[0].mxu0 %v2357
        %v3297 = vpop.f32.mrb[0].mxu0
        %v3298 = vadd.f32 %v2461, %v3297
        %v3299 = vpop.f32.mrb[0].mxu0
        %v3300 = vadd.f32 %v2465, %v3299
        %v3301 = vpop.f32.mrb[0].mxu0
        %v3302 = vadd.f32 %v2461, %v3301
        %v3303 = vpop.f32.mrb[0].mxu0
        %v3304 = vadd.f32 %v2465, %v3303
        %3305 = vmatprep.mubr.bf16.mxu0 0
        %3306 = vmatmul.mubr.bf16.gmra.mrb[0].mxu0 %v2358
        %v3307 = vpop.f32.mrb[0].mxu0
        %v3308 = vadd.f32 %v2461, %v3307
        %v3309 = vpop.f32.mrb[0].mxu0
        %v3310 = vadd.f32 %v2465, %v3309
        %v3311 = vpop.f32.mrb[0].mxu0
        %v3312 = vadd.f32 %v2461, %v3311
        %v3313 = vpop.f32.mrb[0].mxu0
        %v3314 = vadd.f32 %v2465, %v3313
        %3315 = vmatprep.mubr.bf16.mxu0 0
        %3316 = vmatmul.mubr.bf16.gmra.mrb[0].mxu0 %v2359
        %v3317 = vpop.f32.mrb[0].mxu0
        %v3318 = vadd.f32 %v2461, %v3317
        %v3319 = vpop.f32.mrb[0].mxu0
        %v3320 = vadd.f32 %v2465, %v3319
        %v3321 = vpop.f32.mrb[0].mxu0
        %v3322 = vadd.f32 %v2461, %v3321
        %v3323 = vpop.f32.mrb[0].mxu0
        %v3324 = vadd.f32 %v2465, %v3323
        %3325 = vmatprep.mubr.bf16.mxu0 0
        %3326 = vmatmul.mubr.bf16.gmra.mrb[0].mxu0 %v2360
        %v3327 = vpop.f32.mrb[0].mxu0
        %v3328 = vadd.f32 %v2461, %v3327
        %v3329 = vpop.f32.mrb[0].mxu0
        %v3330 = vadd.f32 %v2465, %v3329
        %v3331 = vpop.f32.mrb[0].mxu0
        %v3332 = vadd.f32 %v2461, %v3331
        %v3333 = vpop.f32.mrb[0].mxu0
        %v3334 = vadd.f32 %v2465, %v3333
        %3335 = vmatprep.mubr.bf16.mxu0 0
        %3336 = vmatmul.mubr.bf16.gmra.mrb[0].mxu0 %v2361
        %v3337 = vpop.f32.mrb[0].mxu0
        %v3338 = vadd.f32 %v2461, %v3337
        %v3339 = vpop.f32.mrb[0].mxu0
        %v3340 = vadd.f32 %v2465, %v3339
        %v3341 = vpop.f32.mrb[0].mxu0
        %v3342 = vadd.f32 %v2461, %v3341
        %v3343 = vpop.f32.mrb[0].mxu0
        %v3344 = vadd.f32 %v2465, %v3343
        %3345 = vmatprep.mubr.bf16.mxu0 0
        %3346 = vmatmul.mubr.bf16.gmra.mrb[0].mxu0 %v2362
        %v3347 = vpop.f32.mrb[0].mxu0
        %v3348 = vadd.f32 %v2461, %v3347
        %v3349 = vpop.f32.mrb[0].mxu0
        %v3350 = vadd.f32 %v2465, %v3349
        %v3351 = vpop.f32.mrb[0].mxu0
        %v3352 = vadd.f32 %v2461, %v3351
        %v3353 = vpop.f32.mrb[0].mxu0
        %v3354 = vadd.f32 %v2465, %v3353
        %3355 = vmatprep.mubr.bf16.mxu0 0
        %3356 = vmatmul.mubr.bf16.gmra.mrb[0].mxu0 %v2363
        %v3357 = vpop.f32.mrb[0].mxu0
        %v3358 = vadd.f32 %v2461, %v3357
        %v3359 = vpop.f32.mrb[0].mxu0
        %v3360 = vadd.f32 %v2465, %v3359
        %v3361 = vpop.f32.mrb[0].mxu0
        %v3362 = vadd.f32 %v2461, %v3361
        %v3363 = vpop.f32.mrb[0].mxu0
        %v3364 = vadd.f32 %v2465, %v3363
        %3365 = vmatprep.mubr.bf16.mxu0 0
        %3366 = vmatmul.mubr.bf16.gmra.mrb[0].mxu0 %v2364
        %v3367 = vpop.f32.mrb[0].mxu0
        %v3368 = vadd.f32 %v2461, %v3367
        %v3369 = vpop.f32.mrb[0].mxu0
        %v3370 = vadd.f32 %v2465, %v3369
        %v3371 = vpop.f32.mrb[0].mxu0
        %v3372 = vadd.f32 %v2461, %v3371
        %v3373 = vpop.f32.mrb[0].mxu0
        %v3374 = vadd.f32 %v2465, %v3373
        %3375 = vmatprep.mubr.bf16.mxu0 0
        %3376 = vmatmul.mubr.bf16.gmra.mrb[0].mxu0 %v2365
        %v3377 = vpop.f32.mrb[0].mxu0
        %v3378 = vadd.f32 %v2461, %v3377
        %v3379 = vpop.f32.mrb[0].mxu0
        %v3380 = vadd.f32 %v2465, %v3379
        %v3381 = vpop.f32.mrb[0].mxu0
        %v3382 = vadd.f32 %v2461, %v3381
        %v3383 = vpop.f32.mrb[0].mxu0
        %v3384 = vadd.f32 %v2465, %v3383
        %3385 = vmatprep.mubr.bf16.mxu0 0
        %3386 = vmatmul.mubr.bf16.gmra.mrb[0].mxu0 %v2366
        %v3387 = vpop.f32.mrb[0].mxu0
        %v3388 = vadd.f32 %v2461, %v3387
        %v3389 = vpop.f32.mrb[0].mxu0
        %v3390 = vadd.f32 %v2465, %v3389
        %v3391 = vpop.f32.mrb[0].mxu0
        %v3392 = vadd.f32 %v2461, %v3391
        %v3393 = vpop.f32.mrb[0].mxu0
        %v3394 = vadd.f32 %v2465, %v3393
        %3395 = vmatprep.mubr.bf16.mxu0 0
        %3396 = vmatmul.mubr.bf16.gmra.mrb[0].mxu0 %v2367
        %v3397 = vpop.f32.mrb[0].mxu0
        %v3398 = vadd.f32 %v2461, %v3397
        %v3399 = vpop.f32.mrb[0].mxu0
        %v3400 = vadd.f32 %v2465, %v3399
        %v3401 = vpop.f32.mrb[0].mxu0
        %v3402 = vadd.f32 %v2461, %v3401
        %v3403 = vpop.f32.mrb[0].mxu0
        %v3404 = vadd.f32 %v2465, %v3403
        %3405 = vdwg.mxu0
        %v3406 = vmul.f32 %v2829, 0.5
        %v3407 = vmul.f32 %v2831, 0.5
        %v3408 = vmul.f32 %v2982, 0.5
        %v3409 = vmul.f32 %v2984, 0.5
        %v3410 = vmul.f32 %v3135, 0.5
        %v3411 = vmul.f32 %v3137, 0.5
        %v3412 = vmul.f32 %v3288, 0.5
        %v3413 = vmul.f32 %v3290, 0.5
        %v3414 = vmul.f32 %v2833, 0.5
        %v3415 = vmul.f32 %v2835, 0.5
        %v3416 = vmul.f32 %v2986, 0.5
        %v3417 = vmul.f32 %v2988, 0.5
        %v3418 = vmul.f32 %v3139, 0.5
        %v3419 = vmul.f32 %v3141, 0.5
        %v3420 = vmul.f32 %v3292, 0.5
        %v3421 = vmul.f32 %v3294, 0.5
        %v3422 = vmul.f32 %v2839, 0.5
        %v3423 = vmul.f32 %v2841, 0.5
        %v3424 = vmul.f32 %v2992, 0.5
        %v3425 = vmul.f32 %v2994, 0.5
        %v3426 = vmul.f32 %v3145, 0.5
        %v3427 = vmul.f32 %v3147, 0.5
        %v3428 = vmul.f32 %v3298, 0.5
        %v3429 = vmul.f32 %v3300, 0.5
        %v3430 = vmul.f32 %v2843, 0.5
        %v3431 = vmul.f32 %v2845, 0.5
        %v3432 = vmul.f32 %v2996, 0.5
        %v3433 = vmul.f32 %v2998, 0.5
        %v3434 = vmul.f32 %v3149, 0.5
        %v3435 = vmul.f32 %v3151, 0.5
        %v3436 = vmul.f32 %v3302, 0.5
        %v3437 = vmul.f32 %v3304, 0.5
        %v3438 = vmul.f32 %v2849, 0.5
        %v3439 = vmul.f32 %v2851, 0.5
        %v3440 = vmul.f32 %v3002, 0.5
        %v3441 = vmul.f32 %v3004, 0.5
        %v3442 = vmul.f32 %v3155, 0.5
        %v3443 = vmul.f32 %v3157, 0.5
        %v3444 = vmul.f32 %v3308, 0.5
        %v3445 = vmul.f32 %v3310, 0.5
        %v3446 = vmul.f32 %v2853, 0.5
        %v3447 = vmul.f32 %v2855, 0.5
        %v3448 = vmul.f32 %v3006, 0.5
        %v3449 = vmul.f32 %v3008, 0.5
        %v3450 = vmul.f32 %v3159, 0.5
        %v3451 = vmul.f32 %v3161, 0.5
        %v3452 = vmul.f32 %v3312, 0.5
        %v3453 = vmul.f32 %v3314, 0.5
        %v3454 = vmul.f32 %v2859, 0.5
        %v3455 = vmul.f32 %v2861, 0.5
        %v3456 = vmul.f32 %v3012, 0.5
        %v3457 = vmul.f32 %v3014, 0.5
        %v3458 = vmul.f32 %v3165, 0.5
        %v3459 = vmul.f32 %v3167, 0.5
        %v3460 = vmul.f32 %v3318, 0.5
        %v3461 = vmul.f32 %v3320, 0.5
        %v3462 = vmul.f32 %v2863, 0.5
        %v3463 = vmul.f32 %v2865, 0.5
        %v3464 = vmul.f32 %v3016, 0.5
        %v3465 = vmul.f32 %v3018, 0.5
        %v3466 = vmul.f32 %v3169, 0.5
        %v3467 = vmul.f32 %v3171, 0.5
        %v3468 = vmul.f32 %v3322, 0.5
        %v3469 = vmul.f32 %v3324, 0.5
        %v3470 = vmul.f32 %v2869, 0.5
        %v3471 = vmul.f32 %v2871, 0.5
        %v3472 = vmul.f32 %v3022, 0.5
        %v3473 = vmul.f32 %v3024, 0.5
        %v3474 = vmul.f32 %v3175, 0.5
        %v3475 = vmul.f32 %v3177, 0.5
        %v3476 = vmul.f32 %v3328, 0.5
        %v3477 = vmul.f32 %v3330, 0.5
        %v3478 = vmul.f32 %v2873, 0.5
        %v3479 = vmul.f32 %v2875, 0.5
        %v3480 = vmul.f32 %v3026, 0.5
        %v3481 = vmul.f32 %v3028, 0.5
        %v3482 = vmul.f32 %v3179, 0.5
        %v3483 = vmul.f32 %v3181, 0.5
        %v3484 = vmul.f32 %v3332, 0.5
        %v3485 = vmul.f32 %v3334, 0.5
        %v3486 = vmul.f32 %v2879, 0.5
        %v3487 = vmul.f32 %v2881, 0.5
        %v3488 = vmul.f32 %v3032, 0.5
        %v3489 = vmul.f32 %v3034, 0.5
        %v3490 = vmul.f32 %v3185, 0.5
        %v3491 = vmul.f32 %v3187, 0.5
        %v3492 = vmul.f32 %v3338, 0.5
        %v3493 = vmul.f32 %v3340, 0.5
        %v3494 = vmul.f32 %v2883, 0.5
        %v3495 = vmul.f32 %v2885, 0.5
        %v3496 = vmul.f32 %v3036, 0.5
        %v3497 = vmul.f32 %v3038, 0.5
        %v3498 = vmul.f32 %v3189, 0.5
        %v3499 = vmul.f32 %v3191, 0.5
        %v3500 = vmul.f32 %v3342, 0.5
        %v3501 = vmul.f32 %v3344, 0.5
        %v3502 = vmul.f32 %v2889, 0.5
        %v3503 = vmul.f32 %v2891, 0.5
        %v3504 = vmul.f32 %v3042, 0.5
        %v3505 = vmul.f32 %v3044, 0.5
        %v3506 = vmul.f32 %v3195, 0.5
        %v3507 = vmul.f32 %v3197, 0.5
        %v3508 = vmul.f32 %v3348, 0.5
        %v3509 = vmul.f32 %v3350, 0.5
        %v3510 = vmul.f32 %v2893, 0.5
        %v3511 = vmul.f32 %v2895, 0.5
        %v3512 = vmul.f32 %v3046, 0.5
        %v3513 = vmul.f32 %v3048, 0.5
        %v3514 = vmul.f32 %v3199, 0.5
        %v3515 = vmul.f32 %v3201, 0.5
        %v3516 = vmul.f32 %v3352, 0.5
        %v3517 = vmul.f32 %v3354, 0.5
        %v3518 = vmul.f32 %v2899, 0.5
        %v3519 = vmul.f32 %v2901, 0.5
        %v3520 = vmul.f32 %v3052, 0.5
        %v3521 = vmul.f32 %v3054, 0.5
        %v3522 = vmul.f32 %v3205, 0.5
        %v3523 = vmul.f32 %v3207, 0.5
        %v3524 = vmul.f32 %v3358, 0.5
        %v3525 = vmul.f32 %v3360, 0.5
        %v3526 = vmul.f32 %v2903, 0.5
        %v3527 = vmul.f32 %v2905, 0.5
        %v3528 = vmul.f32 %v3056, 0.5
        %v3529 = vmul.f32 %v3058, 0.5
        %v3530 = vmul.f32 %v3209, 0.5
        %v3531 = vmul.f32 %v3211, 0.5
        %v3532 = vmul.f32 %v3362, 0.5
        %v3533 = vmul.f32 %v3364, 0.5
        %v3534 = vmul.f32 %v2909, 0.5
        %v3535 = vmul.f32 %v2911, 0.5
        %v3536 = vmul.f32 %v3062, 0.5
        %v3537 = vmul.f32 %v3064, 0.5
        %v3538 = vmul.f32 %v3215, 0.5
        %v3539 = vmul.f32 %v3217, 0.5
        %v3540 = vmul.f32 %v3368, 0.5
        %v3541 = vmul.f32 %v3370, 0.5
        %v3542 = vmul.f32 %v2913, 0.5
        %v3543 = vmul.f32 %v2915, 0.5
        %v3544 = vmul.f32 %v3066, 0.5
        %v3545 = vmul.f32 %v3068, 0.5
        %v3546 = vmul.f32 %v3219, 0.5
        %v3547 = vmul.f32 %v3221, 0.5
        %v3548 = vmul.f32 %v3372, 0.5
        %v3549 = vmul.f32 %v3374, 0.5
        %v3550 = vmul.f32 %v2919, 0.5
        %v3551 = vmul.f32 %v2921, 0.5
        %v3552 = vmul.f32 %v3072, 0.5
        %v3553 = vmul.f32 %v3074, 0.5
        %v3554 = vmul.f32 %v3225, 0.5
        %v3555 = vmul.f32 %v3227, 0.5
        %v3556 = vmul.f32 %v3378, 0.5
        %v3557 = vmul.f32 %v3380, 0.5
        %v3558 = vmul.f32 %v2923, 0.5
        %v3559 = vmul.f32 %v2925, 0.5
        %v3560 = vmul.f32 %v3076, 0.5
        %v3561 = vmul.f32 %v3078, 0.5
        %v3562 = vmul.f32 %v3229, 0.5
        %v3563 = vmul.f32 %v3231, 0.5
        %v3564 = vmul.f32 %v3382, 0.5
        %v3565 = vmul.f32 %v3384, 0.5
        %v3566 = vmul.f32 %v2929, 0.5
        %v3567 = vmul.f32 %v2931, 0.5
        %v3568 = vmul.f32 %v3082, 0.5
        %v3569 = vmul.f32 %v3084, 0.5
        %v3570 = vmul.f32 %v3235, 0.5
        %v3571 = vmul.f32 %v3237, 0.5
        %v3572 = vmul.f32 %v3388, 0.5
        %v3573 = vmul.f32 %v3390, 0.5
        %v3574 = vmul.f32 %v2933, 0.5
        %v3575 = vmul.f32 %v2935, 0.5
        %v3576 = vmul.f32 %v3086, 0.5
        %v3577 = vmul.f32 %v3088, 0.5
        %v3578 = vmul.f32 %v3239, 0.5
        %v3579 = vmul.f32 %v3241, 0.5
        %v3580 = vmul.f32 %v3392, 0.5
        %v3581 = vmul.f32 %v3394, 0.5
        %v3582 = vmul.f32 %v2939, 0.5
        %v3583 = vmul.f32 %v2941, 0.5
        %v3584 = vmul.f32 %v3092, 0.5
        %v3585 = vmul.f32 %v3094, 0.5
        %v3586 = vmul.f32 %v3245, 0.5
        %v3587 = vmul.f32 %v3247, 0.5
        %v3588 = vmul.f32 %v3398, 0.5
        %v3589 = vmul.f32 %v3400, 0.5
        %v3590 = vmul.f32 %v2943, 0.5
        %v3591 = vmul.f32 %v2945, 0.5
        %v3592 = vmul.f32 %v3096, 0.5
        %v3593 = vmul.f32 %v3098, 0.5
        %v3594 = vmul.f32 %v3249, 0.5
        %v3595 = vmul.f32 %v3251, 0.5
        %v3596 = vmul.f32 %v3402, 0.5
        %v3597 = vmul.f32 %v3404, 0.5
        %v3598 = vtanh.pop %v3406
        %v3599 = vtanh.pop %v3407
        %v3600 = vtanh.pop %v3408
        %v3601 = vtanh.pop %v3409
        %v3602 = vtanh.pop %v3410
        %v3603 = vtanh.pop %v3411
        %v3604 = vtanh.pop %v3412
        %v3605 = vtanh.pop %v3413
        %v3606 = vtanh.pop %v3414
        %v3607 = vtanh.pop %v3415
        %v3608 = vtanh.pop %v3416
        %v3609 = vtanh.pop %v3417
        %v3610 = vtanh.pop %v3418
        %v3611 = vtanh.pop %v3419
        %v3612 = vtanh.pop %v3420
        %v3613 = vtanh.pop %v3421
        %v3614 = vtanh.pop %v3422
        %v3615 = vtanh.pop %v3423
        %v3616 = vtanh.pop %v3424
        %v3617 = vtanh.pop %v3425
        %v3618 = vtanh.pop %v3426
        %v3619 = vtanh.pop %v3427
        %v3620 = vtanh.pop %v3428
        %v3621 = vtanh.pop %v3429
        %v3622 = vtanh.pop %v3430
        %v3623 = vtanh.pop %v3431
        %v3624 = vtanh.pop %v3432
        %v3625 = vtanh.pop %v3433
        %v3626 = vtanh.pop %v3434
        %v3627 = vtanh.pop %v3435
        %v3628 = vtanh.pop %v3436
        %v3629 = vtanh.pop %v3437
        %v3630 = vtanh.pop %v3438
        %v3631 = vtanh.pop %v3439
        %v3632 = vtanh.pop %v3440
        %v3633 = vtanh.pop %v3441
        %v3634 = vtanh.pop %v3442
        %v3635 = vtanh.pop %v3443
        %v3636 = vtanh.pop %v3444
        %v3637 = vtanh.pop %v3445
        %v3638 = vtanh.pop %v3446
        %v3639 = vtanh.pop %v3447
        %v3640 = vtanh.pop %v3448
        %v3641 = vtanh.pop %v3449
        %v3642 = vtanh.pop %v3450
        %v3643 = vtanh.pop %v3451
        %v3644 = vtanh.pop %v3452
        %v3645 = vtanh.pop %v3453
        %v3646 = vtanh.pop %v3454
        %v3647 = vtanh.pop %v3455
        %v3648 = vtanh.pop %v3456
        %v3649 = vtanh.pop %v3457
        %v3650 = vtanh.pop %v3458
        %v3651 = vtanh.pop %v3459
        %v3652 = vtanh.pop %v3460
        %v3653 = vtanh.pop %v3461
        %v3654 = vtanh.pop %v3462
        %v3655 = vtanh.pop %v3463
        %v3656 = vtanh.pop %v3464
        %v3657 = vtanh.pop %v3465
        %v3658 = vtanh.pop %v3466
        %v3659 = vtanh.pop %v3467
        %v3660 = vtanh.pop %v3468
        %v3661 = vtanh.pop %v3469
        %v3662 = vtanh.pop %v3470
        %v3663 = vtanh.pop %v3471
        %v3664 = vtanh.pop %v3472
        %v3665 = vtanh.pop %v3473
        %v3666 = vtanh.pop %v3474
        %v3667 = vtanh.pop %v3475
        %v3668 = vtanh.pop %v3476
        %v3669 = vtanh.pop %v3477
        %v3670 = vtanh.pop %v3478
        %v3671 = vtanh.pop %v3479
        %v3672 = vtanh.pop %v3480
        %v3673 = vtanh.pop %v3481
        %v3674 = vtanh.pop %v3482
        %v3675 = vtanh.pop %v3483
        %v3676 = vtanh.pop %v3484
        %v3677 = vtanh.pop %v3485
        %v3678 = vtanh.pop %v3486
        %v3679 = vtanh.pop %v3487
        %v3680 = vtanh.pop %v3488
        %v3681 = vtanh.pop %v3489
        %v3682 = vtanh.pop %v3490
        %v3683 = vtanh.pop %v3491
        %v3684 = vtanh.pop %v3492
        %v3685 = vtanh.pop %v3493
        %v3686 = vtanh.pop %v3494
        %v3687 = vtanh.pop %v3495
        %v3688 = vtanh.pop %v3496
        %v3689 = vtanh.pop %v3497
        %v3690 = vtanh.pop %v3498
        %v3691 = vtanh.pop %v3499
        %v3692 = vtanh.pop %v3500
        %v3693 = vtanh.pop %v3501
        %v3694 = vtanh.pop %v3502
        %v3695 = vtanh.pop %v3503
        %v3696 = vtanh.pop %v3504
        %v3697 = vtanh.pop %v3505
        %v3698 = vtanh.pop %v3506
        %v3699 = vtanh.pop %v3507
        %v3700 = vtanh.pop %v3508
        %v3701 = vtanh.pop %v3509
        %v3702 = vtanh.pop %v3510
        %v3703 = vtanh.pop %v3511
        %v3704 = vtanh.pop %v3512
        %v3705 = vtanh.pop %v3513
        %v3706 = vtanh.pop %v3514
        %v3707 = vtanh.pop %v3515
        %v3708 = vtanh.pop %v3516
        %v3709 = vtanh.pop %v3517
        %v3710 = vtanh.pop %v3518
        %v3711 = vtanh.pop %v3519
        %v3712 = vtanh.pop %v3520
        %v3713 = vtanh.pop %v3521
        %v3714 = vtanh.pop %v3522
        %v3715 = vtanh.pop %v3523
        %v3716 = vtanh.pop %v3524
        %v3717 = vtanh.pop %v3525
        %v3718 = vtanh.pop %v3526
        %v3719 = vtanh.pop %v3527
        %v3720 = vtanh.pop %v3528
        %v3721 = vtanh.pop %v3529
        %v3722 = vtanh.pop %v3530
        %v3723 = vtanh.pop %v3531
        %v3724 = vtanh.pop %v3532
        %v3725 = vtanh.pop %v3533
        %v3726 = vtanh.pop %v3534
        %v3727 = vtanh.pop %v3535
        %v3728 = vtanh.pop %v3536
        %v3729 = vtanh.pop %v3537
        %v3730 = vtanh.pop %v3538
        %v3731 = vtanh.pop %v3539
        %v3732 = vtanh.pop %v3540
        %v3733 = vtanh.pop %v3541
        %v3734 = vtanh.pop %v3542
        %v3735 = vtanh.pop %v3543
        %v3736 = vtanh.pop %v3544
        %v3737 = vtanh.pop %v3545
        %v3738 = vtanh.pop %v3546
        %v3739 = vtanh.pop %v3547
        %v3740 = vtanh.pop %v3548
        %v3741 = vtanh.pop %v3549
        %v3742 = vtanh.pop %v3550
        %v3743 = vtanh.pop %v3551
        %v3744 = vtanh.pop %v3552
        %v3745 = vtanh.pop %v3553
        %v3746 = vtanh.pop %v3554
        %v3747 = vtanh.pop %v3555
        %v3748 = vtanh.pop %v3556
        %v3749 = vtanh.pop %v3557
        %v3750 = vtanh.pop %v3558
        %v3751 = vtanh.pop %v3559
        %v3752 = vtanh.pop %v3560
        %v3753 = vtanh.pop %v3561
        %v3754 = vtanh.pop %v3562
        %v3755 = vtanh.pop %v3563
        %v3756 = vtanh.pop %v3564
        %v3757 = vtanh.pop %v3565
        %v3758 = vtanh.pop %v3566
        %v3759 = vtanh.pop %v3567
        %v3760 = vtanh.pop %v3568
        %v3761 = vtanh.pop %v3569
        %v3762 = vtanh.pop %v3570
        %v3763 = vtanh.pop %v3571
        %v3764 = vtanh.pop %v3572
        %v3765 = vtanh.pop %v3573
        %v3766 = vtanh.pop %v3574
        %v3767 = vtanh.pop %v3575
        %v3768 = vtanh.pop %v3576
        %v3769 = vtanh.pop %v3577
        %v3770 = vtanh.pop %v3578
        %v3771 = vtanh.pop %v3579
        %v3772 = vtanh.pop %v3580
        %v3773 = vtanh.pop %v3581
        %v3774 = vtanh.pop %v3582
        %v3775 = vtanh.pop %v3583
        %v3776 = vtanh.pop %v3584
        %v3777 = vtanh.pop %v3585
        %v3778 = vtanh.pop %v3586
        %v3779 = vtanh.pop %v3587
        %v3780 = vtanh.pop %v3588
        %v3781 = vtanh.pop %v3589
        %v3782 = vtanh.pop %v3590
        %v3783 = vtanh.pop %v3591
        %v3784 = vtanh.pop %v3592
        %v3785 = vtanh.pop %v3593
        %v3786 = vtanh.pop %v3594
        %v3787 = vtanh.pop %v3595
        %v3788 = vtanh.pop %v3596
        %v3789 = vtanh.pop %v3597
        %v3790 = vadd.f32 %v3598, 1.0
        %v3791 = vadd.f32 %v3599, 1.0
        %v3792 = vadd.f32 %v3600, 1.0
        %v3793 = vadd.f32 %v3601, 1.0
        %v3794 = vadd.f32 %v3602, 1.0
        %v3795 = vadd.f32 %v3603, 1.0
        %v3796 = vadd.f32 %v3604, 1.0
        %v3797 = vadd.f32 %v3605, 1.0
        %v3798 = vadd.f32 %v3606, 1.0
        %v3799 = vadd.f32 %v3607, 1.0
        %v3800 = vadd.f32 %v3608, 1.0
        %v3801 = vadd.f32 %v3609, 1.0
        %v3802 = vadd.f32 %v3610, 1.0
        %v3803 = vadd.f32 %v3611, 1.0
        %v3804 = vadd.f32 %v3612, 1.0
        %v3805 = vadd.f32 %v3613, 1.0
        %v3806 = vadd.f32 %v3614, 1.0
        %v3807 = vadd.f32 %v3615, 1.0
        %v3808 = vadd.f32 %v3616, 1.0
        %v3809 = vadd.f32 %v3617, 1.0
        %v3810 = vadd.f32 %v3618, 1.0
        %v3811 = vadd.f32 %v3619, 1.0
        %v3812 = vadd.f32 %v3620, 1.0
        %v3813 = vadd.f32 %v3621, 1.0
        %v3814 = vadd.f32 %v3622, 1.0
        %v3815 = vadd.f32 %v3623, 1.0
        %v3816 = vadd.f32 %v3624, 1.0
        %v3817 = vadd.f32 %v3625, 1.0
        %v3818 = vadd.f32 %v3626, 1.0
        %v3819 = vadd.f32 %v3627, 1.0
        %v3820 = vadd.f32 %v3628, 1.0
        %v3821 = vadd.f32 %v3629, 1.0
        %v3822 = vadd.f32 %v3630, 1.0
        %v3823 = vadd.f32 %v3631, 1.0
        %v3824 = vadd.f32 %v3632, 1.0
        %v3825 = vadd.f32 %v3633, 1.0
        %v3826 = vadd.f32 %v3634, 1.0
        %v3827 = vadd.f32 %v3635, 1.0
        %v3828 = vadd.f32 %v3636, 1.0
        %v3829 = vadd.f32 %v3637, 1.0
        %v3830 = vadd.f32 %v3638, 1.0
        %v3831 = vadd.f32 %v3639, 1.0
        %v3832 = vadd.f32 %v3640, 1.0
        %v3833 = vadd.f32 %v3641, 1.0
        %v3834 = vadd.f32 %v3642, 1.0
        %v3835 = vadd.f32 %v3643, 1.0
        %v3836 = vadd.f32 %v3644, 1.0
        %v3837 = vadd.f32 %v3645, 1.0
        %v3838 = vadd.f32 %v3646, 1.0
        %v3839 = vadd.f32 %v3647, 1.0
        %v3840 = vadd.f32 %v3648, 1.0
        %v3841 = vadd.f32 %v3649, 1.0
        %v3842 = vadd.f32 %v3650, 1.0
        %v3843 = vadd.f32 %v3651, 1.0
        %v3844 = vadd.f32 %v3652, 1.0
        %v3845 = vadd.f32 %v3653, 1.0
        %v3846 = vadd.f32 %v3654, 1.0
        %v3847 = vadd.f32 %v3655, 1.0
        %v3848 = vadd.f32 %v3656, 1.0
        %v3849 = vadd.f32 %v3657, 1.0
        %v3850 = vadd.f32 %v3658, 1.0
        %v3851 = vadd.f32 %v3659, 1.0
        %v3852 = vadd.f32 %v3660, 1.0
        %v3853 = vadd.f32 %v3661, 1.0
        %v3854 = vadd.f32 %v3662, 1.0
        %v3855 = vadd.f32 %v3663, 1.0
        %v3856 = vadd.f32 %v3664, 1.0
        %v3857 = vadd.f32 %v3665, 1.0
        %v3858 = vadd.f32 %v3666, 1.0
        %v3859 = vadd.f32 %v3667, 1.0
        %v3860 = vadd.f32 %v3668, 1.0
        %v3861 = vadd.f32 %v3669, 1.0
        %v3862 = vadd.f32 %v3670, 1.0
        %v3863 = vadd.f32 %v3671, 1.0
        %v3864 = vadd.f32 %v3672, 1.0
        %v3865 = vadd.f32 %v3673, 1.0
        %v3866 = vadd.f32 %v3674, 1.0
        %v3867 = vadd.f32 %v3675, 1.0
        %v3868 = vadd.f32 %v3676, 1.0
        %v3869 = vadd.f32 %v3677, 1.0
        %v3870 = vadd.f32 %v3678, 1.0
        %v3871 = vadd.f32 %v3679, 1.0
        %v3872 = vadd.f32 %v3680, 1.0
        %v3873 = vadd.f32 %v3681, 1.0
        %v3874 = vadd.f32 %v3682, 1.0
        %v3875 = vadd.f32 %v3683, 1.0
        %v3876 = vadd.f32 %v3684, 1.0
        %v3877 = vadd.f32 %v3685, 1.0
        %v3878 = vadd.f32 %v3686, 1.0
        %v3879 = vadd.f32 %v3687, 1.0
        %v3880 = vadd.f32 %v3688, 1.0
        %v3881 = vadd.f32 %v3689, 1.0
        %v3882 = vadd.f32 %v3690, 1.0
        %v3883 = vadd.f32 %v3691, 1.0
        %v3884 = vadd.f32 %v3692, 1.0
        %v3885 = vadd.f32 %v3693, 1.0
        %v3886 = vadd.f32 %v3694, 1.0
        %v3887 = vadd.f32 %v3695, 1.0
        %v3888 = vadd.f32 %v3696, 1.0
        %v3889 = vadd.f32 %v3697, 1.0
        %v3890 = vadd.f32 %v3698, 1.0
        %v3891 = vadd.f32 %v3699, 1.0
        %v3892 = vadd.f32 %v3700, 1.0
        %v3893 = vadd.f32 %v3701, 1.0
        %v3894 = vadd.f32 %v3702, 1.0
        %v3895 = vadd.f32 %v3703, 1.0
        %v3896 = vadd.f32 %v3704, 1.0
        %v3897 = vadd.f32 %v3705, 1.0
        %v3898 = vadd.f32 %v3706, 1.0
        %v3899 = vadd.f32 %v3707, 1.0
        %v3900 = vadd.f32 %v3708, 1.0
        %v3901 = vadd.f32 %v3709, 1.0
        %v3902 = vadd.f32 %v3710, 1.0
        %v3903 = vadd.f32 %v3711, 1.0
        %v3904 = vadd.f32 %v3712, 1.0
        %v3905 = vadd.f32 %v3713, 1.0
        %v3906 = vadd.f32 %v3714, 1.0
        %v3907 = vadd.f32 %v3715, 1.0
        %v3908 = vadd.f32 %v3716, 1.0
        %v3909 = vadd.f32 %v3717, 1.0
        %v3910 = vadd.f32 %v3718, 1.0
        %v3911 = vadd.f32 %v3719, 1.0
        %v3912 = vadd.f32 %v3720, 1.0
        %v3913 = vadd.f32 %v3721, 1.0
        %v3914 = vadd.f32 %v3722, 1.0
        %v3915 = vadd.f32 %v3723, 1.0
        %v3916 = vadd.f32 %v3724, 1.0
        %v3917 = vadd.f32 %v3725, 1.0
        %v3918 = vadd.f32 %v3726, 1.0
        %v3919 = vadd.f32 %v3727, 1.0
        %v3920 = vadd.f32 %v3728, 1.0
        %v3921 = vadd.f32 %v3729, 1.0
        %v3922 = vadd.f32 %v3730, 1.0
        %v3923 = vadd.f32 %v3731, 1.0
        %v3924 = vadd.f32 %v3732, 1.0
        %v3925 = vadd.f32 %v3733, 1.0
        %v3926 = vadd.f32 %v3734, 1.0
        %v3927 = vadd.f32 %v3735, 1.0
        %v3928 = vadd.f32 %v3736, 1.0
        %v3929 = vadd.f32 %v3737, 1.0
        %v3930 = vadd.f32 %v3738, 1.0
        %v3931 = vadd.f32 %v3739, 1.0
        %v3932 = vadd.f32 %v3740, 1.0
        %v3933 = vadd.f32 %v3741, 1.0
        %v3934 = vadd.f32 %v3742, 1.0
        %v3935 = vadd.f32 %v3743, 1.0
        %v3936 = vadd.f32 %v3744, 1.0
        %v3937 = vadd.f32 %v3745, 1.0
        %v3938 = vadd.f32 %v3746, 1.0
        %v3939 = vadd.f32 %v3747, 1.0
        %v3940 = vadd.f32 %v3748, 1.0
        %v3941 = vadd.f32 %v3749, 1.0
        %v3942 = vadd.f32 %v3750, 1.0
        %v3943 = vadd.f32 %v3751, 1.0
        %v3944 = vadd.f32 %v3752, 1.0
        %v3945 = vadd.f32 %v3753, 1.0
        %v3946 = vadd.f32 %v3754, 1.0
        %v3947 = vadd.f32 %v3755, 1.0
        %v3948 = vadd.f32 %v3756, 1.0
        %v3949 = vadd.f32 %v3757, 1.0
        %v3950 = vadd.f32 %v3758, 1.0
        %v3951 = vadd.f32 %v3759, 1.0
        %v3952 = vadd.f32 %v3760, 1.0
        %v3953 = vadd.f32 %v3761, 1.0
        %v3954 = vadd.f32 %v3762, 1.0
        %v3955 = vadd.f32 %v3763, 1.0
        %v3956 = vadd.f32 %v3764, 1.0
        %v3957 = vadd.f32 %v3765, 1.0
        %v3958 = vadd.f32 %v3766, 1.0
        %v3959 = vadd.f32 %v3767, 1.0
        %v3960 = vadd.f32 %v3768, 1.0
        %v3961 = vadd.f32 %v3769, 1.0
        %v3962 = vadd.f32 %v3770, 1.0
        %v3963 = vadd.f32 %v3771, 1.0
        %v3964 = vadd.f32 %v3772, 1.0
        %v3965 = vadd.f32 %v3773, 1.0
        %v3966 = vadd.f32 %v3774, 1.0
        %v3967 = vadd.f32 %v3775, 1.0
        %v3968 = vadd.f32 %v3776, 1.0
        %v3969 = vadd.f32 %v3777, 1.0
        %v3970 = vadd.f32 %v3778, 1.0
        %v3971 = vadd.f32 %v3779, 1.0
        %v3972 = vadd.f32 %v3780, 1.0
        %v3973 = vadd.f32 %v3781, 1.0
        %v3974 = vadd.f32 %v3782, 1.0
        %v3975 = vadd.f32 %v3783, 1.0
        %v3976 = vadd.f32 %v3784, 1.0
        %v3977 = vadd.f32 %v3785, 1.0
        %v3978 = vadd.f32 %v3786, 1.0
        %v3979 = vadd.f32 %v3787, 1.0
        %v3980 = vadd.f32 %v3788, 1.0
        %v3981 = vadd.f32 %v3789, 1.0
        %v3982 = vmul.f32 %v3790, 0.5
        %v3983 = vmul.f32 %v3791, 0.5
        %v3984 = vmul.f32 %v3792, 0.5
        %v3985 = vmul.f32 %v3793, 0.5
        %v3986 = vmul.f32 %v3794, 0.5
        %v3987 = vmul.f32 %v3795, 0.5
        %v3988 = vmul.f32 %v3796, 0.5
        %v3989 = vmul.f32 %v3797, 0.5
        %v3990 = vmul.f32 %v3798, 0.5
        %v3991 = vmul.f32 %v3799, 0.5
        %v3992 = vmul.f32 %v3800, 0.5
        %v3993 = vmul.f32 %v3801, 0.5
        %v3994 = vmul.f32 %v3802, 0.5
        %v3995 = vmul.f32 %v3803, 0.5
        %v3996 = vmul.f32 %v3804, 0.5
        %v3997 = vmul.f32 %v3805, 0.5
        %v3998 = vmul.f32 %v3806, 0.5
        %v3999 = vmul.f32 %v3807, 0.5
        %v4000 = vmul.f32 %v3808, 0.5
        %v4001 = vmul.f32 %v3809, 0.5
        %v4002 = vmul.f32 %v3810, 0.5
        %v4003 = vmul.f32 %v3811, 0.5
        %v4004 = vmul.f32 %v3812, 0.5
        %v4005 = vmul.f32 %v3813, 0.5
        %v4006 = vmul.f32 %v3814, 0.5
        %v4007 = vmul.f32 %v3815, 0.5
        %v4008 = vmul.f32 %v3816, 0.5
        %v4009 = vmul.f32 %v3817, 0.5
        %v4010 = vmul.f32 %v3818, 0.5
        %v4011 = vmul.f32 %v3819, 0.5
        %v4012 = vmul.f32 %v3820, 0.5
        %v4013 = vmul.f32 %v3821, 0.5
        %v4014 = vmul.f32 %v3822, 0.5
        %v4015 = vmul.f32 %v3823, 0.5
        %v4016 = vmul.f32 %v3824, 0.5
        %v4017 = vmul.f32 %v3825, 0.5
        %v4018 = vmul.f32 %v3826, 0.5
        %v4019 = vmul.f32 %v3827, 0.5
        %v4020 = vmul.f32 %v3828, 0.5
        %v4021 = vmul.f32 %v3829, 0.5
        %v4022 = vmul.f32 %v3830, 0.5
        %v4023 = vmul.f32 %v3831, 0.5
        %v4024 = vmul.f32 %v3832, 0.5
        %v4025 = vmul.f32 %v3833, 0.5
        %v4026 = vmul.f32 %v3834, 0.5
        %v4027 = vmul.f32 %v3835, 0.5
        %v4028 = vmul.f32 %v3836, 0.5
        %v4029 = vmul.f32 %v3837, 0.5
        %v4030 = vmul.f32 %v3838, 0.5
        %v4031 = vmul.f32 %v3839, 0.5
        %v4032 = vmul.f32 %v3840, 0.5
        %v4033 = vmul.f32 %v3841, 0.5
        %v4034 = vmul.f32 %v3842, 0.5
        %v4035 = vmul.f32 %v3843, 0.5
        %v4036 = vmul.f32 %v3844, 0.5
        %v4037 = vmul.f32 %v3845, 0.5
        %v4038 = vmul.f32 %v3846, 0.5
        %v4039 = vmul.f32 %v3847, 0.5
        %v4040 = vmul.f32 %v3848, 0.5
        %v4041 = vmul.f32 %v3849, 0.5
        %v4042 = vmul.f32 %v3850, 0.5
        %v4043 = vmul.f32 %v3851, 0.5
        %v4044 = vmul.f32 %v3852, 0.5
        %v4045 = vmul.f32 %v3853, 0.5
        %v4046 = vmul.f32 %v3854, 0.5
        %v4047 = vmul.f32 %v3855, 0.5
        %v4048 = vmul.f32 %v3856, 0.5
        %v4049 = vmul.f32 %v3857, 0.5
        %v4050 = vmul.f32 %v3858, 0.5
        %v4051 = vmul.f32 %v3859, 0.5
        %v4052 = vmul.f32 %v3860, 0.5
        %v4053 = vmul.f32 %v3861, 0.5
        %v4054 = vmul.f32 %v3862, 0.5
        %v4055 = vmul.f32 %v3863, 0.5
        %v4056 = vmul.f32 %v3864, 0.5
        %v4057 = vmul.f32 %v3865, 0.5
        %v4058 = vmul.f32 %v3866, 0.5
        %v4059 = vmul.f32 %v3867, 0.5
        %v4060 = vmul.f32 %v3868, 0.5
        %v4061 = vmul.f32 %v3869, 0.5
        %v4062 = vmul.f32 %v3870, 0.5
        %v4063 = vmul.f32 %v3871, 0.5
        %v4064 = vmul.f32 %v3872, 0.5
        %v4065 = vmul.f32 %v3873, 0.5
        %v4066 = vmul.f32 %v3874, 0.5
        %v4067 = vmul.f32 %v3875, 0.5
        %v4068 = vmul.f32 %v3876, 0.5
        %v4069 = vmul.f32 %v3877, 0.5
        %v4070 = vmul.f32 %v3878, 0.5
        %v4071 = vmul.f32 %v3879, 0.5
        %v4072 = vmul.f32 %v3880, 0.5
        %v4073 = vmul.f32 %v3881, 0.5
        %v4074 = vmul.f32 %v3882, 0.5
        %v4075 = vmul.f32 %v3883, 0.5
        %v4076 = vmul.f32 %v3884, 0.5
        %v4077 = vmul.f32 %v3885, 0.5
        %v4078 = vmul.f32 %v3886, 0.5
        %v4079 = vmul.f32 %v3887, 0.5
        %v4080 = vmul.f32 %v3888, 0.5
        %v4081 = vmul.f32 %v3889, 0.5
        %v4082 = vmul.f32 %v3890, 0.5
        %v4083 = vmul.f32 %v3891, 0.5
        %v4084 = vmul.f32 %v3892, 0.5
        %v4085 = vmul.f32 %v3893, 0.5
        %v4086 = vmul.f32 %v3894, 0.5
        %v4087 = vmul.f32 %v3895, 0.5
        %v4088 = vmul.f32 %v3896, 0.5
        %v4089 = vmul.f32 %v3897, 0.5
        %v4090 = vmul.f32 %v3898, 0.5
        %v4091 = vmul.f32 %v3899, 0.5
        %v4092 = vmul.f32 %v3900, 0.5
        %v4093 = vmul.f32 %v3901, 0.5
        %v4094 = vmul.f32 %v3902, 0.5
        %v4095 = vmul.f32 %v3903, 0.5
        %v4096 = vmul.f32 %v3904, 0.5
        %v4097 = vmul.f32 %v3905, 0.5
        %v4098 = vmul.f32 %v3906, 0.5
        %v4099 = vmul.f32 %v3907, 0.5
        %v4100 = vmul.f32 %v3908, 0.5
        %v4101 = vmul.f32 %v3909, 0.5
        %v4102 = vmul.f32 %v3910, 0.5
        %v4103 = vmul.f32 %v3911, 0.5
        %v4104 = vmul.f32 %v3912, 0.5
        %v4105 = vmul.f32 %v3913, 0.5
        %v4106 = vmul.f32 %v3914, 0.5
        %v4107 = vmul.f32 %v3915, 0.5
        %v4108 = vmul.f32 %v3916, 0.5
        %v4109 = vmul.f32 %v3917, 0.5
        %v4110 = vmul.f32 %v3918, 0.5
        %v4111 = vmul.f32 %v3919, 0.5
        %v4112 = vmul.f32 %v3920, 0.5
        %v4113 = vmul.f32 %v3921, 0.5
        %v4114 = vmul.f32 %v3922, 0.5
        %v4115 = vmul.f32 %v3923, 0.5
        %v4116 = vmul.f32 %v3924, 0.5
        %v4117 = vmul.f32 %v3925, 0.5
        %v4118 = vmul.f32 %v3926, 0.5
        %v4119 = vmul.f32 %v3927, 0.5
        %v4120 = vmul.f32 %v3928, 0.5
        %v4121 = vmul.f32 %v3929, 0.5
        %v4122 = vmul.f32 %v3930, 0.5
        %v4123 = vmul.f32 %v3931, 0.5
        %v4124 = vmul.f32 %v3932, 0.5
        %v4125 = vmul.f32 %v3933, 0.5
        %v4126 = vmul.f32 %v3934, 0.5
        %v4127 = vmul.f32 %v3935, 0.5
        %v4128 = vmul.f32 %v3936, 0.5
        %v4129 = vmul.f32 %v3937, 0.5
        %v4130 = vmul.f32 %v3938, 0.5
        %v4131 = vmul.f32 %v3939, 0.5
        %v4132 = vmul.f32 %v3940, 0.5
        %v4133 = vmul.f32 %v3941, 0.5
        %v4134 = vmul.f32 %v3942, 0.5
        %v4135 = vmul.f32 %v3943, 0.5
        %v4136 = vmul.f32 %v3944, 0.5
        %v4137 = vmul.f32 %v3945, 0.5
        %v4138 = vmul.f32 %v3946, 0.5
        %v4139 = vmul.f32 %v3947, 0.5
        %v4140 = vmul.f32 %v3948, 0.5
        %v4141 = vmul.f32 %v3949, 0.5
        %v4142 = vmul.f32 %v3950, 0.5
        %v4143 = vmul.f32 %v3951, 0.5
        %v4144 = vmul.f32 %v3952, 0.5
        %v4145 = vmul.f32 %v3953, 0.5
        %v4146 = vmul.f32 %v3954, 0.5
        %v4147 = vmul.f32 %v3955, 0.5
        %v4148 = vmul.f32 %v3956, 0.5
        %v4149 = vmul.f32 %v3957, 0.5
        %v4150 = vmul.f32 %v3958, 0.5
        %v4151 = vmul.f32 %v3959, 0.5
        %v4152 = vmul.f32 %v3960, 0.5
        %v4153 = vmul.f32 %v3961, 0.5
        %v4154 = vmul.f32 %v3962, 0.5
        %v4155 = vmul.f32 %v3963, 0.5
        %v4156 = vmul.f32 %v3964, 0.5
        %v4157 = vmul.f32 %v3965, 0.5
        %v4158 = vmul.f32 %v3966, 0.5
        %v4159 = vmul.f32 %v3967, 0.5
        %v4160 = vmul.f32 %v3968, 0.5
        %v4161 = vmul.f32 %v3969, 0.5
        %v4162 = vmul.f32 %v3970, 0.5
        %v4163 = vmul.f32 %v3971, 0.5
        %v4164 = vmul.f32 %v3972, 0.5
        %v4165 = vmul.f32 %v3973, 0.5
        %v4166 = vmul.f32 %v3974, 0.5
        %v4167 = vmul.f32 %v3975, 0.5
        %v4168 = vmul.f32 %v3976, 0.5
        %v4169 = vmul.f32 %v3977, 0.5
        %v4170 = vmul.f32 %v3978, 0.5
        %v4171 = vmul.f32 %v3979, 0.5
        %v4172 = vmul.f32 %v3980, 0.5
        %v4173 = vmul.f32 %v3981, 0.5
        %4174 = vst [vmem:[%s459] sm:$0xff] %v3982
        %4175 = vst [vmem:[%s459 + $0x8] sm:$0xff] %v3983
        %4176 = vst [vmem:[%s459 + $0x10] sm:$0xff] %v3984
        %4177 = vst [vmem:[%s459 + $0x18] sm:$0xff] %v3985
        %4178 = vst [vmem:[%s459 + $0x20] sm:$0xff] %v3986
        %4179 = vst [vmem:[%s459 + $0x28] sm:$0xff] %v3987
        %4180 = vst [vmem:[%s459 + $0x30] sm:$0xff] %v3988
        %4181 = vst [vmem:[%s459 + $0x38] sm:$0xff] %v3989
        %4182 = vst [vmem:[%s459 + $0x40] sm:$0xff] %v3990
        %4183 = vst [vmem:[%s459 + $0x48] sm:$0xff] %v3991
        %4184 = vst [vmem:[%s459 + $0x50] sm:$0xff] %v3992
        %4185 = vst [vmem:[%s459 + $0x58] sm:$0xff] %v3993
        %4186 = vst [vmem:[%s459 + $0x60] sm:$0xff] %v3994
        %4187 = vst [vmem:[%s459 + $0x68] sm:$0xff] %v3995
        %4188 = vst [vmem:[%s459 + $0x70] sm:$0xff] %v3996
        %4189 = vst [vmem:[%s459 + $0x78] sm:$0xff] %v3997
        %4190 = vst [vmem:[%s459 + $0x80] sm:$0xff] %v3998
        %4191 = vst [vmem:[%s459 + $0x88] sm:$0xff] %v3999
        %4192 = vst [vmem:[%s459 + $0x90] sm:$0xff] %v4000
        %4193 = vst [vmem:[%s459 + $0x98] sm:$0xff] %v4001
        %4194 = vst [vmem:[%s459 + $0xa0] sm:$0xff] %v4002
        %4195 = vst [vmem:[%s459 + $0xa8] sm:$0xff] %v4003
        %4196 = vst [vmem:[%s459 + $0xb0] sm:$0xff] %v4004
        %4197 = vst [vmem:[%s459 + $0xb8] sm:$0xff] %v4005
        %4198 = vst [vmem:[%s459 + $0xc0] sm:$0xff] %v4006
        %4199 = vst [vmem:[%s459 + $0xc8] sm:$0xff] %v4007
        %4200 = vst [vmem:[%s459 + $0xd0] sm:$0xff] %v4008
        %4201 = vst [vmem:[%s459 + $0xd8] sm:$0xff] %v4009
        %4202 = vst [vmem:[%s459 + $0xe0] sm:$0xff] %v4010
        %4203 = vst [vmem:[%s459 + $0xe8] sm:$0xff] %v4011
        %4204 = vst [vmem:[%s459 + $0xf0] sm:$0xff] %v4012
        %4205 = vst [vmem:[%s459 + $0xf8] sm:$0xff] %v4013
        %4206 = vst [vmem:[%s459 + $0x100] sm:$0xff] %v4014
        %4207 = vst [vmem:[%s459 + $0x108] sm:$0xff] %v4015
        %4208 = vst [vmem:[%s459 + $0x110] sm:$0xff] %v4016
        %4209 = vst [vmem:[%s459 + $0x118] sm:$0xff] %v4017
        %4210 = vst [vmem:[%s459 + $0x120] sm:$0xff] %v4018
        %4211 = vst [vmem:[%s459 + $0x128] sm:$0xff] %v4019
        %4212 = vst [vmem:[%s459 + $0x130] sm:$0xff] %v4020
        %4213 = vst [vmem:[%s459 + $0x138] sm:$0xff] %v4021
        %4214 = vst [vmem:[%s459 + $0x140] sm:$0xff] %v4022
        %4215 = vst [vmem:[%s459 + $0x148] sm:$0xff] %v4023
        %4216 = vst [vmem:[%s459 + $0x150] sm:$0xff] %v4024
        %4217 = vst [vmem:[%s459 + $0x158] sm:$0xff] %v4025
        %4218 = vst [vmem:[%s459 + $0x160] sm:$0xff] %v4026
        %4219 = vst [vmem:[%s459 + $0x168] sm:$0xff] %v4027
        %4220 = vst [vmem:[%s459 + $0x170] sm:$0xff] %v4028
        %4221 = vst [vmem:[%s459 + $0x178] sm:$0xff] %v4029
        %4222 = vst [vmem:[%s459 + $0x180] sm:$0xff] %v4030
        %4223 = vst [vmem:[%s459 + $0x188] sm:$0xff] %v4031
        %4224 = vst [vmem:[%s459 + $0x190] sm:$0xff] %v4032
        %4225 = vst [vmem:[%s459 + $0x198] sm:$0xff] %v4033
        %4226 = vst [vmem:[%s459 + $0x1a0] sm:$0xff] %v4034
        %4227 = vst [vmem:[%s459 + $0x1a8] sm:$0xff] %v4035
        %4228 = vst [vmem:[%s459 + $0x1b0] sm:$0xff] %v4036
        %4229 = vst [vmem:[%s459 + $0x1b8] sm:$0xff] %v4037
        %4230 = vst [vmem:[%s459 + $0x1c0] sm:$0xff] %v4038
        %4231 = vst [vmem:[%s459 + $0x1c8] sm:$0xff] %v4039
        %4232 = vst [vmem:[%s459 + $0x1d0] sm:$0xff] %v4040
        %4233 = vst [vmem:[%s459 + $0x1d8] sm:$0xff] %v4041
        %4234 = vst [vmem:[%s459 + $0x1e0] sm:$0xff] %v4042
        %4235 = vst [vmem:[%s459 + $0x1e8] sm:$0xff] %v4043
        %4236 = vst [vmem:[%s459 + $0x1f0] sm:$0xff] %v4044
        %4237 = vst [vmem:[%s459 + $0x1f8] sm:$0xff] %v4045
        %4238 = vst [vmem:[%s459 + $0x200] sm:$0xff] %v4046
        %4239 = vst [vmem:[%s459 + $0x208] sm:$0xff] %v4047
        %4240 = vst [vmem:[%s459 + $0x210] sm:$0xff] %v4048
        %4241 = vst [vmem:[%s459 + $0x218] sm:$0xff] %v4049
        %4242 = vst [vmem:[%s459 + $0x220] sm:$0xff] %v4050
        %4243 = vst [vmem:[%s459 + $0x228] sm:$0xff] %v4051
        %4244 = vst [vmem:[%s459 + $0x230] sm:$0xff] %v4052
        %4245 = vst [vmem:[%s459 + $0x238] sm:$0xff] %v4053
        %4246 = vst [vmem:[%s459 + $0x240] sm:$0xff] %v4054
        %4247 = vst [vmem:[%s459 + $0x248] sm:$0xff] %v4055
        %4248 = vst [vmem:[%s459 + $0x250] sm:$0xff] %v4056
        %4249 = vst [vmem:[%s459 + $0x258] sm:$0xff] %v4057
        %4250 = vst [vmem:[%s459 + $0x260] sm:$0xff] %v4058
        %4251 = vst [vmem:[%s459 + $0x268] sm:$0xff] %v4059
        %4252 = vst [vmem:[%s459 + $0x270] sm:$0xff] %v4060
        %4253 = vst [vmem:[%s459 + $0x278] sm:$0xff] %v4061
        %4254 = vst [vmem:[%s459 + $0x280] sm:$0xff] %v4062
        %4255 = vst [vmem:[%s459 + $0x288] sm:$0xff] %v4063
        %4256 = vst [vmem:[%s459 + $0x290] sm:$0xff] %v4064
        %4257 = vst [vmem:[%s459 + $0x298] sm:$0xff] %v4065
        %4258 = vst [vmem:[%s459 + $0x2a0] sm:$0xff] %v4066
        %4259 = vst [vmem:[%s459 + $0x2a8] sm:$0xff] %v4067
        %4260 = vst [vmem:[%s459 + $0x2b0] sm:$0xff] %v4068
        %4261 = vst [vmem:[%s459 + $0x2b8] sm:$0xff] %v4069
        %4262 = vst [vmem:[%s459 + $0x2c0] sm:$0xff] %v4070
        %4263 = vst [vmem:[%s459 + $0x2c8] sm:$0xff] %v4071
        %4264 = vst [vmem:[%s459 + $0x2d0] sm:$0xff] %v4072
        %4265 = vst [vmem:[%s459 + $0x2d8] sm:$0xff] %v4073
        %4266 = vst [vmem:[%s459 + $0x2e0] sm:$0xff] %v4074
        %4267 = vst [vmem:[%s459 + $0x2e8] sm:$0xff] %v4075
        %4268 = vst [vmem:[%s459 + $0x2f0] sm:$0xff] %v4076
        %4269 = vst [vmem:[%s459 + $0x2f8] sm:$0xff] %v4077
        %4270 = vst [vmem:[%s459 + $0x300] sm:$0xff] %v4078
        %4271 = vst [vmem:[%s459 + $0x308] sm:$0xff] %v4079
        %4272 = vst [vmem:[%s459 + $0x310] sm:$0xff] %v4080
        %4273 = vst [vmem:[%s459 + $0x318] sm:$0xff] %v4081
        %4274 = vst [vmem:[%s459 + $0x320] sm:$0xff] %v4082
        %4275 = vst [vmem:[%s459 + $0x328] sm:$0xff] %v4083
        %4276 = vst [vmem:[%s459 + $0x330] sm:$0xff] %v4084
        %4277 = vst [vmem:[%s459 + $0x338] sm:$0xff] %v4085
        %4278 = vst [vmem:[%s459 + $0x340] sm:$0xff] %v4086
        %4279 = vst [vmem:[%s459 + $0x348] sm:$0xff] %v4087
        %4280 = vst [vmem:[%s459 + $0x350] sm:$0xff] %v4088
        %4281 = vst [vmem:[%s459 + $0x358] sm:$0xff] %v4089
        %4282 = vst [vmem:[%s459 + $0x360] sm:$0xff] %v4090
        %4283 = vst [vmem:[%s459 + $0x368] sm:$0xff] %v4091
        %4284 = vst [vmem:[%s459 + $0x370] sm:$0xff] %v4092
        %4285 = vst [vmem:[%s459 + $0x378] sm:$0xff] %v4093
        %4286 = vst [vmem:[%s459 + $0x380] sm:$0xff] %v4094
        %4287 = vst [vmem:[%s459 + $0x388] sm:$0xff] %v4095
        %4288 = vst [vmem:[%s459 + $0x390] sm:$0xff] %v4096
        %4289 = vst [vmem:[%s459 + $0x398] sm:$0xff] %v4097
        %4290 = vst [vmem:[%s459 + $0x3a0] sm:$0xff] %v4098
        %4291 = vst [vmem:[%s459 + $0x3a8] sm:$0xff] %v4099
        %4292 = vst [vmem:[%s459 + $0x3b0] sm:$0xff] %v4100
        %4293 = vst [vmem:[%s459 + $0x3b8] sm:$0xff] %v4101
        %4294 = vst [vmem:[%s459 + $0x3c0] sm:$0xff] %v4102
        %4295 = vst [vmem:[%s459 + $0x3c8] sm:$0xff] %v4103
        %4296 = vst [vmem:[%s459 + $0x3d0] sm:$0xff] %v4104
        %4297 = vst [vmem:[%s459 + $0x3d8] sm:$0xff] %v4105
        %4298 = vst [vmem:[%s459 + $0x3e0] sm:$0xff] %v4106
        %4299 = vst [vmem:[%s459 + $0x3e8] sm:$0xff] %v4107
        %4300 = vst [vmem:[%s459 + $0x3f0] sm:$0xff] %v4108
        %4301 = vst [vmem:[%s459 + $0x3f8] sm:$0xff] %v4109
        %4302 = vst [vmem:[%s459 + $0x400] sm:$0xff] %v4110
        %4303 = vst [vmem:[%s459 + $0x408] sm:$0xff] %v4111
        %4304 = vst [vmem:[%s459 + $0x410] sm:$0xff] %v4112
        %4305 = vst [vmem:[%s459 + $0x418] sm:$0xff] %v4113
        %4306 = vst [vmem:[%s459 + $0x420] sm:$0xff] %v4114
        %4307 = vst [vmem:[%s459 + $0x428] sm:$0xff] %v4115
        %4308 = vst [vmem:[%s459 + $0x430] sm:$0xff] %v4116
        %4309 = vst [vmem:[%s459 + $0x438] sm:$0xff] %v4117
        %4310 = vst [vmem:[%s459 + $0x440] sm:$0xff] %v4118
        %4311 = vst [vmem:[%s459 + $0x448] sm:$0xff] %v4119
        %4312 = vst [vmem:[%s459 + $0x450] sm:$0xff] %v4120
        %4313 = vst [vmem:[%s459 + $0x458] sm:$0xff] %v4121
        %4314 = vst [vmem:[%s459 + $0x460] sm:$0xff] %v4122
        %4315 = vst [vmem:[%s459 + $0x468] sm:$0xff] %v4123
        %4316 = vst [vmem:[%s459 + $0x470] sm:$0xff] %v4124
        %4317 = vst [vmem:[%s459 + $0x478] sm:$0xff] %v4125
        %4318 = vst [vmem:[%s459 + $0x480] sm:$0xff] %v4126
        %4319 = vst [vmem:[%s459 + $0x488] sm:$0xff] %v4127
        %4320 = vst [vmem:[%s459 + $0x490] sm:$0xff] %v4128
        %4321 = vst [vmem:[%s459 + $0x498] sm:$0xff] %v4129
        %4322 = vst [vmem:[%s459 + $0x4a0] sm:$0xff] %v4130
        %4323 = vst [vmem:[%s459 + $0x4a8] sm:$0xff] %v4131
        %4324 = vst [vmem:[%s459 + $0x4b0] sm:$0xff] %v4132
        %4325 = vst [vmem:[%s459 + $0x4b8] sm:$0xff] %v4133
        %4326 = vst [vmem:[%s459 + $0x4c0] sm:$0xff] %v4134
        %4327 = vst [vmem:[%s459 + $0x4c8] sm:$0xff] %v4135
        %4328 = vst [vmem:[%s459 + $0x4d0] sm:$0xff] %v4136
        %4329 = vst [vmem:[%s459 + $0x4d8] sm:$0xff] %v4137
        %4330 = vst [vmem:[%s459 + $0x4e0] sm:$0xff] %v4138
        %4331 = vst [vmem:[%s459 + $0x4e8] sm:$0xff] %v4139
        %4332 = vst [vmem:[%s459 + $0x4f0] sm:$0xff] %v4140
        %4333 = vst [vmem:[%s459 + $0x4f8] sm:$0xff] %v4141
        %4334 = vst [vmem:[%s459 + $0x500] sm:$0xff] %v4142
        %4335 = vst [vmem:[%s459 + $0x508] sm:$0xff] %v4143
        %4336 = vst [vmem:[%s459 + $0x510] sm:$0xff] %v4144
        %4337 = vst [vmem:[%s459 + $0x518] sm:$0xff] %v4145
        %4338 = vst [vmem:[%s459 + $0x520] sm:$0xff] %v4146
        %4339 = vst [vmem:[%s459 + $0x528] sm:$0xff] %v4147
        %4340 = vst [vmem:[%s459 + $0x530] sm:$0xff] %v4148
        %4341 = vst [vmem:[%s459 + $0x538] sm:$0xff] %v4149
        %4342 = vst [vmem:[%s459 + $0x540] sm:$0xff] %v4150
        %4343 = vst [vmem:[%s459 + $0x548] sm:$0xff] %v4151
        %4344 = vst [vmem:[%s459 + $0x550] sm:$0xff] %v4152
        %4345 = vst [vmem:[%s459 + $0x558] sm:$0xff] %v4153
        %4346 = vst [vmem:[%s459 + $0x560] sm:$0xff] %v4154
        %4347 = vst [vmem:[%s459 + $0x568] sm:$0xff] %v4155
        %4348 = vst [vmem:[%s459 + $0x570] sm:$0xff] %v4156
        %4349 = vst [vmem:[%s459 + $0x578] sm:$0xff] %v4157
        %4350 = vst [vmem:[%s459 + $0x580] sm:$0xff] %v4158
        %4351 = vst [vmem:[%s459 + $0x588] sm:$0xff] %v4159
        %4352 = vst [vmem:[%s459 + $0x590] sm:$0xff] %v4160
        %4353 = vst [vmem:[%s459 + $0x598] sm:$0xff] %v4161
        %4354 = vst [vmem:[%s459 + $0x5a0] sm:$0xff] %v4162
        %4355 = vst [vmem:[%s459 + $0x5a8] sm:$0xff] %v4163
        %4356 = vst [vmem:[%s459 + $0x5b0] sm:$0xff] %v4164
        %4357 = vst [vmem:[%s459 + $0x5b8] sm:$0xff] %v4165
        %4358 = vst [vmem:[%s459 + $0x5c0] sm:$0xff] %v4166
        %4359 = vst [vmem:[%s459 + $0x5c8] sm:$0xff] %v4167
        %4360 = vst [vmem:[%s459 + $0x5d0] sm:$0xff] %v4168
        %4361 = vst [vmem:[%s459 + $0x5d8] sm:$0xff] %v4169
        %4362 = vst [vmem:[%s459 + $0x5e0] sm:$0xff] %v4170
        %4363 = vst [vmem:[%s459 + $0x5e8] sm:$0xff] %v4171
        %4364 = vst [vmem:[%s459 + $0x5f0] sm:$0xff] %v4172
        %4365 = vst [vmem:[%s459 + $0x5f8] sm:$0xff] %v4173
        %s4366 = sand.u32 %s232, 1
        %s4367 = scalar_lea.sflag [#allocation4], %s4366
        %s4368 = sand.u32 %s232, 1
        %s4369 = smul.addr %s4368, 1536
        %s4370 = scalar_lea.vmem [#allocation17], %s4369
        // Predicated region
        $region93: #{tpu_custom_call.1} parent=55 // pred_check
          %p4371 = pneg %p242
        $region94: #{tpu_custom_call.1} parent=55 // pred_check_branch
          %4373 = sbr.rel (%p4371) target = $region96
        $region95: #{tpu_custom_call.1} parent=55 // pred_region
          %s4374 = smul.u32 24, %s30
          %s4376 = ssub.s32 24576, 24576
          %4377 = vsyncadd %s4367, %s4376
          %s4378 = smul.addr %s4374, 8
          %s4379 = smul.addr %s4378, 128
          %s4380 = scalar_lea.hbm %s9, %s4379
          %s4381 = sshll.u32 %s4370, 4
          %s4382 = int_to_ptr.vmem [resolvable:$true] %s4381
          %4387 = dma.vmem_to_hbm [thread:$0]  %s4382, 24576, %s4380, %s4367, 1024, 1024, 64
        $region96: #{tpu_custom_call.1} parent=55 // pred_fallthru
          _
      $region56: #{tpu_custom_call.1} parent=5 // pred_fallthru
        _
      %p4388 = scmp.le.s32.totalorder 2, %s25
      // Predicated region
      $region97: #{tpu_custom_call.1} parent=5 // pred_check
        %p4389 = pneg %p4388
      $region98: #{tpu_custom_call.1} parent=5 // pred_check_branch
        %4391 = sbr.rel (%p4389) target = $region100
      $region99: #{tpu_custom_call.1} parent=5 // pred_region
        %s4392 = ssub.s32 %s25, 2
        // Predicated region
        $region101: #{tpu_custom_call.1} parent=99 // pred_check
          %p4393 = pneg %p248
        $region102: #{tpu_custom_call.1} parent=99 // pred_check_branch
          %4395 = sbr.rel (%p4393) target = $region104
        $region103: #{tpu_custom_call.1} parent=99 // pred_region
          %s4396 = sand.u32 %s233, 1
          %s4397 = scalar_lea.sflag [#allocation4], %s4396
          %s4398 = sand.u32 %s233, 1
          %s4399 = smul.addr %s4398, 1536
          %s4400 = scalar_lea.vmem [#allocation17], %s4399
          %4401 = dma.done %s4397, 24576
        $region104: #{tpu_custom_call.1} parent=99 // pred_fallthru
          _
      $region100: #{tpu_custom_call.1} parent=5 // pred_fallthru
        _
    $region6: #{tpu_custom_call.1} parent=1 // loop_footer
      %s29 = sadd.s32 1, %s25
    $region7: #{tpu_custom_call.1} parent=1 // loop_footer_branch
      %24 = sbr.rel target = $region3
    $region8: #{tpu_custom_call.1} parent=1 // loop_exit
      _
    %4402 = vsyncpa [#allocation3], 1
    %s4403 = scalar_lea.sflag [#allocation3], 1
    %4404 = vsyncpa %s4403, 1
    %4405 = vsyncpa [#allocation6], 1
    %4406 = vsyncpa [#allocation9], 1
    %4407 = vsyncpa [#allocation12], 1
    %4408 = vsyncpa [#allocation15], 1
    %4409 = vsyncpa [#allocation4], 1
    %s4410 = scalar_lea.sflag [#allocation4], 1
    %4411 = vsyncpa %s4410, 1

</llo_original>
